<compile_context>
chip_gen: v7x
topology: tpu7x:2x2x1
jax: 0.10.0
libtpu: 0.0.40
codegen_flags: <defaults>
</compile_context>

<pallas_src>
import jax
import jax.numpy as jnp
from jax import lax
from jax.experimental import pallas as pl
from jax.experimental.pallas import tpu as pltpu

# Static geometry implied by the module: fc1 expects 16*6*6 features, so the
# input spatial size is 26x26:  26 + 2*2 - 3 + 1 = 28 -> pool 14 -> conv 12 -> pool 6.
IN_H = 26
PAD = 2
K = 3
C1, C2 = 6, 16
H_PAD = IN_H + 2 * PAD        # 30  (padded input)
H1 = H_PAD - K + 1            # 28  (conv1 output)
P1 = H1 // 2                  # 14  (pool1 output)
H2 = P1 - K + 1               # 12  (conv2 output)
P2 = H2 // 2                  # 6   (pool2 output)
FLAT = C2 * P2 * P2           # 576
FC1, FC2 = 120, 84
FCP = 128                     # FC lane padding (multiple of 128 -> dense stores)

B_TILE = 8                    # samples per grid step


# --------------------------------------------------------------------------- #
# Kernel: one batch tile end-to-end.
# Activation layout: rows = h*B + b, lanes = w*C + c  (channel-last).
# --------------------------------------------------------------------------- #
def fused_feature_kernel(x_ref, t1_ref, b1_ref, selw1_ref, selh1_ref,
                         t2_ref, b2_ref, selw2_ref, selh2_ref,
                         w1h_ref, fb1_ref, fw2_ref, fb2_ref, out_ref):
    B = out_ref.shape[0]
    x = x_ref[0]                                        # (30*B, 30), rows = h*B + b

    # ---- conv1 (1 -> 6, 3x3, input pre-padded): 3 banded matmuls over width ----
    y1 = jnp.dot(x[0:H1 * B, :], t1_ref[0], preferred_element_type=jnp.float32)
    for kh in range(1, K):
        y1 = y1 + jnp.dot(x[kh * B:(kh + H1) * B, :], t1_ref[kh],
                          preferred_element_type=jnp.float32)
    y1 = jnp.maximum(y1 + b1_ref[...], 0.0)             # (28B, 28*6=168)

    # ---- 2x2 max-pool #1: lane-pair max + selector matmul, row-pair max + selector matmul
    mw = jnp.maximum(y1[:, :(H1 - 1) * C1], y1[:, C1:])                       # (28B, 162)
    pw = jnp.dot(mw, selw1_ref[...], preferred_element_type=jnp.float32)      # (28B, 14*6=84)
    mh = jnp.maximum(pw[:-B, :], pw[B:, :])                                   # (27B, 84)
    p1 = jnp.dot(selh1_ref[...], mh, preferred_element_type=jnp.float32)      # (14B, 84)

    # ---- conv2 (6 -> 16, 3x3): 3 banded matmuls over width ----
    y2 = jnp.dot(p1[0:H2 * B, :], t2_ref[0], preferred_element_type=jnp.float32)
    for kh in range(1, K):
        y2 = y2 + jnp.dot(p1[kh * B:(kh + H2) * B, :], t2_ref[kh],
                          preferred_element_type=jnp.float32)
    y2 = jnp.maximum(y2 + b2_ref[...], 0.0)             # (12B, 12*16=192)

    # ---- 2x2 max-pool #2 ----
    mw2 = jnp.maximum(y2[:, :(H2 - 1) * C2], y2[:, C2:])                      # (12B, 176)
    pw2 = jnp.dot(mw2, selw2_ref[...], preferred_element_type=jnp.float32)    # (12B, 6*16=96)
    mh2 = jnp.maximum(pw2[:-B, :], pw2[B:, :])                                # (11B, 96)
    feat = jnp.dot(selh2_ref[...], mh2, preferred_element_type=jnp.float32)   # (6B, 96), rows=h*B+b

    # ---- fc1: contraction over (h, w*16+c); flatten folded into pre-permuted weights
    acc = jnp.dot(feat[0:B, :], w1h_ref[0], preferred_element_type=jnp.float32)
    for h in range(1, P2):
        acc = acc + jnp.dot(feat[h * B:(h + 1) * B, :], w1h_ref[h],
                            preferred_element_type=jnp.float32)
    h1 = jnp.maximum(acc + fb1_ref[...], 0.0)           # (B, 128)  (cols >=120 are 0)

    # ---- fc2 (output padded to 128 lanes -> unmasked, lane-dense store) ----
    o = jnp.dot(h1, fw2_ref[...], preferred_element_type=jnp.float32) + fb2_ref[...]
    out_ref[...] = jnp.maximum(o, 0.0)                  # (B, 128)


# --------------------------------------------------------------------------- #
# Constant-operand builders (trace-time glue in the wrapper).
# --------------------------------------------------------------------------- #
def _band_weights1(w1):
    """T1[kh][r, w*C1 + co] = w1[co, 0, kh, r - w]  (3, 30, 168)."""
    r = jnp.arange(H_PAD)[:, None]
    w = jnp.arange(H1)[None, :]
    mats = []
    for kh in range(K):
        acc = jnp.zeros((H_PAD, H1, C1), jnp.float32)
        for kw in range(K):
            mask = (r == w + kw).astype(jnp.float32)                 # (30, 28)
            acc = acc + mask[:, :, None] * w1[:, 0, kh, kw][None, None, :]
        mats.append(acc.reshape(H_PAD, H1 * C1))
    return jnp.stack(mats, axis=0)


def _band_weights2(w2):
    """T2[kh][(w+kw)*C1 + ci, w*C2 + co] = w2[co, ci, kh, kw]  (3, 84, 192)."""
    r = jnp.arange(P1)[:, None]
    w = jnp.arange(H2)[None, :]
    mats = []
    for kh in range(K):
        acc = jnp.zeros((P1, C1, H2, C2), jnp.float32)
        for kw in range(K):
            mask = (r == w + kw).astype(jnp.float32)                 # (14, 12)
            acc = acc + (mask[:, None, :, None] *
                         w2[:, :, kh, kw].T[None, :, None, :])       # (14, 6, 12, 16)
        mats.append(acc.reshape(P1 * C1, H2 * C2))
    return jnp.stack(mats, axis=0)


def _lane_pool_selector(w_in, c):
    """One-hot ((w_in-1)*c, (w_in//2)*c): out lane w2*c+ch <- in lane (2*w2)*c+ch."""
    ii = jnp.arange((w_in - 1) * c)[:, None]
    jj = jnp.arange((w_in // 2) * c)[None, :]
    return (ii == 2 * c * (jj // c) + (jj % c)).astype(jnp.float32)


def _row_pool_selector(h_in, b):
    """One-hot ((h_in//2)*b, (h_in-1)*b): out row h2*b+bb <- in row (2*h2)*b+bb."""
    pp = jnp.arange((h_in // 2) * b)[:, None]
    qq = jnp.arange((h_in - 1) * b)[None, :]
    return (qq == 2 * b * (pp // b) + (pp % b)).astype(jnp.float32)


def feature_extractor_pallas(x, params, b_tile=B_TILE):
    """x: (N, 1, 26, 26) float32 NCHW.  Returns (N, 84) float32."""
    w1, b1, w2, b2, fw1, fb1, fw2, fb2 = params
    n = x.shape[0]
    ntiles = (n + b_tile - 1) // b_tile
    npad = ntiles * b_tile

    # Pad batch to the tile size, apply conv1's zero padding, and lay the tile
    # out as rows = h*b_tile + b so the kernel never needs an in-kernel reshape.
    xpad = jnp.pad(x[:, 0], ((0, npad - n), (PAD, PAD), (PAD, PAD)))          # (Npad,30,30)
    xt = (xpad.reshape(ntiles, b_tile, H_PAD, H_PAD)
              .transpose(0, 2, 1, 3)
              .reshape(ntiles, H_PAD * b_tile, H_PAD))                        # (T, 30*B, 30)

    # Banded conv weights, per-stage pooling selectors, channel-last biases.
    t1 = _band_weights1(w1)                                  # (3, 30, 168)
    t2 = _band_weights2(w2)                                  # (3, 84, 192)
    b1row = jnp.tile(b1, H1).reshape(1, H1 * C1)             # (1, 168)
    b2row = jnp.tile(b2, H2).reshape(1, H2 * C2)             # (1, 192)
    selw1 = _lane_pool_selector(H1, C1)                      # (162, 84)
    selw2 = _lane_pool_selector(H2, C2)                      # (176, 96)
    selh1 = _row_pool_selector(H1, b_tile)                   # (14B, 27B)
    selh2 = _row_pool_selector(H2, b_tile)                   # (6B, 11B)

    # fc1 weight permuted so the flatten matches the kernel's (h, w*16+c) feature
    # layout (PyTorch flattens NCHW as c*36 + h*6 + w); lane dims padded to 128.
    w1h = (fw1.reshape(FC1, C2, P2, P2)
              .transpose(2, 3, 1, 0)
              .reshape(P2, P2 * C2, FC1))                    # (6, 96, 120)
    w1h = jnp.pad(w1h, ((0, 0), (0, 0), (0, FCP - FC1)))     # (6, 96, 128)
    fb1row = jnp.pad(fb1, (0, FCP - FC1)).reshape(1, FCP)
    fw2p = jnp.pad(fw2.T, ((0, FCP - FC1), (0, FCP - FC2)))  # (128, 128)
    fb2row = jnp.pad(fb2, (0, FCP - FC2)).reshape(1, FCP)

    const2 = lambda a: pl.BlockSpec(a.shape, lambda i: (0, 0))
    const3 = lambda a: pl.BlockSpec(a.shape, lambda i: (0, 0, 0))

    out = pl.pallas_call(
        fused_feature_kernel,
        out_shape=jax.ShapeDtypeStruct((npad, FCP), jnp.float32),
        grid_spec=pltpu.PrefetchScalarGridSpec(
            num_scalar_prefetch=0,
            grid=(ntiles,),
            in_specs=[
                pl.BlockSpec((1, H_PAD * b_tile, H_PAD), lambda i: (i, 0, 0)),  # input tile
                const3(t1), const2(b1row), const2(selw1), const2(selh1),
                const3(t2), const2(b2row), const2(selw2), const2(selh2),
                const3(w1h), const2(fb1row), const2(fw2p), const2(fb2row),
            ],
            out_specs=pl.BlockSpec((b_tile, FCP), lambda i: (i, 0)),
        ),
        compiler_params=pltpu.CompilerParams(
            dimension_semantics=("parallel",)),   # batch tiles shard across TCs on v7x
    )(xt, t1, b1row, selw1, selh1, t2, b2row, selw2, selh2,
      w1h, fb1row, fw2p, fb2row)

    return out[:n, :FC2]


# --------------------------------------------------------------------------- #
# Pure-JAX reference matching the PyTorch forward pass.
# --------------------------------------------------------------------------- #
def reference_forward(x, params):
    w1, b1, w2, b2, fw1, fb1, fw2, fb2 = params
    dn = ("NCHW", "OIHW", "NCHW")
    y = lax.conv_general_dilated(x, w1, (1, 1), ((PAD, PAD), (PAD, PAD)),
                                 dimension_numbers=dn)
    y = jnp.maximum(y + b1[None, :, None, None], 0.0)
    y = lax.reduce_window(y, -jnp.inf, lax.max, (1, 1, 2, 2), (1, 1, 2, 2), "VALID")
    y = lax.conv_general_dilated(y, w2, (1, 1), "VALID", dimension_numbers=dn)
    y = jnp.maximum(y + b2[None, :, None, None], 0.0)
    y = lax.reduce_window(y, -jnp.inf, lax.max, (1, 1, 2, 2), (1, 1, 2, 2), "VALID")
    y = y.reshape(y.shape[0], -1)
    y = jnp.maximum(y @ fw1.T + fb1, 0.0)
    y = jnp.maximum(y @ fw2.T + fb2, 0.0)
    return y


def init_params(key):
    """Deterministic synthetic parameters with PyTorch-default-like scales."""
    ks = jax.random.split(key, 8)

    def u(k, shape, fan_in):
        b = 1.0 / jnp.sqrt(jnp.float32(fan_in))
        return jax.random.uniform(k, shape, jnp.float32, -b, b)

    w1 = u(ks[0], (C1, 1, K, K), 1 * K * K)
    b1 = u(ks[1], (C1,), 1 * K * K)
    w2 = u(ks[2], (C2, C1, K, K), C1 * K * K)
    b2 = u(ks[3], (C2,), C1 * K * K)
    fw1 = u(ks[4], (FC1, FLAT), FLAT)
    fb1 = u(ks[5], (FC1,), FLAT)
    fw2 = u(ks[6], (FC2, FC1), FC1)
    fb2 = u(ks[7], (FC2,), FC1)
    return (w1, b1, w2, b2, fw1, fb1, fw2, fb2)


if __name__ == "__main__":
    key = jax.random.PRNGKey(0)
    k_x, k_p = jax.random.split(key)

    batch = 2
    x = jax.random.normal(k_x, (batch, 1, IN_H, IN_H), dtype=jnp.float32)
    params = init_params(k_p)

    out = jax.jit(feature_extractor_pallas)(x, params)
    out = jax.block_until_ready(out)

    ref = reference_forward(x, params)
    assert out.shape == (batch, FC2), out.shape
    err = float(jnp.max(jnp.abs(out - ref)))
    assert jnp.allclose(out, ref, rtol=2e-3, atol=2e-3), err
    print("KERNEL_OK")
</pallas_src>

<mosaic_0001>
module attributes {stable_mosaic.version = 11 : i64} {
  func.func @fused_feature_kernel(%arg0: i32, %arg1: memref<1x240x30xf32, #tpu.memory_space<vmem>>, %arg2: memref<3x30x168xf32, #tpu.memory_space<vmem>>, %arg3: memref<1x168xf32, #tpu.memory_space<vmem>>, %arg4: memref<162x84xf32, #tpu.memory_space<vmem>>, %arg5: memref<112x216xf32, #tpu.memory_space<vmem>>, %arg6: memref<3x84x192xf32, #tpu.memory_space<vmem>>, %arg7: memref<1x192xf32, #tpu.memory_space<vmem>>, %arg8: memref<176x96xf32, #tpu.memory_space<vmem>>, %arg9: memref<48x88xf32, #tpu.memory_space<vmem>>, %arg10: memref<6x96x128xf32, #tpu.memory_space<vmem>>, %arg11: memref<1x128xf32, #tpu.memory_space<vmem>>, %arg12: memref<128x128xf32, #tpu.memory_space<vmem>>, %arg13: memref<1x128xf32, #tpu.memory_space<vmem>>, %arg14: memref<8x128xf32, #tpu.memory_space<vmem>>) attributes {dimension_semantics = [#tpu.dimension_semantics<parallel>], iteration_bounds = array<i64: 1>, scalar_prefetch = 0 : i64, scratch_operands = 0 : i64, tpu.core_type = #tpu.core_type<tc>, window_params = [{transform_indices = @transform_0, window_bounds = array<i64: 1, 240, 30>}, {pipeline_mode = #tpu.pipeline_mode<synchronous>, transform_indices = @transform_1, window_bounds = array<i64: 3, 30, 168>}, {pipeline_mode = #tpu.pipeline_mode<synchronous>, transform_indices = @transform_2, window_bounds = array<i64: 1, 168>}, {pipeline_mode = #tpu.pipeline_mode<synchronous>, transform_indices = @transform_3, window_bounds = array<i64: 162, 84>}, {pipeline_mode = #tpu.pipeline_mode<synchronous>, transform_indices = @transform_4, window_bounds = array<i64: 112, 216>}, {pipeline_mode = #tpu.pipeline_mode<synchronous>, transform_indices = @transform_5, window_bounds = array<i64: 3, 84, 192>}, {pipeline_mode = #tpu.pipeline_mode<synchronous>, transform_indices = @transform_6, window_bounds = array<i64: 1, 192>}, {pipeline_mode = #tpu.pipeline_mode<synchronous>, transform_indices = @transform_7, window_bounds = array<i64: 176, 96>}, {pipeline_mode = #tpu.pipeline_mode<synchronous>, transform_indices = @transform_8, window_bounds = array<i64: 48, 88>}, {pipeline_mode = #tpu.pipeline_mode<synchronous>, transform_indices = @transform_9, window_bounds = array<i64: 6, 96, 128>}, {pipeline_mode = #tpu.pipeline_mode<synchronous>, transform_indices = @transform_10, window_bounds = array<i64: 1, 128>}, {pipeline_mode = #tpu.pipeline_mode<synchronous>, transform_indices = @transform_11, window_bounds = array<i64: 128, 128>}, {pipeline_mode = #tpu.pipeline_mode<synchronous>, transform_indices = @transform_12, window_bounds = array<i64: 1, 128>}, {transform_indices = @transform_13, window_bounds = array<i64: 8, 128>}]} {
    %c0 = arith.constant 0 : index
    %c0_0 = arith.constant 0 : index
    %c0_1 = arith.constant 0 : index
    %0 = vector.load %arg1[%c0, %c0_0, %c0_1] : memref<1x240x30xf32, #tpu.memory_space<vmem>>, vector<1x240x30xf32>
    %1 = vector.shape_cast %0 : vector<1x240x30xf32> to vector<240x30xf32>
    %2 = vector.extract_strided_slice %1 {offsets = [0, 0], sizes = [224, 30], strides = [1, 1]} : vector<240x30xf32> to vector<224x30xf32>
    %c0_2 = arith.constant 0 : index
    %c0_3 = arith.constant 0 : index
    %c0_4 = arith.constant 0 : index
    %3 = vector.load %arg2[%c0_2, %c0_3, %c0_4] : memref<3x30x168xf32, #tpu.memory_space<vmem>>, vector<1x30x168xf32>
    %4 = vector.shape_cast %3 : vector<1x30x168xf32> to vector<30x168xf32>
    %cst = arith.constant dense<0.000000e+00> : vector<224x168xf32>
    %5 = tpu.matmul %2, %4, %cst {dimension_numbers = #tpu.dot_dimension_numbers<[1], [0], [0], [1], [0, 0, 1, 1], [], []>} : vector<224x30xf32>, vector<30x168xf32>, vector<224x168xf32> -> vector<224x168xf32>
    %6 = vector.extract_strided_slice %1 {offsets = [8, 0], sizes = [224, 30], strides = [1, 1]} : vector<240x30xf32> to vector<224x30xf32>
    %c1 = arith.constant 1 : index
    %c0_5 = arith.constant 0 : index
    %c0_6 = arith.constant 0 : index
    %7 = vector.load %arg2[%c1, %c0_5, %c0_6] : memref<3x30x168xf32, #tpu.memory_space<vmem>>, vector<1x30x168xf32>
    %8 = vector.shape_cast %7 : vector<1x30x168xf32> to vector<30x168xf32>
    %cst_7 = arith.constant dense<0.000000e+00> : vector<224x168xf32>
    %9 = tpu.matmul %6, %8, %cst_7 {dimension_numbers = #tpu.dot_dimension_numbers<[1], [0], [0], [1], [0, 0, 1, 1], [], []>} : vector<224x30xf32>, vector<30x168xf32>, vector<224x168xf32> -> vector<224x168xf32>
    %10 = arith.addf %5, %9 : vector<224x168xf32>
    %11 = vector.extract_strided_slice %1 {offsets = [16, 0], sizes = [224, 30], strides = [1, 1]} : vector<240x30xf32> to vector<224x30xf32>
    %c2 = arith.constant 2 : index
    %c0_8 = arith.constant 0 : index
    %c0_9 = arith.constant 0 : index
    %12 = vector.load %arg2[%c2, %c0_8, %c0_9] : memref<3x30x168xf32, #tpu.memory_space<vmem>>, vector<1x30x168xf32>
    %13 = vector.shape_cast %12 : vector<1x30x168xf32> to vector<30x168xf32>
    %cst_10 = arith.constant dense<0.000000e+00> : vector<224x168xf32>
    %14 = tpu.matmul %11, %13, %cst_10 {dimension_numbers = #tpu.dot_dimension_numbers<[1], [0], [0], [1], [0, 0, 1, 1], [], []>} : vector<224x30xf32>, vector<30x168xf32>, vector<224x168xf32> -> vector<224x168xf32>
    %15 = arith.addf %10, %14 : vector<224x168xf32>
    %c0_11 = arith.constant 0 : index
    %c0_12 = arith.constant 0 : index
    %16 = vector.load %arg3[%c0_11, %c0_12] : memref<1x168xf32, #tpu.memory_space<vmem>>, vector<1x168xf32>
    %17 = vector.broadcast %16 : vector<1x168xf32> to vector<224x168xf32>
    %18 = arith.addf %15, %17 : vector<224x168xf32>
    %cst_13 = arith.constant 0.000000e+00 : f32
    %19 = vector.broadcast %cst_13 : f32 to vector<224x168xf32>
    %20 = arith.maximumf %18, %19 : vector<224x168xf32>
    %21 = vector.extract_strided_slice %20 {offsets = [0, 0], sizes = [224, 162], strides = [1, 1]} : vector<224x168xf32> to vector<224x162xf32>
    %22 = vector.extract_strided_slice %20 {offsets = [0, 6], sizes = [224, 162], strides = [1, 1]} : vector<224x168xf32> to vector<224x162xf32>
    %23 = arith.maximumf %21, %22 : vector<224x162xf32>
    %c0_14 = arith.constant 0 : index
    %c0_15 = arith.constant 0 : index
    %24 = vector.load %arg4[%c0_14, %c0_15] : memref<162x84xf32, #tpu.memory_space<vmem>>, vector<162x84xf32>
    %cst_16 = arith.constant dense<0.000000e+00> : vector<224x84xf32>
    %25 = tpu.matmul %23, %24, %cst_16 {dimension_numbers = #tpu.dot_dimension_numbers<[1], [0], [0], [1], [0, 0, 1, 1], [], []>} : vector<224x162xf32>, vector<162x84xf32>, vector<224x84xf32> -> vector<224x84xf32>
    %26 = vector.extract_strided_slice %25 {offsets = [0, 0], sizes = [216, 84], strides = [1, 1]} : vector<224x84xf32> to vector<216x84xf32>
    %27 = vector.extract_strided_slice %25 {offsets = [8, 0], sizes = [216, 84], strides = [1, 1]} : vector<224x84xf32> to vector<216x84xf32>
    %28 = arith.maximumf %26, %27 : vector<216x84xf32>
    %c0_17 = arith.constant 0 : index
    %c0_18 = arith.constant 0 : index
    %29 = vector.load %arg5[%c0_17, %c0_18] : memref<112x216xf32, #tpu.memory_space<vmem>>, vector<112x216xf32>
    %cst_19 = arith.constant dense<0.000000e+00> : vector<112x84xf32>
    %30 = tpu.matmul %29, %28, %cst_19 {dimension_numbers = #tpu.dot_dimension_numbers<[1], [0], [0], [1], [0, 0, 1, 1], [], []>} : vector<112x216xf32>, vector<216x84xf32>, vector<112x84xf32> -> vector<112x84xf32>
    %31 = vector.extract_strided_slice %30 {offsets = [0, 0], sizes = [96, 84], strides = [1, 1]} : vector<112x84xf32> to vector<96x84xf32>
    %c0_20 = arith.constant 0 : index
    %c0_21 = arith.constant 0 : index
    %c0_22 = arith.constant 0 : index
    %32 = vector.load %arg6[%c0_20, %c0_21, %c0_22] : memref<3x84x192xf32, #tpu.memory_space<vmem>>, vector<1x84x192xf32>
    %33 = vector.shape_cast %32 : vector<1x84x192xf32> to vector<84x192xf32>
    %cst_23 = arith.constant dense<0.000000e+00> : vector<96x192xf32>
    %34 = tpu.matmul %31, %33, %cst_23 {dimension_numbers = #tpu.dot_dimension_numbers<[1], [0], [0], [1], [0, 0, 1, 1], [], []>} : vector<96x84xf32>, vector<84x192xf32>, vector<96x192xf32> -> vector<96x192xf32>
    %35 = vector.extract_strided_slice %30 {offsets = [8, 0], sizes = [96, 84], strides = [1, 1]} : vector<112x84xf32> to vector<96x84xf32>
    %c1_24 = arith.constant 1 : index
    %c0_25 = arith.constant 0 : index
    %c0_26 = arith.constant 0 : index
    %36 = vector.load %arg6[%c1_24, %c0_25, %c0_26] : memref<3x84x192xf32, #tpu.memory_space<vmem>>, vector<1x84x192xf32>
    %37 = vector.shape_cast %36 : vector<1x84x192xf32> to vector<84x192xf32>
    %cst_27 = arith.constant dense<0.000000e+00> : vector<96x192xf32>
    %38 = tpu.matmul %35, %37, %cst_27 {dimension_numbers = #tpu.dot_dimension_numbers<[1], [0], [0], [1], [0, 0, 1, 1], [], []>} : vector<96x84xf32>, vector<84x192xf32>, vector<96x192xf32> -> vector<96x192xf32>
    %39 = arith.addf %34, %38 : vector<96x192xf32>
    %40 = vector.extract_strided_slice %30 {offsets = [16, 0], sizes = [96, 84], strides = [1, 1]} : vector<112x84xf32> to vector<96x84xf32>
    %c2_28 = arith.constant 2 : index
    %c0_29 = arith.constant 0 : index
    %c0_30 = arith.constant 0 : index
    %41 = vector.load %arg6[%c2_28, %c0_29, %c0_30] : memref<3x84x192xf32, #tpu.memory_space<vmem>>, vector<1x84x192xf32>
    %42 = vector.shape_cast %41 : vector<1x84x192xf32> to vector<84x192xf32>
    %cst_31 = arith.constant dense<0.000000e+00> : vector<96x192xf32>
    %43 = tpu.matmul %40, %42, %cst_31 {dimension_numbers = #tpu.dot_dimension_numbers<[1], [0], [0], [1], [0, 0, 1, 1], [], []>} : vector<96x84xf32>, vector<84x192xf32>, vector<96x192xf32> -> vector<96x192xf32>
    %44 = arith.addf %39, %43 : vector<96x192xf32>
    %c0_32 = arith.constant 0 : index
    %c0_33 = arith.constant 0 : index
    %45 = vector.load %arg7[%c0_32, %c0_33] : memref<1x192xf32, #tpu.memory_space<vmem>>, vector<1x192xf32>
    %46 = vector.broadcast %45 : vector<1x192xf32> to vector<96x192xf32>
    %47 = arith.addf %44, %46 : vector<96x192xf32>
    %cst_34 = arith.constant 0.000000e+00 : f32
    %48 = vector.broadcast %cst_34 : f32 to vector<96x192xf32>
    %49 = arith.maximumf %47, %48 : vector<96x192xf32>
    %50 = vector.extract_strided_slice %49 {offsets = [0, 0], sizes = [96, 176], strides = [1, 1]} : vector<96x192xf32> to vector<96x176xf32>
    %51 = vector.extract_strided_slice %49 {offsets = [0, 16], sizes = [96, 176], strides = [1, 1]} : vector<96x192xf32> to vector<96x176xf32>
    %52 = arith.maximumf %50, %51 : vector<96x176xf32>
    %c0_35 = arith.constant 0 : index
    %c0_36 = arith.constant 0 : index
    %53 = vector.load %arg8[%c0_35, %c0_36] : memref<176x96xf32, #tpu.memory_space<vmem>>, vector<176x96xf32>
    %cst_37 = arith.constant dense<0.000000e+00> : vector<96x96xf32>
    %54 = tpu.matmul %52, %53, %cst_37 {dimension_numbers = #tpu.dot_dimension_numbers<[1], [0], [0], [1], [0, 0, 1, 1], [], []>} : vector<96x176xf32>, vector<176x96xf32>, vector<96x96xf32> -> vector<96x96xf32>
    %55 = vector.extract_strided_slice %54 {offsets = [0, 0], sizes = [88, 96], strides = [1, 1]} : vector<96x96xf32> to vector<88x96xf32>
    %56 = vector.extract_strided_slice %54 {offsets = [8, 0], sizes = [88, 96], strides = [1, 1]} : vector<96x96xf32> to vector<88x96xf32>
    %57 = arith.maximumf %55, %56 : vector<88x96xf32>
    %c0_38 = arith.constant 0 : index
    %c0_39 = arith.constant 0 : index
    %58 = vector.load %arg9[%c0_38, %c0_39] : memref<48x88xf32, #tpu.memory_space<vmem>>, vector<48x88xf32>
    %cst_40 = arith.constant dense<0.000000e+00> : vector<48x96xf32>
    %59 = tpu.matmul %58, %57, %cst_40 {dimension_numbers = #tpu.dot_dimension_numbers<[1], [0], [0], [1], [0, 0, 1, 1], [], []>} : vector<48x88xf32>, vector<88x96xf32>, vector<48x96xf32> -> vector<48x96xf32>
    %60 = vector.extract_strided_slice %59 {offsets = [0, 0], sizes = [8, 96], strides = [1, 1]} : vector<48x96xf32> to vector<8x96xf32>
    %c0_41 = arith.constant 0 : index
    %c0_42 = arith.constant 0 : index
    %c0_43 = arith.constant 0 : index
    %61 = vector.load %arg10[%c0_41, %c0_42, %c0_43] : memref<6x96x128xf32, #tpu.memory_space<vmem>>, vector<1x96x128xf32>
    %62 = vector.shape_cast %61 : vector<1x96x128xf32> to vector<96x128xf32>
    %cst_44 = arith.constant dense<0.000000e+00> : vector<8x128xf32>
    %63 = tpu.matmul %60, %62, %cst_44 {dimension_numbers = #tpu.dot_dimension_numbers<[1], [0], [0], [1], [0, 0, 1, 1], [], []>} : vector<8x96xf32>, vector<96x128xf32>, vector<8x128xf32> -> vector<8x128xf32>
    %64 = vector.extract_strided_slice %59 {offsets = [8, 0], sizes = [8, 96], strides = [1, 1]} : vector<48x96xf32> to vector<8x96xf32>
    %c1_45 = arith.constant 1 : index
    %c0_46 = arith.constant 0 : index
    %c0_47 = arith.constant 0 : index
    %65 = vector.load %arg10[%c1_45, %c0_46, %c0_47] : memref<6x96x128xf32, #tpu.memory_space<vmem>>, vector<1x96x128xf32>
    %66 = vector.shape_cast %65 : vector<1x96x128xf32> to vector<96x128xf32>
    %cst_48 = arith.constant dense<0.000000e+00> : vector<8x128xf32>
    %67 = tpu.matmul %64, %66, %cst_48 {dimension_numbers = #tpu.dot_dimension_numbers<[1], [0], [0], [1], [0, 0, 1, 1], [], []>} : vector<8x96xf32>, vector<96x128xf32>, vector<8x128xf32> -> vector<8x128xf32>
    %68 = arith.addf %63, %67 : vector<8x128xf32>
    %69 = vector.extract_strided_slice %59 {offsets = [16, 0], sizes = [8, 96], strides = [1, 1]} : vector<48x96xf32> to vector<8x96xf32>
    %c2_49 = arith.constant 2 : index
    %c0_50 = arith.constant 0 : index
    %c0_51 = arith.constant 0 : index
    %70 = vector.load %arg10[%c2_49, %c0_50, %c0_51] : memref<6x96x128xf32, #tpu.memory_space<vmem>>, vector<1x96x128xf32>
    %71 = vector.shape_cast %70 : vector<1x96x128xf32> to vector<96x128xf32>
    %cst_52 = arith.constant dense<0.000000e+00> : vector<8x128xf32>
    %72 = tpu.matmul %69, %71, %cst_52 {dimension_numbers = #tpu.dot_dimension_numbers<[1], [0], [0], [1], [0, 0, 1, 1], [], []>} : vector<8x96xf32>, vector<96x128xf32>, vector<8x128xf32> -> vector<8x128xf32>
    %73 = arith.addf %68, %72 : vector<8x128xf32>
    %74 = vector.extract_strided_slice %59 {offsets = [24, 0], sizes = [8, 96], strides = [1, 1]} : vector<48x96xf32> to vector<8x96xf32>
    %c3 = arith.constant 3 : index
    %c0_53 = arith.constant 0 : index
    %c0_54 = arith.constant 0 : index
    %75 = vector.load %arg10[%c3, %c0_53, %c0_54] : memref<6x96x128xf32, #tpu.memory_space<vmem>>, vector<1x96x128xf32>
    %76 = vector.shape_cast %75 : vector<1x96x128xf32> to vector<96x128xf32>
    %cst_55 = arith.constant dense<0.000000e+00> : vector<8x128xf32>
    %77 = tpu.matmul %74, %76, %cst_55 {dimension_numbers = #tpu.dot_dimension_numbers<[1], [0], [0], [1], [0, 0, 1, 1], [], []>} : vector<8x96xf32>, vector<96x128xf32>, vector<8x128xf32> -> vector<8x128xf32>
    %78 = arith.addf %73, %77 : vector<8x128xf32>
    %79 = vector.extract_strided_slice %59 {offsets = [32, 0], sizes = [8, 96], strides = [1, 1]} : vector<48x96xf32> to vector<8x96xf32>
    %c4 = arith.constant 4 : index
    %c0_56 = arith.constant 0 : index
    %c0_57 = arith.constant 0 : index
    %80 = vector.load %arg10[%c4, %c0_56, %c0_57] : memref<6x96x128xf32, #tpu.memory_space<vmem>>, vector<1x96x128xf32>
    %81 = vector.shape_cast %80 : vector<1x96x128xf32> to vector<96x128xf32>
    %cst_58 = arith.constant dense<0.000000e+00> : vector<8x128xf32>
    %82 = tpu.matmul %79, %81, %cst_58 {dimension_numbers = #tpu.dot_dimension_numbers<[1], [0], [0], [1], [0, 0, 1, 1], [], []>} : vector<8x96xf32>, vector<96x128xf32>, vector<8x128xf32> -> vector<8x128xf32>
    %83 = arith.addf %78, %82 : vector<8x128xf32>
    %84 = vector.extract_strided_slice %59 {offsets = [40, 0], sizes = [8, 96], strides = [1, 1]} : vector<48x96xf32> to vector<8x96xf32>
    %c5 = arith.constant 5 : index
    %c0_59 = arith.constant 0 : index
    %c0_60 = arith.constant 0 : index
    %85 = vector.load %arg10[%c5, %c0_59, %c0_60] : memref<6x96x128xf32, #tpu.memory_space<vmem>>, vector<1x96x128xf32>
    %86 = vector.shape_cast %85 : vector<1x96x128xf32> to vector<96x128xf32>
    %cst_61 = arith.constant dense<0.000000e+00> : vector<8x128xf32>
    %87 = tpu.matmul %84, %86, %cst_61 {dimension_numbers = #tpu.dot_dimension_numbers<[1], [0], [0], [1], [0, 0, 1, 1], [], []>} : vector<8x96xf32>, vector<96x128xf32>, vector<8x128xf32> -> vector<8x128xf32>
    %88 = arith.addf %83, %87 : vector<8x128xf32>
    %c0_62 = arith.constant 0 : index
    %c0_63 = arith.constant 0 : index
    %89 = vector.load %arg11[%c0_62, %c0_63] : memref<1x128xf32, #tpu.memory_space<vmem>>, vector<1x128xf32>
    %90 = vector.broadcast %89 : vector<1x128xf32> to vector<8x128xf32>
    %91 = arith.addf %88, %90 : vector<8x128xf32>
    %cst_64 = arith.constant 0.000000e+00 : f32
    %92 = vector.broadcast %cst_64 : f32 to vector<8x128xf32>
    %93 = arith.maximumf %91, %92 : vector<8x128xf32>
    %c0_65 = arith.constant 0 : index
    %c0_66 = arith.constant 0 : index
    %94 = vector.load %arg12[%c0_65, %c0_66] : memref<128x128xf32, #tpu.memory_space<vmem>>, vector<128x128xf32>
    %cst_67 = arith.constant dense<0.000000e+00> : vector<8x128xf32>
    %95 = tpu.matmul %93, %94, %cst_67 {dimension_numbers = #tpu.dot_dimension_numbers<[1], [0], [0], [1], [0, 0, 1, 1], [], []>} : vector<8x128xf32>, vector<128x128xf32>, vector<8x128xf32> -> vector<8x128xf32>
    %c0_68 = arith.constant 0 : index
    %c0_69 = arith.constant 0 : index
    %96 = vector.load %arg13[%c0_68, %c0_69] : memref<1x128xf32, #tpu.memory_space<vmem>>, vector<1x128xf32>
    %97 = vector.broadcast %96 : vector<1x128xf32> to vector<8x128xf32>
    %98 = arith.addf %95, %97 : vector<8x128xf32>
    %cst_70 = arith.constant 0.000000e+00 : f32
    %99 = vector.broadcast %cst_70 : f32 to vector<8x128xf32>
    %100 = arith.maximumf %98, %99 : vector<8x128xf32>
    %c0_71 = arith.constant 0 : index
    %c0_72 = arith.constant 0 : index
    %101 = vector.load %arg14[%c0_71, %c0_72] : memref<8x128xf32, #tpu.memory_space<vmem>>, vector<8x128xf32>
    tpu.vector_store %arg14[%c0_71, %c0_72], %100 {strides = array<i32>} : memref<8x128xf32, #tpu.memory_space<vmem>>, vector<8x128xf32>,
    return
  }
  func.func @transform_0(%arg0: i32) -> (i32, i32, i32) {
    %c0_i32 = arith.constant 0 : i32
    %c0_i32_0 = arith.constant 0 : i32
    %c0_i32_1 = arith.constant 0 : i32
    return %arg0, %c0_i32, %c0_i32_0 : i32, i32, i32
  }
  func.func @transform_1(%arg0: i32) -> (i32, i32, i32) {
    %c0_i32 = arith.constant 0 : i32
    %c0_i32_0 = arith.constant 0 : i32
    %c0_i32_1 = arith.constant 0 : i32
    %c0_i32_2 = arith.constant 0 : i32
    return %c0_i32, %c0_i32_0, %c0_i32_1 : i32, i32, i32
  }
  func.func @transform_2(%arg0: i32) -> (i32, i32) {
    %c0_i32 = arith.constant 0 : i32
    %c0_i32_0 = arith.constant 0 : i32
    %c0_i32_1 = arith.constant 0 : i32
    return %c0_i32, %c0_i32_0 : i32, i32
  }
  func.func @transform_3(%arg0: i32) -> (i32, i32) {
    %c0_i32 = arith.constant 0 : i32
    %c0_i32_0 = arith.constant 0 : i32
    %c0_i32_1 = arith.constant 0 : i32
    return %c0_i32, %c0_i32_0 : i32, i32
  }
  func.func @transform_4(%arg0: i32) -> (i32, i32) {
    %c0_i32 = arith.constant 0 : i32
    %c0_i32_0 = arith.constant 0 : i32
    %c0_i32_1 = arith.constant 0 : i32
    return %c0_i32, %c0_i32_0 : i32, i32
  }
  func.func @transform_5(%arg0: i32) -> (i32, i32, i32) {
    %c0_i32 = arith.constant 0 : i32
    %c0_i32_0 = arith.constant 0 : i32
    %c0_i32_1 = arith.constant 0 : i32
    %c0_i32_2 = arith.constant 0 : i32
    return %c0_i32, %c0_i32_0, %c0_i32_1 : i32, i32, i32
  }
  func.func @transform_6(%arg0: i32) -> (i32, i32) {
    %c0_i32 = arith.constant 0 : i32
    %c0_i32_0 = arith.constant 0 : i32
    %c0_i32_1 = arith.constant 0 : i32
    return %c0_i32, %c0_i32_0 : i32, i32
  }
  func.func @transform_7(%arg0: i32) -> (i32, i32) {
    %c0_i32 = arith.constant 0 : i32
    %c0_i32_0 = arith.constant 0 : i32
    %c0_i32_1 = arith.constant 0 : i32
    return %c0_i32, %c0_i32_0 : i32, i32
  }
  func.func @transform_8(%arg0: i32) -> (i32, i32) {
    %c0_i32 = arith.constant 0 : i32
    %c0_i32_0 = arith.constant 0 : i32
    %c0_i32_1 = arith.constant 0 : i32
    return %c0_i32, %c0_i32_0 : i32, i32
  }
  func.func @transform_9(%arg0: i32) -> (i32, i32, i32) {
    %c0_i32 = arith.constant 0 : i32
    %c0_i32_0 = arith.constant 0 : i32
    %c0_i32_1 = arith.constant 0 : i32
    %c0_i32_2 = arith.constant 0 : i32
    return %c0_i32, %c0_i32_0, %c0_i32_1 : i32, i32, i32
  }
  func.func @transform_10(%arg0: i32) -> (i32, i32) {
    %c0_i32 = arith.constant 0 : i32
    %c0_i32_0 = arith.constant 0 : i32
    %c0_i32_1 = arith.constant 0 : i32
    return %c0_i32, %c0_i32_0 : i32, i32
  }
  func.func @transform_11(%arg0: i32) -> (i32, i32) {
    %c0_i32 = arith.constant 0 : i32
    %c0_i32_0 = arith.constant 0 : i32
    %c0_i32_1 = arith.constant 0 : i32
    return %c0_i32, %c0_i32_0 : i32, i32
  }
  func.func @transform_12(%arg0: i32) -> (i32, i32) {
    %c0_i32 = arith.constant 0 : i32
    %c0_i32_0 = arith.constant 0 : i32
    %c0_i32_1 = arith.constant 0 : i32
    return %c0_i32, %c0_i32_0 : i32, i32
  }
  func.func @transform_13(%arg0: i32) -> (i32, i32) {
    %c0_i32 = arith.constant 0 : i32
    %c0_i32_0 = arith.constant 0 : i32
    return %arg0, %c0_i32 : i32, i32
  }
}

</mosaic_0001>

<llo_original>
// kernel: tile.18
$region0: #{tile.18}
  #allocation0 [shape = 's32[1]{0}', space=sflag, size = 0x4, scoped, tag = 'scoped memory for tile.18']
  %s0 = inlined_call_operand.vmem [shape: f32[16], index: 0, kind: input, shape index: {}]
  %s1 = inlined_call_operand.vmem [shape: f32[12,16], index: 1, kind: output, shape index: {}]
  // Predicated region
  $region2: #{tile.18} parent=0 // pred_check
    _
  $region3: #{tile.18} parent=0 // pred_check_branch
    %3 = sbr.rel (0) target = $region5
  $region4: #{tile.18} parent=0 // pred_region
    _
  $region5: #{tile.18} parent=0 // pred_fallthru
    _
  %v4 = vld [vmem:[%s0] ss:$0 sm:$0xff]
  %5 = vst [vmem:[%s1] sm:$0xff] %v4
  %s6 = scalar_lea.vmem %s1, 8
  %7 = vst [vmem:[%s6] sm:$0xff] %v4

// kernel: tile.14
$region0: #{tile.14}
  %s0 = inlined_call_operand.vmem [shape: f32[28,6], index: 0, kind: input, shape index: {}]
  %s1 = inlined_call_operand.vmem [shape: f32[1,168], index: 1, kind: output, shape index: {}]
  $region1: #{tile.14} parent=0
    #allocation0 [shape = 'u8[8192]{0}', space=vmem, size = 0x2000, scoped, tag = 'scoped mem for output reshape']
    %v2 = vld [vmem:[%s0] sm:$0x1]
    %vm3 = vcmask 48128
    %4 = vst.msk [vmem:[#allocation0] sm:$0x1] %vm3, %v2
    %s5 = scalar_lea.vmem %s0, 21
    %v6 = vld [vmem:[%s5] sm:$0x1]
    %s7 = scalar_lea.vmem %s0, 21
    %v8 = vld [vmem:[%s7] sm:$0x1]
    %vm9 = vcmask 15360
    %v10 = vsel %vm9, %v8, %v6
    %11 = vrot.lane.b32.xlu0 %v10, 126
    %v12 = vpop.permute.xlu0 %11
    %vm13 = vcmask 31744
    %s14 = scalar_lea.vmem [#allocation0], 8
    %15 = vst.msk [vmem:[%s14] sm:$0x1] %vm13, %v12
    %vm16 = vcmask 1048560
    %17 = vst.msk [vmem:[#allocation0] sm:$0x1] %vm16, %v12
    %s18 = scalar_lea.vmem %s0, 20
    %v19 = vld [vmem:[%s18] sm:$0x1]
    %20 = vrot.lane.b32.xlu0 %v19, 120
    %v21 = vpop.permute.xlu0 %20
    %vm22 = vcmask 1032128
    %23 = vst.msk [vmem:[#allocation0] sm:$0x1] %vm22, %v21
    %s24 = scalar_lea.vmem %s0, 19
    %v25 = vld [vmem:[%s24] sm:$0x1]
    %26 = vrot.lane.b32.xlu0 %v25, 114
    %v27 = vpop.permute.xlu0 %26
    %vm28 = vcmask 982928
    %29 = vst.msk [vmem:[#allocation0] sm:$0x1] %vm28, %v27
    %s30 = scalar_lea.vmem %s0, 18
    %v31 = vld [vmem:[%s30] sm:$0x1]
    %32 = vrot.lane.b32.xlu0 %v31, 108
    %v33 = vpop.permute.xlu0 %32
    %vm34 = vcmask 933728
    %35 = vst.msk [vmem:[#allocation0] sm:$0x1] %vm34, %v33
    %s36 = scalar_lea.vmem %s0, 17
    %v37 = vld [vmem:[%s36] sm:$0x1]
    %38 = vrot.lane.b32.xlu0 %v37, 102
    %v39 = vpop.permute.xlu0 %38
    %vm40 = vcmask 884528
    %41 = vst.msk [vmem:[#allocation0] sm:$0x1] %vm40, %v39
    %s42 = scalar_lea.vmem %s0, 16
    %v43 = vld [vmem:[%s42] sm:$0x1]
    %44 = vrot.lane.b32.xlu0 %v43, 96
    %v45 = vpop.permute.xlu0 %44
    %vm46 = vcmask 835328
    %47 = vst.msk [vmem:[#allocation0] sm:$0x1] %vm46, %v45
    %s48 = scalar_lea.vmem %s0, 15
    %v49 = vld [vmem:[%s48] sm:$0x1]
    %50 = vrot.lane.b32.xlu0 %v49, 90
    %v51 = vpop.permute.xlu0 %50
    %vm52 = vcmask 786128
    %53 = vst.msk [vmem:[#allocation0] sm:$0x1] %vm52, %v51
    %s54 = scalar_lea.vmem %s0, 14
    %v55 = vld [vmem:[%s54] sm:$0x1]
    %56 = vrot.lane.b32.xlu0 %v55, 84
    %v57 = vpop.permute.xlu0 %56
    %vm58 = vcmask 736928
    %59 = vst.msk [vmem:[#allocation0] sm:$0x1] %vm58, %v57
    %s60 = scalar_lea.vmem %s0, 13
    %v61 = vld [vmem:[%s60] sm:$0x1]
    %62 = vrot.lane.b32.xlu0 %v61, 78
    %v63 = vpop.permute.xlu0 %62
    %vm64 = vcmask 687728
    %65 = vst.msk [vmem:[#allocation0] sm:$0x1] %vm64, %v63
    %s66 = scalar_lea.vmem %s0, 12
    %v67 = vld [vmem:[%s66] sm:$0x1]
    %68 = vrot.lane.b32.xlu0 %v67, 72
    %v69 = vpop.permute.xlu0 %68
    %vm70 = vcmask 638528
    %71 = vst.msk [vmem:[#allocation0] sm:$0x1] %vm70, %v69
    %s72 = scalar_lea.vmem %s0, 11
    %v73 = vld [vmem:[%s72] sm:$0x1]
    %74 = vrot.lane.b32.xlu0 %v73, 66
    %v75 = vpop.permute.xlu0 %74
    %vm76 = vcmask 589328
    %77 = vst.msk [vmem:[#allocation0] sm:$0x1] %vm76, %v75
    %s78 = scalar_lea.vmem %s0, 10
    %v79 = vld [vmem:[%s78] sm:$0x1]
    %80 = vrot.lane.b32.xlu0 %v79, 60
    %v81 = vpop.permute.xlu0 %80
    %vm82 = vcmask 540128
    %83 = vst.msk [vmem:[#allocation0] sm:$0x1] %vm82, %v81
    %s84 = scalar_lea.vmem %s0, 9
    %v85 = vld [vmem:[%s84] sm:$0x1]
    %86 = vrot.lane.b32.xlu0 %v85, 54
    %v87 = vpop.permute.xlu0 %86
    %vm88 = vcmask 490928
    %89 = vst.msk [vmem:[#allocation0] sm:$0x1] %vm88, %v87
    %s90 = scalar_lea.vmem %s0, 8
    %v91 = vld [vmem:[%s90] sm:$0x1]
    %92 = vrot.lane.b32.xlu0 %v91, 48
    %v93 = vpop.permute.xlu0 %92
    %vm94 = vcmask 441728
    %95 = vst.msk [vmem:[#allocation0] sm:$0x1] %vm94, %v93
    %s96 = scalar_lea.vmem %s0, 7
    %v97 = vld [vmem:[%s96] sm:$0x1]
    %98 = vrot.lane.b32.xlu0 %v97, 42
    %v99 = vpop.permute.xlu0 %98
    %vm100 = vcmask 392528
    %101 = vst.msk [vmem:[#allocation0] sm:$0x1] %vm100, %v99
    %s102 = scalar_lea.vmem %s0, 6
    %v103 = vld [vmem:[%s102] sm:$0x1]
    %104 = vrot.lane.b32.xlu0 %v103, 36
    %v105 = vpop.permute.xlu0 %104
    %vm106 = vcmask 343328
    %107 = vst.msk [vmem:[#allocation0] sm:$0x1] %vm106, %v105
    %s108 = scalar_lea.vmem %s0, 27
    %v109 = vld [vmem:[%s108] sm:$0x1]
    %110 = vrot.lane.b32.xlu0 %v109, 34
    %v111 = vpop.permute.xlu0 %110
    %vm112 = vcmask 326928
    %s113 = scalar_lea.vmem [#allocation0], 8
    %114 = vst.msk [vmem:[%s113] sm:$0x1] %vm112, %v111
    %s115 = scalar_lea.vmem %s0, 5
    %v116 = vld [vmem:[%s115] sm:$0x1]
    %117 = vrot.lane.b32.xlu0 %v116, 30
    %v118 = vpop.permute.xlu0 %117
    %vm119 = vcmask 294128
    %120 = vst.msk [vmem:[#allocation0] sm:$0x1] %vm119, %v118
    %s121 = scalar_lea.vmem %s0, 26
    %v122 = vld [vmem:[%s121] sm:$0x1]
    %123 = vrot.lane.b32.xlu0 %v122, 28
    %v124 = vpop.permute.xlu0 %123
    %vm125 = vcmask 277728
    %s126 = scalar_lea.vmem [#allocation0], 8
    %127 = vst.msk [vmem:[%s126] sm:$0x1] %vm125, %v124
    %s128 = scalar_lea.vmem %s0, 4
    %v129 = vld [vmem:[%s128] sm:$0x1]
    %130 = vrot.lane.b32.xlu0 %v129, 24
    %v131 = vpop.permute.xlu0 %130
    %vm132 = vcmask 244928
    %133 = vst.msk [vmem:[#allocation0] sm:$0x1] %vm132, %v131
    %s134 = scalar_lea.vmem %s0, 25
    %v135 = vld [vmem:[%s134] sm:$0x1]
    %136 = vrot.lane.b32.xlu0 %v135, 22
    %v137 = vpop.permute.xlu0 %136
    %vm138 = vcmask 228528
    %s139 = scalar_lea.vmem [#allocation0], 8
    %140 = vst.msk [vmem:[%s139] sm:$0x1] %vm138, %v137
    %s141 = scalar_lea.vmem %s0, 3
    %v142 = vld [vmem:[%s141] sm:$0x1]
    %143 = vrot.lane.b32.xlu0 %v142, 18
    %v144 = vpop.permute.xlu0 %143
    %vm145 = vcmask 195728
    %146 = vst.msk [vmem:[#allocation0] sm:$0x1] %vm145, %v144
    %s147 = scalar_lea.vmem %s0, 24
    %v148 = vld [vmem:[%s147] sm:$0x1]
    %149 = vrot.lane.b32.xlu0 %v148, 16
    %v150 = vpop.permute.xlu0 %149
    %vm151 = vcmask 179328
    %s152 = scalar_lea.vmem [#allocation0], 8
    %153 = vst.msk [vmem:[%s152] sm:$0x1] %vm151, %v150
    %s154 = scalar_lea.vmem %s0, 2
    %v155 = vld [vmem:[%s154] sm:$0x1]
    %156 = vrot.lane.b32.xlu0 %v155, 12
    %v157 = vpop.permute.xlu0 %156
    %vm158 = vcmask 146528
    %159 = vst.msk [vmem:[#allocation0] sm:$0x1] %vm158, %v157
    %s160 = scalar_lea.vmem %s0, 23
    %v161 = vld [vmem:[%s160] sm:$0x1]
    %162 = vrot.lane.b32.xlu0 %v161, 10
    %v163 = vpop.permute.xlu0 %162
    %vm164 = vcmask 130128
    %s165 = scalar_lea.vmem [#allocation0], 8
    %166 = vst.msk [vmem:[%s165] sm:$0x1] %vm164, %v163
    %s167 = scalar_lea.vmem %s0, 1
    %v168 = vld [vmem:[%s167] sm:$0x1]
    %169 = vrot.lane.b32.xlu0 %v168, 6
    %v170 = vpop.permute.xlu0 %169
    %vm171 = vcmask 97328
    %172 = vst.msk [vmem:[#allocation0] sm:$0x1] %vm171, %v170
    %s173 = scalar_lea.vmem %s0, 22
    %v174 = vld [vmem:[%s173] sm:$0x1]
    %175 = vrot.lane.b32.xlu0 %v174, 4
    %v176 = vpop.permute.xlu0 %175
    %vm177 = vcmask 80928
    %s178 = scalar_lea.vmem [#allocation0], 8
    %179 = vst.msk [vmem:[%s178] sm:$0x1] %vm177, %v176
    %s181 = sshllo.u32 0, 1
    %v183 = vld [vmem:[#allocation0] sm:%s181]
    %s184 = sshllo.u32 0, 1
    %185 = vst [vmem:[%s1] sm:%s184] %v183
    %s186 = scalar_lea.vmem [#allocation0], 8
    %v187 = vld [vmem:[%s186] sm:%s181]
    %s188 = sshllo.u32 0, 1
    %s189 = scalar_lea.vmem %s1, 1
    %190 = vst [vmem:[%s189] sm:%s188] %v187

// kernel: tile.19
$region0: #{tile.19}
  %s0 = inlined_call_operand.vmem [shape: f32[12,16], index: 0, kind: input, shape index: {}]
  %s1 = inlined_call_operand.vmem [shape: f32[1,192], index: 1, kind: output, shape index: {}]
  $region1: #{tile.19} parent=0
    #allocation0 [shape = 'u8[8192]{0}', space=vmem, size = 0x2000, scoped, tag = 'scoped mem for output reshape']
    %s2 = smov 3
    %v3 = vld [vmem:[%s0] ss:$8 sm:%s2]
    %vm4 = vcmask 130048
    %5 = vst.msk [vmem:[#allocation0] ss:$8 sm:$0x3] %vm4, %v3
    %s6 = scalar_lea.vmem %s0, 7
    %v7 = vld [vmem:[%s6] sm:$0x1]
    %8 = vrot.lane.b32.xlu0 %v7, 112
    %v9 = vpop.permute.xlu0 %8
    %vm10 = vcmask 1048448
    %11 = vst.msk [vmem:[#allocation0] sm:$0x1] %vm10, %v9
    %s12 = scalar_lea.vmem %s0, 6
    %v13 = vld [vmem:[%s12] sm:$0x1]
    %14 = vrot.lane.b32.xlu0 %v13, 96
    %v15 = vpop.permute.xlu0 %14
    %vm16 = vcmask 917248
    %17 = vst.msk [vmem:[#allocation0] sm:$0x1] %vm16, %v15
    %s18 = scalar_lea.vmem %s0, 5
    %v19 = vld [vmem:[%s18] sm:$0x1]
    %20 = vrot.lane.b32.xlu0 %v19, 80
    %v21 = vpop.permute.xlu0 %20
    %vm22 = vcmask 786048
    %23 = vst.msk [vmem:[#allocation0] sm:$0x1] %vm22, %v21
    %s24 = scalar_lea.vmem %s0, 4
    %v25 = vld [vmem:[%s24] sm:$0x1]
    %26 = vrot.lane.b32.xlu0 %v25, 64
    %v27 = vpop.permute.xlu0 %26
    %vm28 = vcmask 654848
    %29 = vst.msk [vmem:[#allocation0] sm:$0x1] %vm28, %v27
    %s30 = scalar_lea.vmem %s0, 3
    %s31 = smov 3
    %v32 = vld [vmem:[%s30] ss:$8 sm:%s31]
    %33 = vrot.lane.b32.xlu0 %v32, 48
    %v34 = vpop.permute.xlu0 %33
    %vm35 = vcmask 523648
    %36 = vst.msk [vmem:[#allocation0] ss:$8 sm:$0x3] %vm35, %v34
    %s37 = scalar_lea.vmem %s0, 2
    %s38 = smov 3
    %v39 = vld [vmem:[%s37] ss:$8 sm:%s38]
    %40 = vrot.lane.b32.xlu0 %v39, 32
    %v41 = vpop.permute.xlu0 %40
    %vm42 = vcmask 392448
    %43 = vst.msk [vmem:[#allocation0] ss:$8 sm:$0x3] %vm42, %v41
    %s44 = scalar_lea.vmem %s0, 1
    %s45 = smov 3
    %v46 = vld [vmem:[%s44] ss:$8 sm:%s45]
    %47 = vrot.lane.b32.xlu0 %v46, 16
    %v48 = vpop.permute.xlu0 %47
    %vm49 = vcmask 261248
    %50 = vst.msk [vmem:[#allocation0] ss:$8 sm:$0x3] %vm49, %v48
    %s52 = sshllo.u32 0, 1
    %v54 = vld [vmem:[#allocation0] sm:%s52]
    %s55 = sshllo.u32 0, 1
    %56 = vst [vmem:[%s1] sm:%s55] %v54
    %s57 = scalar_lea.vmem [#allocation0], 8
    %v58 = vld [vmem:[%s57] sm:%s52]
    %s59 = sshllo.u32 0, 1
    %s60 = scalar_lea.vmem %s1, 1
    %61 = vst [vmem:[%s60] sm:%s59] %v58

// kernel: feature_extractor_pallas.1
$region0: #{feature_extractor_pallas.1}
  #allocation0 [shape = 'u32[]', space=smem, size = 0x4, offset = 0x4, fixed_abs, tag = 'smem constant byte address 0x4 - core index']
  #allocation1 [shape = 'u32[144,128]{1,0:T(1,128)}', space=vmem, size = 0x12000, scoped, tag = 'internal scratch']
  %s0 = inlined_call_operand.vmem [shape: f32[1,240,30], index: 0, kind: input, shape index: {}]
  %s1 = inlined_call_operand.vmem [shape: f32[3,30,168], index: 1, kind: input, shape index: {}]
  %s2 = inlined_call_operand.vmem [shape: f32[1,168], index: 2, kind: input, shape index: {}]
  %s3 = inlined_call_operand.vmem [shape: f32[162,84], index: 3, kind: input, shape index: {}]
  %s4 = inlined_call_operand.vmem [shape: f32[112,216], index: 4, kind: input, shape index: {}]
  %s5 = inlined_call_operand.vmem [shape: f32[3,84,192], index: 5, kind: input, shape index: {}]
  %s6 = inlined_call_operand.vmem [shape: f32[1,192], index: 6, kind: input, shape index: {}]
  %s7 = inlined_call_operand.vmem [shape: f32[176,96], index: 7, kind: input, shape index: {}]
  %s8 = inlined_call_operand.vmem [shape: f32[48,88], index: 8, kind: input, shape index: {}]
  %s9 = inlined_call_operand.vmem [shape: f32[6,96,128], index: 9, kind: input, shape index: {}]
  %s10 = inlined_call_operand.vmem [shape: f32[1,128], index: 10, kind: input, shape index: {}]
  %s11 = inlined_call_operand.vmem [shape: f32[128,128], index: 11, kind: input, shape index: {}]
  %s12 = inlined_call_operand.vmem [shape: f32[1,128], index: 12, kind: input, shape index: {}]
  %s13 = inlined_call_operand.vmem [shape: f32[8,128], index: 13, kind: output, shape index: {}]
  %s14 = sld [smem:[#allocation0]]
  $region62: #{feature_extractor_pallas.1} parent=0
    _
  %s16 = ssub.s32 1, %s14
  %s17 = scalar_select 0, %s16, %s14
  // Predicated region
  $region2: #{feature_extractor_pallas.1} parent=0 // pred_check
    _
  $region3: #{feature_extractor_pallas.1} parent=0 // pred_check_branch
    %19 = sbr.rel (0) target = $region5
  $region4: #{feature_extractor_pallas.1} parent=0 // pred_region
    _
  $region5: #{feature_extractor_pallas.1} parent=0 // pred_fallthru
    _
  // Predicated region
  $region6: #{feature_extractor_pallas.1} parent=0 // pred_check
    _
  $region7: #{feature_extractor_pallas.1} parent=0 // pred_check_branch
    %21 = sbr.rel (0) target = $region9
  $region8: #{feature_extractor_pallas.1} parent=0 // pred_region
    _
  $region9: #{feature_extractor_pallas.1} parent=0 // pred_fallthru
    _
  // Predicated region
  $region10: #{feature_extractor_pallas.1} parent=0 // pred_check
    _
  $region11: #{feature_extractor_pallas.1} parent=0 // pred_check_branch
    %23 = sbr.rel (0) target = $region13
  $region12: #{feature_extractor_pallas.1} parent=0 // pred_region
    _
  $region13: #{feature_extractor_pallas.1} parent=0 // pred_fallthru
    _
  // Predicated region
  $region14: #{feature_extractor_pallas.1} parent=0 // pred_check
    _
  $region15: #{feature_extractor_pallas.1} parent=0 // pred_check_branch
    %25 = sbr.rel (0) target = $region17
  $region16: #{feature_extractor_pallas.1} parent=0 // pred_region
    _
  $region17: #{feature_extractor_pallas.1} parent=0 // pred_fallthru
    _
  // Predicated region
  $region18: #{feature_extractor_pallas.1} parent=0 // pred_check
    _
  $region19: #{feature_extractor_pallas.1} parent=0 // pred_check_branch
    %27 = sbr.rel (0) target = $region21
  $region20: #{feature_extractor_pallas.1} parent=0 // pred_region
    _
  $region21: #{feature_extractor_pallas.1} parent=0 // pred_fallthru
    _
  // Predicated region
  $region22: #{feature_extractor_pallas.1} parent=0 // pred_check
    _
  $region23: #{feature_extractor_pallas.1} parent=0 // pred_check_branch
    %29 = sbr.rel (0) target = $region25
  $region24: #{feature_extractor_pallas.1} parent=0 // pred_region
    _
  $region25: #{feature_extractor_pallas.1} parent=0 // pred_fallthru
    _
  // Predicated region
  $region26: #{feature_extractor_pallas.1} parent=0 // pred_check
    _
  $region27: #{feature_extractor_pallas.1} parent=0 // pred_check_branch
    %31 = sbr.rel (0) target = $region29
  $region28: #{feature_extractor_pallas.1} parent=0 // pred_region
    _
  $region29: #{feature_extractor_pallas.1} parent=0 // pred_fallthru
    _
  // Predicated region
  $region30: #{feature_extractor_pallas.1} parent=0 // pred_check
    _
  $region31: #{feature_extractor_pallas.1} parent=0 // pred_check_branch
    %33 = sbr.rel (0) target = $region33
  $region32: #{feature_extractor_pallas.1} parent=0 // pred_region
    _
  $region33: #{feature_extractor_pallas.1} parent=0 // pred_fallthru
    _
  // Predicated region
  $region34: #{feature_extractor_pallas.1} parent=0 // pred_check
    _
  $region35: #{feature_extractor_pallas.1} parent=0 // pred_check_branch
    %35 = sbr.rel (0) target = $region37
  $region36: #{feature_extractor_pallas.1} parent=0 // pred_region
    _
  $region37: #{feature_extractor_pallas.1} parent=0 // pred_fallthru
    _
  // Predicated region
  $region38: #{feature_extractor_pallas.1} parent=0 // pred_check
    _
  $region39: #{feature_extractor_pallas.1} parent=0 // pred_check_branch
    %37 = sbr.rel (0) target = $region41
  $region40: #{feature_extractor_pallas.1} parent=0 // pred_region
    _
  $region41: #{feature_extractor_pallas.1} parent=0 // pred_fallthru
    _
  // Predicated region
  $region42: #{feature_extractor_pallas.1} parent=0 // pred_check
    _
  $region43: #{feature_extractor_pallas.1} parent=0 // pred_check_branch
    %39 = sbr.rel (0) target = $region45
  $region44: #{feature_extractor_pallas.1} parent=0 // pred_region
    _
  $region45: #{feature_extractor_pallas.1} parent=0 // pred_fallthru
    _
  // Predicated region
  $region46: #{feature_extractor_pallas.1} parent=0 // pred_check
    _
  $region47: #{feature_extractor_pallas.1} parent=0 // pred_check_branch
    %41 = sbr.rel (0) target = $region49
  $region48: #{feature_extractor_pallas.1} parent=0 // pred_region
    _
  $region49: #{feature_extractor_pallas.1} parent=0 // pred_fallthru
    _
  // Predicated region
  $region50: #{feature_extractor_pallas.1} parent=0 // pred_check
    _
  $region51: #{feature_extractor_pallas.1} parent=0 // pred_check_branch
    %43 = sbr.rel (0) target = $region53
  $region52: #{feature_extractor_pallas.1} parent=0 // pred_region
    _
  $region53: #{feature_extractor_pallas.1} parent=0 // pred_fallthru
    _
  %v44 = vld [vmem:[%s0] sm:$0xff]
  %v45 = vld [vmem:[%s0 + $0x8] sm:$0xff]
  %v46 = vld [vmem:[%s0 + $0x10] sm:$0xff]
  %v47 = vld [vmem:[%s0 + $0x18] sm:$0xff]
  %v48 = vld [vmem:[%s0 + $0x20] sm:$0xff]
  %v49 = vld [vmem:[%s0 + $0x28] sm:$0xff]
  %v50 = vld [vmem:[%s0 + $0x30] sm:$0xff]
  %v51 = vld [vmem:[%s0 + $0x38] sm:$0xff]
  %v52 = vld [vmem:[%s0 + $0x40] sm:$0xff]
  %v53 = vld [vmem:[%s0 + $0x48] sm:$0xff]
  %v54 = vld [vmem:[%s0 + $0x50] sm:$0xff]
  %v55 = vld [vmem:[%s0 + $0x58] sm:$0xff]
  %v56 = vld [vmem:[%s0 + $0x60] sm:$0xff]
  %v57 = vld [vmem:[%s0 + $0x68] sm:$0xff]
  %v58 = vld [vmem:[%s0 + $0x70] sm:$0xff]
  %v59 = vld [vmem:[%s0 + $0x78] sm:$0xff]
  %v60 = vld [vmem:[%s0 + $0x80] sm:$0xff]
  %v61 = vld [vmem:[%s0 + $0x88] sm:$0xff]
  %v62 = vld [vmem:[%s0 + $0x90] sm:$0xff]
  %v63 = vld [vmem:[%s0 + $0x98] sm:$0xff]
  %v64 = vld [vmem:[%s0 + $0xa0] sm:$0xff]
  %v65 = vld [vmem:[%s0 + $0xa8] sm:$0xff]
  %v66 = vld [vmem:[%s0 + $0xb0] sm:$0xff]
  %v67 = vld [vmem:[%s0 + $0xb8] sm:$0xff]
  %v68 = vld [vmem:[%s0 + $0xc0] sm:$0xff]
  %v69 = vld [vmem:[%s0 + $0xc8] sm:$0xff]
  %v70 = vld [vmem:[%s0 + $0xd0] sm:$0xff]
  %v71 = vld [vmem:[%s0 + $0xd8] sm:$0xff]
  %v72 = vld [vmem:[%s0 + $0xe0] sm:$0xff]
  %v73 = vld [vmem:[%s0 + $0xe8] sm:$0xff]
  %v74 = vld [vmem:[%s1] sm:$0xff]
  %v75 = vld [vmem:[%s1 + $0x8] sm:$0xff]
  %v76 = vld [vmem:[%s1 + $0x10] sm:$0xff]
  %v77 = vld [vmem:[%s1 + $0x18] sm:$0xff]
  %v78 = vld [vmem:[%s1 + $0x20] sm:$0xff]
  %v79 = vld [vmem:[%s1 + $0x28] sm:$0xff]
  %v80 = vld [vmem:[%s1 + $0x30] sm:$0x3f]
  %v81 = vld [vmem:[%s1 + $0x38] sm:$0x3f]
  %s82 = scalar_lea.vmem %s1, 64
  %v83 = vld [vmem:[%s82] sm:$0xff]
  %v84 = vld [vmem:[%s82 + $0x8] sm:$0xff]
  %v85 = vld [vmem:[%s82 + $0x10] sm:$0xff]
  %v86 = vld [vmem:[%s82 + $0x18] sm:$0xff]
  %v87 = vld [vmem:[%s82 + $0x20] sm:$0xff]
  %v88 = vld [vmem:[%s82 + $0x28] sm:$0xff]
  %v89 = vld [vmem:[%s82 + $0x30] sm:$0x3f]
  %v90 = vld [vmem:[%s82 + $0x38] sm:$0x3f]
  %vm91 = vcmask 244736
  %v93 = vsel %vm91, %v45, 0
  %v96 = vsel %vm91, %v46, 0
  %v99 = vsel %vm91, %v47, 0
  %v102 = vsel %vm91, %v48, 0
  %v105 = vsel %vm91, %v49, 0
  %v108 = vsel %vm91, %v50, 0
  %v111 = vsel %vm91, %v51, 0
  %v114 = vsel %vm91, %v52, 0
  %v117 = vsel %vm91, %v53, 0
  %v120 = vsel %vm91, %v54, 0
  %v123 = vsel %vm91, %v55, 0
  %v126 = vsel %vm91, %v56, 0
  %v129 = vsel %vm91, %v57, 0
  %v132 = vsel %vm91, %v58, 0
  %v135 = vsel %vm91, %v59, 0
  %v138 = vsel %vm91, %v60, 0
  %v141 = vsel %vm91, %v61, 0
  %v144 = vsel %vm91, %v62, 0
  %v147 = vsel %vm91, %v63, 0
  %v150 = vsel %vm91, %v64, 0
  %v153 = vsel %vm91, %v65, 0
  %v156 = vsel %vm91, %v66, 0
  %v159 = vsel %vm91, %v67, 0
  %v162 = vsel %vm91, %v68, 0
  %v165 = vsel %vm91, %v69, 0
  %v168 = vsel %vm91, %v70, 0
  %v171 = vsel %vm91, %v71, 0
  %v174 = vsel %vm91, %v72, 0
  %vm176 = vcmask 1045504
  %v178 = vsel %vm176, %v89, 0
  %v181 = vsel %vm176, %v90, 0
  %183 = vmatprep.subr.mxu0 %v84
  %184 = vmatpush1.msra.mxu0 %v83
  %185 = vmatprep.subr.mxu0 %v86
  %186 = vmatpush1.msra.mxu0 %v85
  %187 = vmatprep.subr.mxu0 %v88
  %188 = vmatpush1.msra.mxu0 %v87
  %189 = vmatprep.subr.mxu0 %v181
  %190 = vmatpush1.msra.mxu0 %v178
  %191 = vmatprep.subr.mxu0 0.0
  %192 = vmatpush1.msra.mxu0 0.0
  %193 = vmatprep.subr.mxu0 0.0
  %194 = vmatpush1.msra.mxu0 0.0
  %195 = vmatprep.subr.mxu0 0.0
  %196 = vmatpush1.msra.mxu0 0.0
  %197 = vmatprep.subr.mxu0 0.0
  %198 = vmatpush1.msra.mxu0 0.0
  %199 = vmatprep.subr.mxu0 0.0
  %200 = vmatpush1.msra.mxu0 0.0
  %201 = vmatprep.subr.mxu0 0.0
  %202 = vmatpush1.msra.mxu0 0.0
  %203 = vmatprep.subr.mxu0 0.0
  %204 = vmatpush1.msra.mxu0 0.0
  %205 = vmatprep.subr.mxu0 0.0
  %206 = vmatpush1.msra.mxu0 0.0
  %207 = vmatprep.subr.mxu0 0.0
  %208 = vmatpush1.msra.mxu0 0.0
  %209 = vmatprep.subr.mxu0 0.0
  %210 = vmatpush1.msra.mxu0 0.0
  %211 = vmatprep.subr.mxu0 0.0
  %212 = vmatpush1.msra.mxu0 0.0
  %213 = vmatprep.subr.mxu0 0.0
  %214 = vmatpush1.msra.mxu0 0.0
  %215 = vmatprep.subr.mxu0 0.0
  %216 = vmatpush1.msra.mxu0 0.0
  %217 = vmatprep.subr.mxu0 0.0
  %218 = vmatpush1.msra.mxu0 0.0
  %219 = vmatprep.subr.mxu0 0.0
  %220 = vmatpush1.msra.mxu0 0.0
  %221 = vmatprep.subr.mxu0 0.0
  %222 = vmatpush1.msra.mxu0 0.0
  %223 = vmatprep.subr.mxu0 0.0
  %224 = vmatpush1.msra.mxu0 0.0
  %225 = vmatprep.subr.mxu0 0.0
  %226 = vmatpush1.msra.mxu0 0.0
  %227 = vmatprep.subr.mxu0 0.0
  %228 = vmatpush1.msra.mxu0 0.0
  %229 = vmatprep.subr.mxu0 0.0
  %230 = vmatpush1.msra.mxu0 0.0
  %231 = vmatprep.subr.mxu0 0.0
  %232 = vmatpush1.msra.mxu0 0.0
  %233 = vmatprep.subr.mxu0 0.0
  %234 = vmatpush1.msra.mxu0 0.0
  %235 = vmatprep.subr.mxu0 0.0
  %236 = vmatpush1.msra.mxu0 0.0
  %237 = vmatprep.subr.mxu0 0.0
  %238 = vmatpush1.msra.mxu0 0.0
  %239 = vmatprep.subr.mxu0 0.0
  %240 = vmatpush1.msra.mxu0 0.0
  %241 = vmatprep.subr.mxu0 0.0
  %242 = vmatpush1.msra.mxu0 0.0
  %243 = vmatprep.subr.mxu0 0.0
  %244 = vmatpush1.msra.mxu0 0.0
  %245 = vmatprep.subr.mxu0 0.0
  %246 = vmatpush1.msra.mxu0 0.0
  %247 = vmatprep.mubr.f32.mxu0 0.0
  %248 = vmatmul.mubr.f32.gmra.mrb[0].mxu0 %v93
  %v249 = vpop.f32.mrb[0].mxu0
  %v250 = vadd.f32 0.0, %v249
  %v251 = vpop.f32.mrb[0].mxu0
  %v252 = vadd.f32 0.0, %v251
  %253 = vmatprep.mubr.f32.mxu0 0.0
  %254 = vmatmul.mubr.f32.gmra.mrb[0].mxu0 %v96
  %v255 = vpop.f32.mrb[0].mxu0
  %v256 = vadd.f32 0.0, %v255
  %v257 = vpop.f32.mrb[0].mxu0
  %v258 = vadd.f32 0.0, %v257
  %259 = vmatprep.mubr.f32.mxu0 0.0
  %260 = vmatmul.mubr.f32.gmra.mrb[0].mxu0 %v99
  %v261 = vpop.f32.mrb[0].mxu0
  %v262 = vadd.f32 0.0, %v261
  %v263 = vpop.f32.mrb[0].mxu0
  %v264 = vadd.f32 0.0, %v263
  %265 = vmatprep.mubr.f32.mxu0 0.0
  %266 = vmatmul.mubr.f32.gmra.mrb[0].mxu0 %v102
  %v267 = vpop.f32.mrb[0].mxu0
  %v268 = vadd.f32 0.0, %v267
  %v269 = vpop.f32.mrb[0].mxu0
  %v270 = vadd.f32 0.0, %v269
  %271 = vmatprep.mubr.f32.mxu0 0.0
  %272 = vmatmul.mubr.f32.gmra.mrb[0].mxu0 %v105
  %v273 = vpop.f32.mrb[0].mxu0
  %v274 = vadd.f32 0.0, %v273
  %v275 = vpop.f32.mrb[0].mxu0
  %v276 = vadd.f32 0.0, %v275
  %277 = vmatprep.mubr.f32.mxu0 0.0
  %278 = vmatmul.mubr.f32.gmra.mrb[0].mxu0 %v108
  %v279 = vpop.f32.mrb[0].mxu0
  %v280 = vadd.f32 0.0, %v279
  %v281 = vpop.f32.mrb[0].mxu0
  %v282 = vadd.f32 0.0, %v281
  %283 = vmatprep.mubr.f32.mxu0 0.0
  %284 = vmatmul.mubr.f32.gmra.mrb[0].mxu0 %v111
  %v285 = vpop.f32.mrb[0].mxu0
  %v286 = vadd.f32 0.0, %v285
  %v287 = vpop.f32.mrb[0].mxu0
  %v288 = vadd.f32 0.0, %v287
  %289 = vmatprep.mubr.f32.mxu0 0.0
  %290 = vmatmul.mubr.f32.gmra.mrb[0].mxu0 %v114
  %v291 = vpop.f32.mrb[0].mxu0
  %v292 = vadd.f32 0.0, %v291
  %v293 = vpop.f32.mrb[0].mxu0
  %v294 = vadd.f32 0.0, %v293
  %295 = vmatprep.mubr.f32.mxu0 0.0
  %296 = vmatmul.mubr.f32.gmra.mrb[0].mxu0 %v117
  %v297 = vpop.f32.mrb[0].mxu0
  %v298 = vadd.f32 0.0, %v297
  %v299 = vpop.f32.mrb[0].mxu0
  %v300 = vadd.f32 0.0, %v299
  %301 = vmatprep.mubr.f32.mxu0 0.0
  %302 = vmatmul.mubr.f32.gmra.mrb[0].mxu0 %v120
  %v303 = vpop.f32.mrb[0].mxu0
  %v304 = vadd.f32 0.0, %v303
  %v305 = vpop.f32.mrb[0].mxu0
  %v306 = vadd.f32 0.0, %v305
  %307 = vmatprep.mubr.f32.mxu0 0.0
  %308 = vmatmul.mubr.f32.gmra.mrb[0].mxu0 %v123
  %v309 = vpop.f32.mrb[0].mxu0
  %v310 = vadd.f32 0.0, %v309
  %v311 = vpop.f32.mrb[0].mxu0
  %v312 = vadd.f32 0.0, %v311
  %313 = vmatprep.mubr.f32.mxu0 0.0
  %314 = vmatmul.mubr.f32.gmra.mrb[0].mxu0 %v126
  %v315 = vpop.f32.mrb[0].mxu0
  %v316 = vadd.f32 0.0, %v315
  %v317 = vpop.f32.mrb[0].mxu0
  %v318 = vadd.f32 0.0, %v317
  %319 = vmatprep.mubr.f32.mxu0 0.0
  %320 = vmatmul.mubr.f32.gmra.mrb[0].mxu0 %v129
  %v321 = vpop.f32.mrb[0].mxu0
  %v322 = vadd.f32 0.0, %v321
  %v323 = vpop.f32.mrb[0].mxu0
  %v324 = vadd.f32 0.0, %v323
  %325 = vmatprep.mubr.f32.mxu0 0.0
  %326 = vmatmul.mubr.f32.gmra.mrb[0].mxu0 %v132
  %v327 = vpop.f32.mrb[0].mxu0
  %v328 = vadd.f32 0.0, %v327
  %v329 = vpop.f32.mrb[0].mxu0
  %v330 = vadd.f32 0.0, %v329
  %331 = vmatprep.mubr.f32.mxu0 0.0
  %332 = vmatmul.mubr.f32.gmra.mrb[0].mxu0 %v135
  %v333 = vpop.f32.mrb[0].mxu0
  %v334 = vadd.f32 0.0, %v333
  %v335 = vpop.f32.mrb[0].mxu0
  %v336 = vadd.f32 0.0, %v335
  %337 = vmatprep.mubr.f32.mxu0 0.0
  %338 = vmatmul.mubr.f32.gmra.mrb[0].mxu0 %v138
  %v339 = vpop.f32.mrb[0].mxu0
  %v340 = vadd.f32 0.0, %v339
  %v341 = vpop.f32.mrb[0].mxu0
  %v342 = vadd.f32 0.0, %v341
  %343 = vmatprep.mubr.f32.mxu0 0.0
  %344 = vmatmul.mubr.f32.gmra.mrb[0].mxu0 %v141
  %v345 = vpop.f32.mrb[0].mxu0
  %v346 = vadd.f32 0.0, %v345
  %v347 = vpop.f32.mrb[0].mxu0
  %v348 = vadd.f32 0.0, %v347
  %349 = vmatprep.mubr.f32.mxu0 0.0
  %350 = vmatmul.mubr.f32.gmra.mrb[0].mxu0 %v144
  %v351 = vpop.f32.mrb[0].mxu0
  %v352 = vadd.f32 0.0, %v351
  %v353 = vpop.f32.mrb[0].mxu0
  %v354 = vadd.f32 0.0, %v353
  %355 = vmatprep.mubr.f32.mxu0 0.0
  %356 = vmatmul.mubr.f32.gmra.mrb[0].mxu0 %v147
  %v357 = vpop.f32.mrb[0].mxu0
  %v358 = vadd.f32 0.0, %v357
  %v359 = vpop.f32.mrb[0].mxu0
  %v360 = vadd.f32 0.0, %v359
  %361 = vmatprep.mubr.f32.mxu0 0.0
  %362 = vmatmul.mubr.f32.gmra.mrb[0].mxu0 %v150
  %v363 = vpop.f32.mrb[0].mxu0
  %v364 = vadd.f32 0.0, %v363
  %v365 = vpop.f32.mrb[0].mxu0
  %v366 = vadd.f32 0.0, %v365
  %367 = vmatprep.mubr.f32.mxu0 0.0
  %368 = vmatmul.mubr.f32.gmra.mrb[0].mxu0 %v153
  %v369 = vpop.f32.mrb[0].mxu0
  %v370 = vadd.f32 0.0, %v369
  %v371 = vpop.f32.mrb[0].mxu0
  %v372 = vadd.f32 0.0, %v371
  %373 = vmatprep.mubr.f32.mxu0 0.0
  %374 = vmatmul.mubr.f32.gmra.mrb[0].mxu0 %v156
  %v375 = vpop.f32.mrb[0].mxu0
  %v376 = vadd.f32 0.0, %v375
  %v377 = vpop.f32.mrb[0].mxu0
  %v378 = vadd.f32 0.0, %v377
  %379 = vmatprep.mubr.f32.mxu0 0.0
  %380 = vmatmul.mubr.f32.gmra.mrb[0].mxu0 %v159
  %v381 = vpop.f32.mrb[0].mxu0
  %v382 = vadd.f32 0.0, %v381
  %v383 = vpop.f32.mrb[0].mxu0
  %v384 = vadd.f32 0.0, %v383
  %385 = vmatprep.mubr.f32.mxu0 0.0
  %386 = vmatmul.mubr.f32.gmra.mrb[0].mxu0 %v162
  %v387 = vpop.f32.mrb[0].mxu0
  %v388 = vadd.f32 0.0, %v387
  %v389 = vpop.f32.mrb[0].mxu0
  %v390 = vadd.f32 0.0, %v389
  %391 = vmatprep.mubr.f32.mxu0 0.0
  %392 = vmatmul.mubr.f32.gmra.mrb[0].mxu0 %v165
  %v393 = vpop.f32.mrb[0].mxu0
  %v394 = vadd.f32 0.0, %v393
  %v395 = vpop.f32.mrb[0].mxu0
  %v396 = vadd.f32 0.0, %v395
  %397 = vmatprep.mubr.f32.mxu0 0.0
  %398 = vmatmul.mubr.f32.gmra.mrb[0].mxu0 %v168
  %v399 = vpop.f32.mrb[0].mxu0
  %v400 = vadd.f32 0.0, %v399
  %v401 = vpop.f32.mrb[0].mxu0
  %v402 = vadd.f32 0.0, %v401
  %403 = vmatprep.mubr.f32.mxu0 0.0
  %404 = vmatmul.mubr.f32.gmra.mrb[0].mxu0 %v171
  %v405 = vpop.f32.mrb[0].mxu0
  %v406 = vadd.f32 0.0, %v405
  %v407 = vpop.f32.mrb[0].mxu0
  %v408 = vadd.f32 0.0, %v407
  %409 = vmatprep.mubr.f32.mxu0 0.0
  %410 = vmatmul.mubr.f32.gmra.mrb[0].mxu0 %v174
  %v411 = vpop.f32.mrb[0].mxu0
  %v412 = vadd.f32 0.0, %v411
  %v413 = vpop.f32.mrb[0].mxu0
  %v414 = vadd.f32 0.0, %v413
  %415 = vdwg.mxu0
  %v417 = vsel %vm91, %v44, 0
  %v420 = vsel %vm176, %v80, 0
  %v423 = vsel %vm176, %v81, 0
  %425 = vmatprep.subr.mxu0 %v75
  %426 = vmatpush1.msra.mxu0 %v74
  %427 = vmatprep.subr.mxu0 %v77
  %428 = vmatpush1.msra.mxu0 %v76
  %429 = vmatprep.subr.mxu0 %v79
  %430 = vmatpush1.msra.mxu0 %v78
  %431 = vmatprep.subr.mxu0 %v423
  %432 = vmatpush1.msra.mxu0 %v420
  %433 = vmatprep.subr.mxu0 0.0
  %434 = vmatpush1.msra.mxu0 0.0
  %435 = vmatprep.subr.mxu0 0.0
  %436 = vmatpush1.msra.mxu0 0.0
  %437 = vmatprep.subr.mxu0 0.0
  %438 = vmatpush1.msra.mxu0 0.0
  %439 = vmatprep.subr.mxu0 0.0
  %440 = vmatpush1.msra.mxu0 0.0
  %441 = vmatprep.subr.mxu0 0.0
  %442 = vmatpush1.msra.mxu0 0.0
  %443 = vmatprep.subr.mxu0 0.0
  %444 = vmatpush1.msra.mxu0 0.0
  %445 = vmatprep.subr.mxu0 0.0
  %446 = vmatpush1.msra.mxu0 0.0
  %447 = vmatprep.subr.mxu0 0.0
  %448 = vmatpush1.msra.mxu0 0.0
  %449 = vmatprep.subr.mxu0 0.0
  %450 = vmatpush1.msra.mxu0 0.0
  %451 = vmatprep.subr.mxu0 0.0
  %452 = vmatpush1.msra.mxu0 0.0
  %453 = vmatprep.subr.mxu0 0.0
  %454 = vmatpush1.msra.mxu0 0.0
  %455 = vmatprep.subr.mxu0 0.0
  %456 = vmatpush1.msra.mxu0 0.0
  %457 = vmatprep.subr.mxu0 0.0
  %458 = vmatpush1.msra.mxu0 0.0
  %459 = vmatprep.subr.mxu0 0.0
  %460 = vmatpush1.msra.mxu0 0.0
  %461 = vmatprep.subr.mxu0 0.0
  %462 = vmatpush1.msra.mxu0 0.0
  %463 = vmatprep.subr.mxu0 0.0
  %464 = vmatpush1.msra.mxu0 0.0
  %465 = vmatprep.subr.mxu0 0.0
  %466 = vmatpush1.msra.mxu0 0.0
  %467 = vmatprep.subr.mxu0 0.0
  %468 = vmatpush1.msra.mxu0 0.0
  %469 = vmatprep.subr.mxu0 0.0
  %470 = vmatpush1.msra.mxu0 0.0
  %471 = vmatprep.subr.mxu0 0.0
  %472 = vmatpush1.msra.mxu0 0.0
  %473 = vmatprep.subr.mxu0 0.0
  %474 = vmatpush1.msra.mxu0 0.0
  %475 = vmatprep.subr.mxu0 0.0
  %476 = vmatpush1.msra.mxu0 0.0
  %477 = vmatprep.subr.mxu0 0.0
  %478 = vmatpush1.msra.mxu0 0.0
  %479 = vmatprep.subr.mxu0 0.0
  %480 = vmatpush1.msra.mxu0 0.0
  %481 = vmatprep.subr.mxu0 0.0
  %482 = vmatpush1.msra.mxu0 0.0
  %483 = vmatprep.subr.mxu0 0.0
  %484 = vmatpush1.msra.mxu0 0.0
  %485 = vmatprep.subr.mxu0 0.0
  %486 = vmatpush1.msra.mxu0 0.0
  %487 = vmatprep.subr.mxu0 0.0
  %488 = vmatpush1.msra.mxu0 0.0
  %489 = vmatprep.mubr.f32.mxu0 0.0
  %490 = vmatmul.mubr.f32.gmra.mrb[0].mxu0 %v417
  %v491 = vpop.f32.mrb[0].mxu0
  %v492 = vadd.f32 %v250, %v491
  %v493 = vpop.f32.mrb[0].mxu0
  %v494 = vadd.f32 %v252, %v493
  %495 = vmatprep.mubr.f32.mxu0 0.0
  %496 = vmatmul.mubr.f32.gmra.mrb[0].mxu0 %v93
  %v497 = vpop.f32.mrb[0].mxu0
  %v498 = vadd.f32 %v256, %v497
  %v499 = vpop.f32.mrb[0].mxu0
  %v500 = vadd.f32 %v258, %v499
  %501 = vmatprep.mubr.f32.mxu0 0.0
  %502 = vmatmul.mubr.f32.gmra.mrb[0].mxu0 %v96
  %v503 = vpop.f32.mrb[0].mxu0
  %v504 = vadd.f32 %v262, %v503
  %v505 = vpop.f32.mrb[0].mxu0
  %v506 = vadd.f32 %v264, %v505
  %507 = vmatprep.mubr.f32.mxu0 0.0
  %508 = vmatmul.mubr.f32.gmra.mrb[0].mxu0 %v99
  %v509 = vpop.f32.mrb[0].mxu0
  %v510 = vadd.f32 %v268, %v509
  %v511 = vpop.f32.mrb[0].mxu0
  %v512 = vadd.f32 %v270, %v511
  %513 = vmatprep.mubr.f32.mxu0 0.0
  %514 = vmatmul.mubr.f32.gmra.mrb[0].mxu0 %v102
  %v515 = vpop.f32.mrb[0].mxu0
  %v516 = vadd.f32 %v274, %v515
  %v517 = vpop.f32.mrb[0].mxu0
  %v518 = vadd.f32 %v276, %v517
  %519 = vmatprep.mubr.f32.mxu0 0.0
  %520 = vmatmul.mubr.f32.gmra.mrb[0].mxu0 %v105
  %v521 = vpop.f32.mrb[0].mxu0
  %v522 = vadd.f32 %v280, %v521
  %v523 = vpop.f32.mrb[0].mxu0
  %v524 = vadd.f32 %v282, %v523
  %525 = vmatprep.mubr.f32.mxu0 0.0
  %526 = vmatmul.mubr.f32.gmra.mrb[0].mxu0 %v108
  %v527 = vpop.f32.mrb[0].mxu0
  %v528 = vadd.f32 %v286, %v527
  %v529 = vpop.f32.mrb[0].mxu0
  %v530 = vadd.f32 %v288, %v529
  %531 = vmatprep.mubr.f32.mxu0 0.0
  %532 = vmatmul.mubr.f32.gmra.mrb[0].mxu0 %v111
  %v533 = vpop.f32.mrb[0].mxu0
  %v534 = vadd.f32 %v292, %v533
  %v535 = vpop.f32.mrb[0].mxu0
  %v536 = vadd.f32 %v294, %v535
  %537 = vmatprep.mubr.f32.mxu0 0.0
  %538 = vmatmul.mubr.f32.gmra.mrb[0].mxu0 %v114
  %v539 = vpop.f32.mrb[0].mxu0
  %v540 = vadd.f32 %v298, %v539
  %v541 = vpop.f32.mrb[0].mxu0
  %v542 = vadd.f32 %v300, %v541
  %543 = vmatprep.mubr.f32.mxu0 0.0
  %544 = vmatmul.mubr.f32.gmra.mrb[0].mxu0 %v117
  %v545 = vpop.f32.mrb[0].mxu0
  %v546 = vadd.f32 %v304, %v545
  %v547 = vpop.f32.mrb[0].mxu0
  %v548 = vadd.f32 %v306, %v547
  %549 = vmatprep.mubr.f32.mxu0 0.0
  %550 = vmatmul.mubr.f32.gmra.mrb[0].mxu0 %v120
  %v551 = vpop.f32.mrb[0].mxu0
  %v552 = vadd.f32 %v310, %v551
  %v553 = vpop.f32.mrb[0].mxu0
  %v554 = vadd.f32 %v312, %v553
  %555 = vmatprep.mubr.f32.mxu0 0.0
  %556 = vmatmul.mubr.f32.gmra.mrb[0].mxu0 %v123
  %v557 = vpop.f32.mrb[0].mxu0
  %v558 = vadd.f32 %v316, %v557
  %v559 = vpop.f32.mrb[0].mxu0
  %v560 = vadd.f32 %v318, %v559
  %561 = vmatprep.mubr.f32.mxu0 0.0
  %562 = vmatmul.mubr.f32.gmra.mrb[0].mxu0 %v126
  %v563 = vpop.f32.mrb[0].mxu0
  %v564 = vadd.f32 %v322, %v563
  %v565 = vpop.f32.mrb[0].mxu0
  %v566 = vadd.f32 %v324, %v565
  %567 = vmatprep.mubr.f32.mxu0 0.0
  %568 = vmatmul.mubr.f32.gmra.mrb[0].mxu0 %v129
  %v569 = vpop.f32.mrb[0].mxu0
  %v570 = vadd.f32 %v328, %v569
  %v571 = vpop.f32.mrb[0].mxu0
  %v572 = vadd.f32 %v330, %v571
  %573 = vmatprep.mubr.f32.mxu0 0.0
  %574 = vmatmul.mubr.f32.gmra.mrb[0].mxu0 %v132
  %v575 = vpop.f32.mrb[0].mxu0
  %v576 = vadd.f32 %v334, %v575
  %v577 = vpop.f32.mrb[0].mxu0
  %v578 = vadd.f32 %v336, %v577
  %579 = vmatprep.mubr.f32.mxu0 0.0
  %580 = vmatmul.mubr.f32.gmra.mrb[0].mxu0 %v135
  %v581 = vpop.f32.mrb[0].mxu0
  %v582 = vadd.f32 %v340, %v581
  %v583 = vpop.f32.mrb[0].mxu0
  %v584 = vadd.f32 %v342, %v583
  %585 = vmatprep.mubr.f32.mxu0 0.0
  %586 = vmatmul.mubr.f32.gmra.mrb[0].mxu0 %v138
  %v587 = vpop.f32.mrb[0].mxu0
  %v588 = vadd.f32 %v346, %v587
  %v589 = vpop.f32.mrb[0].mxu0
  %v590 = vadd.f32 %v348, %v589
  %591 = vmatprep.mubr.f32.mxu0 0.0
  %592 = vmatmul.mubr.f32.gmra.mrb[0].mxu0 %v141
  %v593 = vpop.f32.mrb[0].mxu0
  %v594 = vadd.f32 %v352, %v593
  %v595 = vpop.f32.mrb[0].mxu0
  %v596 = vadd.f32 %v354, %v595
  %597 = vmatprep.mubr.f32.mxu0 0.0
  %598 = vmatmul.mubr.f32.gmra.mrb[0].mxu0 %v144
  %v599 = vpop.f32.mrb[0].mxu0
  %v600 = vadd.f32 %v358, %v599
  %v601 = vpop.f32.mrb[0].mxu0
  %v602 = vadd.f32 %v360, %v601
  %603 = vmatprep.mubr.f32.mxu0 0.0
  %604 = vmatmul.mubr.f32.gmra.mrb[0].mxu0 %v147
  %v605 = vpop.f32.mrb[0].mxu0
  %v606 = vadd.f32 %v364, %v605
  %v607 = vpop.f32.mrb[0].mxu0
  %v608 = vadd.f32 %v366, %v607
  %609 = vmatprep.mubr.f32.mxu0 0.0
  %610 = vmatmul.mubr.f32.gmra.mrb[0].mxu0 %v150
  %v611 = vpop.f32.mrb[0].mxu0
  %v612 = vadd.f32 %v370, %v611
  %v613 = vpop.f32.mrb[0].mxu0
  %v614 = vadd.f32 %v372, %v613
  %615 = vmatprep.mubr.f32.mxu0 0.0
  %616 = vmatmul.mubr.f32.gmra.mrb[0].mxu0 %v153
  %v617 = vpop.f32.mrb[0].mxu0
  %v618 = vadd.f32 %v376, %v617
  %v619 = vpop.f32.mrb[0].mxu0
  %v620 = vadd.f32 %v378, %v619
  %621 = vmatprep.mubr.f32.mxu0 0.0
  %622 = vmatmul.mubr.f32.gmra.mrb[0].mxu0 %v156
  %v623 = vpop.f32.mrb[0].mxu0
  %v624 = vadd.f32 %v382, %v623
  %v625 = vpop.f32.mrb[0].mxu0
  %v626 = vadd.f32 %v384, %v625
  %627 = vmatprep.mubr.f32.mxu0 0.0
  %628 = vmatmul.mubr.f32.gmra.mrb[0].mxu0 %v159
  %v629 = vpop.f32.mrb[0].mxu0
  %v630 = vadd.f32 %v388, %v629
  %v631 = vpop.f32.mrb[0].mxu0
  %v632 = vadd.f32 %v390, %v631
  %633 = vmatprep.mubr.f32.mxu0 0.0
  %634 = vmatmul.mubr.f32.gmra.mrb[0].mxu0 %v162
  %v635 = vpop.f32.mrb[0].mxu0
  %v636 = vadd.f32 %v394, %v635
  %v637 = vpop.f32.mrb[0].mxu0
  %v638 = vadd.f32 %v396, %v637
  %639 = vmatprep.mubr.f32.mxu0 0.0
  %640 = vmatmul.mubr.f32.gmra.mrb[0].mxu0 %v165
  %v641 = vpop.f32.mrb[0].mxu0
  %v642 = vadd.f32 %v400, %v641
  %v643 = vpop.f32.mrb[0].mxu0
  %v644 = vadd.f32 %v402, %v643
  %645 = vmatprep.mubr.f32.mxu0 0.0
  %646 = vmatmul.mubr.f32.gmra.mrb[0].mxu0 %v168
  %v647 = vpop.f32.mrb[0].mxu0
  %v648 = vadd.f32 %v406, %v647
  %v649 = vpop.f32.mrb[0].mxu0
  %v650 = vadd.f32 %v408, %v649
  %651 = vmatprep.mubr.f32.mxu0 0.0
  %652 = vmatmul.mubr.f32.gmra.mrb[0].mxu0 %v171
  %v653 = vpop.f32.mrb[0].mxu0
  %v654 = vadd.f32 %v412, %v653
  %v655 = vpop.f32.mrb[0].mxu0
  %v656 = vadd.f32 %v414, %v655
  %657 = vdwg.mxu0
  %s658 = scalar_lea.vmem %s1, 128
  %v659 = vld [vmem:[%s658] sm:$0xff]
  %v660 = vld [vmem:[%s658 + $0x8] sm:$0xff]
  %v661 = vld [vmem:[%s658 + $0x10] sm:$0xff]
  %v662 = vld [vmem:[%s658 + $0x18] sm:$0xff]
  %v663 = vld [vmem:[%s658 + $0x20] sm:$0xff]
  %v664 = vld [vmem:[%s658 + $0x28] sm:$0xff]
  %v665 = vld [vmem:[%s658 + $0x30] sm:$0x3f]
  %v666 = vld [vmem:[%s658 + $0x38] sm:$0x3f]
  %v668 = vsel %vm91, %v73, 0
  %v671 = vsel %vm176, %v665, 0
  %v674 = vsel %vm176, %v666, 0
  %676 = vmatprep.subr.mxu0 %v660
  %677 = vmatpush1.msra.mxu0 %v659
  %678 = vmatprep.subr.mxu0 %v662
  %679 = vmatpush1.msra.mxu0 %v661
  %680 = vmatprep.subr.mxu0 %v664
  %681 = vmatpush1.msra.mxu0 %v663
  %682 = vmatprep.subr.mxu0 %v674
  %683 = vmatpush1.msra.mxu0 %v671
  %684 = vmatprep.subr.mxu0 0.0
  %685 = vmatpush1.msra.mxu0 0.0
  %686 = vmatprep.subr.mxu0 0.0
  %687 = vmatpush1.msra.mxu0 0.0
  %688 = vmatprep.subr.mxu0 0.0
  %689 = vmatpush1.msra.mxu0 0.0
  %690 = vmatprep.subr.mxu0 0.0
  %691 = vmatpush1.msra.mxu0 0.0
  %692 = vmatprep.subr.mxu0 0.0
  %693 = vmatpush1.msra.mxu0 0.0
  %694 = vmatprep.subr.mxu0 0.0
  %695 = vmatpush1.msra.mxu0 0.0
  %696 = vmatprep.subr.mxu0 0.0
  %697 = vmatpush1.msra.mxu0 0.0
  %698 = vmatprep.subr.mxu0 0.0
  %699 = vmatpush1.msra.mxu0 0.0
  %700 = vmatprep.subr.mxu0 0.0
  %701 = vmatpush1.msra.mxu0 0.0
  %702 = vmatprep.subr.mxu0 0.0
  %703 = vmatpush1.msra.mxu0 0.0
  %704 = vmatprep.subr.mxu0 0.0
  %705 = vmatpush1.msra.mxu0 0.0
  %706 = vmatprep.subr.mxu0 0.0
  %707 = vmatpush1.msra.mxu0 0.0
  %708 = vmatprep.subr.mxu0 0.0
  %709 = vmatpush1.msra.mxu0 0.0
  %710 = vmatprep.subr.mxu0 0.0
  %711 = vmatpush1.msra.mxu0 0.0
  %712 = vmatprep.subr.mxu0 0.0
  %713 = vmatpush1.msra.mxu0 0.0
  %714 = vmatprep.subr.mxu0 0.0
  %715 = vmatpush1.msra.mxu0 0.0
  %716 = vmatprep.subr.mxu0 0.0
  %717 = vmatpush1.msra.mxu0 0.0
  %718 = vmatprep.subr.mxu0 0.0
  %719 = vmatpush1.msra.mxu0 0.0
  %720 = vmatprep.subr.mxu0 0.0
  %721 = vmatpush1.msra.mxu0 0.0
  %722 = vmatprep.subr.mxu0 0.0
  %723 = vmatpush1.msra.mxu0 0.0
  %724 = vmatprep.subr.mxu0 0.0
  %725 = vmatpush1.msra.mxu0 0.0
  %726 = vmatprep.subr.mxu0 0.0
  %727 = vmatpush1.msra.mxu0 0.0
  %728 = vmatprep.subr.mxu0 0.0
  %729 = vmatpush1.msra.mxu0 0.0
  %730 = vmatprep.subr.mxu0 0.0
  %731 = vmatpush1.msra.mxu0 0.0
  %732 = vmatprep.subr.mxu0 0.0
  %733 = vmatpush1.msra.mxu0 0.0
  %734 = vmatprep.subr.mxu0 0.0
  %735 = vmatpush1.msra.mxu0 0.0
  %736 = vmatprep.subr.mxu0 0.0
  %737 = vmatpush1.msra.mxu0 0.0
  %738 = vmatprep.subr.mxu0 0.0
  %739 = vmatpush1.msra.mxu0 0.0
  %740 = vmatprep.mubr.f32.mxu0 0.0
  %741 = vmatmul.mubr.f32.gmra.mrb[0].mxu0 %v96
  %v742 = vpop.f32.mrb[0].mxu0
  %v743 = vadd.f32 0.0, %v742
  %v744 = vpop.f32.mrb[0].mxu0
  %v745 = vadd.f32 0.0, %v744
  %746 = vmatprep.mubr.f32.mxu0 0.0
  %747 = vmatmul.mubr.f32.gmra.mrb[0].mxu0 %v99
  %v748 = vpop.f32.mrb[0].mxu0
  %v749 = vadd.f32 0.0, %v748
  %v750 = vpop.f32.mrb[0].mxu0
  %v751 = vadd.f32 0.0, %v750
  %752 = vmatprep.mubr.f32.mxu0 0.0
  %753 = vmatmul.mubr.f32.gmra.mrb[0].mxu0 %v102
  %v754 = vpop.f32.mrb[0].mxu0
  %v755 = vadd.f32 0.0, %v754
  %v756 = vpop.f32.mrb[0].mxu0
  %v757 = vadd.f32 0.0, %v756
  %758 = vmatprep.mubr.f32.mxu0 0.0
  %759 = vmatmul.mubr.f32.gmra.mrb[0].mxu0 %v105
  %v760 = vpop.f32.mrb[0].mxu0
  %v761 = vadd.f32 0.0, %v760
  %v762 = vpop.f32.mrb[0].mxu0
  %v763 = vadd.f32 0.0, %v762
  %764 = vmatprep.mubr.f32.mxu0 0.0
  %765 = vmatmul.mubr.f32.gmra.mrb[0].mxu0 %v108
  %v766 = vpop.f32.mrb[0].mxu0
  %v767 = vadd.f32 0.0, %v766
  %v768 = vpop.f32.mrb[0].mxu0
  %v769 = vadd.f32 0.0, %v768
  %770 = vmatprep.mubr.f32.mxu0 0.0
  %771 = vmatmul.mubr.f32.gmra.mrb[0].mxu0 %v111
  %v772 = vpop.f32.mrb[0].mxu0
  %v773 = vadd.f32 0.0, %v772
  %v774 = vpop.f32.mrb[0].mxu0
  %v775 = vadd.f32 0.0, %v774
  %776 = vmatprep.mubr.f32.mxu0 0.0
  %777 = vmatmul.mubr.f32.gmra.mrb[0].mxu0 %v114
  %v778 = vpop.f32.mrb[0].mxu0
  %v779 = vadd.f32 0.0, %v778
  %v780 = vpop.f32.mrb[0].mxu0
  %v781 = vadd.f32 0.0, %v780
  %782 = vmatprep.mubr.f32.mxu0 0.0
  %783 = vmatmul.mubr.f32.gmra.mrb[0].mxu0 %v117
  %v784 = vpop.f32.mrb[0].mxu0
  %v785 = vadd.f32 0.0, %v784
  %v786 = vpop.f32.mrb[0].mxu0
  %v787 = vadd.f32 0.0, %v786
  %788 = vmatprep.mubr.f32.mxu0 0.0
  %789 = vmatmul.mubr.f32.gmra.mrb[0].mxu0 %v120
  %v790 = vpop.f32.mrb[0].mxu0
  %v791 = vadd.f32 0.0, %v790
  %v792 = vpop.f32.mrb[0].mxu0
  %v793 = vadd.f32 0.0, %v792
  %794 = vmatprep.mubr.f32.mxu0 0.0
  %795 = vmatmul.mubr.f32.gmra.mrb[0].mxu0 %v123
  %v796 = vpop.f32.mrb[0].mxu0
  %v797 = vadd.f32 0.0, %v796
  %v798 = vpop.f32.mrb[0].mxu0
  %v799 = vadd.f32 0.0, %v798
  %800 = vmatprep.mubr.f32.mxu0 0.0
  %801 = vmatmul.mubr.f32.gmra.mrb[0].mxu0 %v126
  %v802 = vpop.f32.mrb[0].mxu0
  %v803 = vadd.f32 0.0, %v802
  %v804 = vpop.f32.mrb[0].mxu0
  %v805 = vadd.f32 0.0, %v804
  %806 = vmatprep.mubr.f32.mxu0 0.0
  %807 = vmatmul.mubr.f32.gmra.mrb[0].mxu0 %v129
  %v808 = vpop.f32.mrb[0].mxu0
  %v809 = vadd.f32 0.0, %v808
  %v810 = vpop.f32.mrb[0].mxu0
  %v811 = vadd.f32 0.0, %v810
  %812 = vmatprep.mubr.f32.mxu0 0.0
  %813 = vmatmul.mubr.f32.gmra.mrb[0].mxu0 %v132
  %v814 = vpop.f32.mrb[0].mxu0
  %v815 = vadd.f32 0.0, %v814
  %v816 = vpop.f32.mrb[0].mxu0
  %v817 = vadd.f32 0.0, %v816
  %818 = vmatprep.mubr.f32.mxu0 0.0
  %819 = vmatmul.mubr.f32.gmra.mrb[0].mxu0 %v135
  %v820 = vpop.f32.mrb[0].mxu0
  %v821 = vadd.f32 0.0, %v820
  %v822 = vpop.f32.mrb[0].mxu0
  %v823 = vadd.f32 0.0, %v822
  %824 = vmatprep.mubr.f32.mxu0 0.0
  %825 = vmatmul.mubr.f32.gmra.mrb[0].mxu0 %v138
  %v826 = vpop.f32.mrb[0].mxu0
  %v827 = vadd.f32 0.0, %v826
  %v828 = vpop.f32.mrb[0].mxu0
  %v829 = vadd.f32 0.0, %v828
  %830 = vmatprep.mubr.f32.mxu0 0.0
  %831 = vmatmul.mubr.f32.gmra.mrb[0].mxu0 %v141
  %v832 = vpop.f32.mrb[0].mxu0
  %v833 = vadd.f32 0.0, %v832
  %v834 = vpop.f32.mrb[0].mxu0
  %v835 = vadd.f32 0.0, %v834
  %836 = vmatprep.mubr.f32.mxu0 0.0
  %837 = vmatmul.mubr.f32.gmra.mrb[0].mxu0 %v144
  %v838 = vpop.f32.mrb[0].mxu0
  %v839 = vadd.f32 0.0, %v838
  %v840 = vpop.f32.mrb[0].mxu0
  %v841 = vadd.f32 0.0, %v840
  %842 = vmatprep.mubr.f32.mxu0 0.0
  %843 = vmatmul.mubr.f32.gmra.mrb[0].mxu0 %v147
  %v844 = vpop.f32.mrb[0].mxu0
  %v845 = vadd.f32 0.0, %v844
  %v846 = vpop.f32.mrb[0].mxu0
  %v847 = vadd.f32 0.0, %v846
  %848 = vmatprep.mubr.f32.mxu0 0.0
  %849 = vmatmul.mubr.f32.gmra.mrb[0].mxu0 %v150
  %v850 = vpop.f32.mrb[0].mxu0
  %v851 = vadd.f32 0.0, %v850
  %v852 = vpop.f32.mrb[0].mxu0
  %v853 = vadd.f32 0.0, %v852
  %854 = vmatprep.mubr.f32.mxu0 0.0
  %855 = vmatmul.mubr.f32.gmra.mrb[0].mxu0 %v153
  %v856 = vpop.f32.mrb[0].mxu0
  %v857 = vadd.f32 0.0, %v856
  %v858 = vpop.f32.mrb[0].mxu0
  %v859 = vadd.f32 0.0, %v858
  %860 = vmatprep.mubr.f32.mxu0 0.0
  %861 = vmatmul.mubr.f32.gmra.mrb[0].mxu0 %v156
  %v862 = vpop.f32.mrb[0].mxu0
  %v863 = vadd.f32 0.0, %v862
  %v864 = vpop.f32.mrb[0].mxu0
  %v865 = vadd.f32 0.0, %v864
  %866 = vmatprep.mubr.f32.mxu0 0.0
  %867 = vmatmul.mubr.f32.gmra.mrb[0].mxu0 %v159
  %v868 = vpop.f32.mrb[0].mxu0
  %v869 = vadd.f32 0.0, %v868
  %v870 = vpop.f32.mrb[0].mxu0
  %v871 = vadd.f32 0.0, %v870
  %872 = vmatprep.mubr.f32.mxu0 0.0
  %873 = vmatmul.mubr.f32.gmra.mrb[0].mxu0 %v162
  %v874 = vpop.f32.mrb[0].mxu0
  %v875 = vadd.f32 0.0, %v874
  %v876 = vpop.f32.mrb[0].mxu0
  %v877 = vadd.f32 0.0, %v876
  %878 = vmatprep.mubr.f32.mxu0 0.0
  %879 = vmatmul.mubr.f32.gmra.mrb[0].mxu0 %v165
  %v880 = vpop.f32.mrb[0].mxu0
  %v881 = vadd.f32 0.0, %v880
  %v882 = vpop.f32.mrb[0].mxu0
  %v883 = vadd.f32 0.0, %v882
  %884 = vmatprep.mubr.f32.mxu0 0.0
  %885 = vmatmul.mubr.f32.gmra.mrb[0].mxu0 %v168
  %v886 = vpop.f32.mrb[0].mxu0
  %v887 = vadd.f32 0.0, %v886
  %v888 = vpop.f32.mrb[0].mxu0
  %v889 = vadd.f32 0.0, %v888
  %890 = vmatprep.mubr.f32.mxu0 0.0
  %891 = vmatmul.mubr.f32.gmra.mrb[0].mxu0 %v171
  %v892 = vpop.f32.mrb[0].mxu0
  %v893 = vadd.f32 0.0, %v892
  %v894 = vpop.f32.mrb[0].mxu0
  %v895 = vadd.f32 0.0, %v894
  %896 = vmatprep.mubr.f32.mxu0 0.0
  %897 = vmatmul.mubr.f32.gmra.mrb[0].mxu0 %v174
  %v898 = vpop.f32.mrb[0].mxu0
  %v899 = vadd.f32 0.0, %v898
  %v900 = vpop.f32.mrb[0].mxu0
  %v901 = vadd.f32 0.0, %v900
  %902 = vmatprep.mubr.f32.mxu0 0.0
  %903 = vmatmul.mubr.f32.gmra.mrb[0].mxu0 %v668
  %v904 = vpop.f32.mrb[0].mxu0
  %v905 = vadd.f32 0.0, %v904
  %v906 = vpop.f32.mrb[0].mxu0
  %v907 = vadd.f32 0.0, %v906
  %908 = vdwg.mxu0
  %v909 = vadd.f32 %v492, %v743
  %v910 = vadd.f32 %v494, %v745
  %v911 = vadd.f32 %v498, %v749
  %v912 = vadd.f32 %v500, %v751
  %v913 = vadd.f32 %v504, %v755
  %v914 = vadd.f32 %v506, %v757
  %v915 = vadd.f32 %v510, %v761
  %v916 = vadd.f32 %v512, %v763
  %v917 = vadd.f32 %v516, %v767
  %v918 = vadd.f32 %v518, %v769
  %v919 = vadd.f32 %v522, %v773
  %v920 = vadd.f32 %v524, %v775
  %v921 = vadd.f32 %v528, %v779
  %v922 = vadd.f32 %v530, %v781
  %v923 = vadd.f32 %v534, %v785
  %v924 = vadd.f32 %v536, %v787
  %v925 = vadd.f32 %v540, %v791
  %v926 = vadd.f32 %v542, %v793
  %v927 = vadd.f32 %v546, %v797
  %v928 = vadd.f32 %v548, %v799
  %v929 = vadd.f32 %v552, %v803
  %v930 = vadd.f32 %v554, %v805
  %v931 = vadd.f32 %v558, %v809
  %v932 = vadd.f32 %v560, %v811
  %v933 = vadd.f32 %v564, %v815
  %v934 = vadd.f32 %v566, %v817
  %v935 = vadd.f32 %v570, %v821
  %v936 = vadd.f32 %v572, %v823
  %v937 = vadd.f32 %v576, %v827
  %v938 = vadd.f32 %v578, %v829
  %v939 = vadd.f32 %v582, %v833
  %v940 = vadd.f32 %v584, %v835
  %v941 = vadd.f32 %v588, %v839
  %v942 = vadd.f32 %v590, %v841
  %v943 = vadd.f32 %v594, %v845
  %v944 = vadd.f32 %v596, %v847
  %v945 = vadd.f32 %v600, %v851
  %v946 = vadd.f32 %v602, %v853
  %v947 = vadd.f32 %v606, %v857
  %v948 = vadd.f32 %v608, %v859
  %v949 = vadd.f32 %v612, %v863
  %v950 = vadd.f32 %v614, %v865
  %v951 = vadd.f32 %v618, %v869
  %v952 = vadd.f32 %v620, %v871
  %v953 = vadd.f32 %v624, %v875
  %v954 = vadd.f32 %v626, %v877
  %v955 = vadd.f32 %v630, %v881
  %v956 = vadd.f32 %v632, %v883
  %v957 = vadd.f32 %v636, %v887
  %v958 = vadd.f32 %v638, %v889
  %v959 = vadd.f32 %v642, %v893
  %v960 = vadd.f32 %v644, %v895
  %v961 = vadd.f32 %v648, %v899
  %v962 = vadd.f32 %v650, %v901
  %v963 = vadd.f32 %v654, %v905
  %v964 = vadd.f32 %v656, %v907
  %v965 = vld [vmem:[%s2] sm:$0x3]
  %v967 = vlaneseq
  %v968 = vshrl.u32 %v967, 7
  %v969 = vsub.s32 0, %v968
  %v970 = vrot.slane %v965, %v969
  %v971 = vlaneseq
  %v972 = vshrl.u32 %v971, 7
  %v973 = vsub.s32 1, %v972
  %v974 = vrot.slane %v965, %v973
  %v977 = vadd.f32 %v909, %v970
  %v978 = vadd.f32 %v910, %v974
  %v979 = vadd.f32 %v911, %v970
  %v980 = vadd.f32 %v912, %v974
  %v981 = vadd.f32 %v913, %v970
  %v982 = vadd.f32 %v914, %v974
  %v983 = vadd.f32 %v915, %v970
  %v984 = vadd.f32 %v916, %v974
  %v985 = vadd.f32 %v917, %v970
  %v986 = vadd.f32 %v918, %v974
  %v987 = vadd.f32 %v919, %v970
  %v988 = vadd.f32 %v920, %v974
  %v989 = vadd.f32 %v921, %v970
  %v990 = vadd.f32 %v922, %v974
  %v991 = vadd.f32 %v923, %v970
  %v992 = vadd.f32 %v924, %v974
  %v993 = vadd.f32 %v925, %v970
  %v994 = vadd.f32 %v926, %v974
  %v995 = vadd.f32 %v927, %v970
  %v996 = vadd.f32 %v928, %v974
  %v997 = vadd.f32 %v929, %v970
  %v998 = vadd.f32 %v930, %v974
  %v999 = vadd.f32 %v931, %v970
  %v1000 = vadd.f32 %v932, %v974
  %v1001 = vadd.f32 %v933, %v970
  %v1002 = vadd.f32 %v934, %v974
  %v1003 = vadd.f32 %v935, %v970
  %v1004 = vadd.f32 %v936, %v974
  %v1005 = vadd.f32 %v937, %v970
  %v1006 = vadd.f32 %v938, %v974
  %v1007 = vadd.f32 %v939, %v970
  %v1008 = vadd.f32 %v940, %v974
  %v1009 = vadd.f32 %v941, %v970
  %v1010 = vadd.f32 %v942, %v974
  %v1011 = vadd.f32 %v943, %v970
  %v1012 = vadd.f32 %v944, %v974
  %v1013 = vadd.f32 %v945, %v970
  %v1014 = vadd.f32 %v946, %v974
  %v1015 = vadd.f32 %v947, %v970
  %v1016 = vadd.f32 %v948, %v974
  %v1017 = vadd.f32 %v949, %v970
  %v1018 = vadd.f32 %v950, %v974
  %v1019 = vadd.f32 %v951, %v970
  %v1020 = vadd.f32 %v952, %v974
  %v1021 = vadd.f32 %v953, %v970
  %v1022 = vadd.f32 %v954, %v974
  %v1023 = vadd.f32 %v955, %v970
  %v1024 = vadd.f32 %v956, %v974
  %v1025 = vadd.f32 %v957, %v970
  %v1026 = vadd.f32 %v958, %v974
  %v1027 = vadd.f32 %v959, %v970
  %v1028 = vadd.f32 %v960, %v974
  %v1029 = vadd.f32 %v961, %v970
  %v1030 = vadd.f32 %v962, %v974
  %v1031 = vadd.f32 %v963, %v970
  %v1032 = vadd.f32 %v964, %v974
  %v1033 = vmax.f32 %v977, 0.0
  %v1034 = vmax.f32 %v978, 0.0
  %v1035 = vmax.f32 %v979, 0.0
  %v1036 = vmax.f32 %v980, 0.0
  %v1037 = vmax.f32 %v981, 0.0
  %v1038 = vmax.f32 %v982, 0.0
  %v1039 = vmax.f32 %v983, 0.0
  %v1040 = vmax.f32 %v984, 0.0
  %v1041 = vmax.f32 %v985, 0.0
  %v1042 = vmax.f32 %v986, 0.0
  %v1043 = vmax.f32 %v987, 0.0
  %v1044 = vmax.f32 %v988, 0.0
  %v1045 = vmax.f32 %v989, 0.0
  %v1046 = vmax.f32 %v990, 0.0
  %v1047 = vmax.f32 %v991, 0.0
  %v1048 = vmax.f32 %v992, 0.0
  %v1049 = vmax.f32 %v993, 0.0
  %v1050 = vmax.f32 %v994, 0.0
  %v1051 = vmax.f32 %v995, 0.0
  %v1052 = vmax.f32 %v996, 0.0
  %v1053 = vmax.f32 %v997, 0.0
  %v1054 = vmax.f32 %v998, 0.0
  %v1055 = vmax.f32 %v999, 0.0
  %v1056 = vmax.f32 %v1000, 0.0
  %v1057 = vmax.f32 %v1001, 0.0
  %v1058 = vmax.f32 %v1002, 0.0
  %v1059 = vmax.f32 %v1003, 0.0
  %v1060 = vmax.f32 %v1004, 0.0
  %v1061 = vmax.f32 %v1005, 0.0
  %v1062 = vmax.f32 %v1006, 0.0
  %v1063 = vmax.f32 %v1007, 0.0
  %v1064 = vmax.f32 %v1008, 0.0
  %v1065 = vmax.f32 %v1009, 0.0
  %v1066 = vmax.f32 %v1010, 0.0
  %v1067 = vmax.f32 %v1011, 0.0
  %v1068 = vmax.f32 %v1012, 0.0
  %v1069 = vmax.f32 %v1013, 0.0
  %v1070 = vmax.f32 %v1014, 0.0
  %v1071 = vmax.f32 %v1015, 0.0
  %v1072 = vmax.f32 %v1016, 0.0
  %v1073 = vmax.f32 %v1017, 0.0
  %v1074 = vmax.f32 %v1018, 0.0
  %v1075 = vmax.f32 %v1019, 0.0
  %v1076 = vmax.f32 %v1020, 0.0
  %v1077 = vmax.f32 %v1021, 0.0
  %v1078 = vmax.f32 %v1022, 0.0
  %v1079 = vmax.f32 %v1023, 0.0
  %v1080 = vmax.f32 %v1024, 0.0
  %v1081 = vmax.f32 %v1025, 0.0
  %v1082 = vmax.f32 %v1026, 0.0
  %v1083 = vmax.f32 %v1027, 0.0
  %v1084 = vmax.f32 %v1028, 0.0
  %v1085 = vmax.f32 %v1029, 0.0
  %v1086 = vmax.f32 %v1030, 0.0
  %v1087 = vmax.f32 %v1031, 0.0
  %v1088 = vmax.f32 %v1032, 0.0
  %1145 = vrot.lane.b32.xlu0 %v1033, 122
  %v1146 = vpop.permute.xlu0 %1145
  %1147 = vrot.lane.b32.xlu0 %v1034, 122
  %v1148 = vpop.permute.xlu0 %1147
  %1149 = vrot.lane.b32.xlu0 %v1035, 122
  %v1150 = vpop.permute.xlu0 %1149
  %1151 = vrot.lane.b32.xlu0 %v1036, 122
  %v1152 = vpop.permute.xlu0 %1151
  %1153 = vrot.lane.b32.xlu0 %v1037, 122
  %v1154 = vpop.permute.xlu0 %1153
  %1155 = vrot.lane.b32.xlu0 %v1038, 122
  %v1156 = vpop.permute.xlu0 %1155
  %1157 = vrot.lane.b32.xlu0 %v1039, 122
  %v1158 = vpop.permute.xlu0 %1157
  %1159 = vrot.lane.b32.xlu0 %v1040, 122
  %v1160 = vpop.permute.xlu0 %1159
  %1161 = vrot.lane.b32.xlu0 %v1041, 122
  %v1162 = vpop.permute.xlu0 %1161
  %1163 = vrot.lane.b32.xlu0 %v1042, 122
  %v1164 = vpop.permute.xlu0 %1163
  %1165 = vrot.lane.b32.xlu0 %v1043, 122
  %v1166 = vpop.permute.xlu0 %1165
  %1167 = vrot.lane.b32.xlu0 %v1044, 122
  %v1168 = vpop.permute.xlu0 %1167
  %1169 = vrot.lane.b32.xlu0 %v1045, 122
  %v1170 = vpop.permute.xlu0 %1169
  %1171 = vrot.lane.b32.xlu0 %v1046, 122
  %v1172 = vpop.permute.xlu0 %1171
  %1173 = vrot.lane.b32.xlu0 %v1047, 122
  %v1174 = vpop.permute.xlu0 %1173
  %1175 = vrot.lane.b32.xlu0 %v1048, 122
  %v1176 = vpop.permute.xlu0 %1175
  %1177 = vrot.lane.b32.xlu0 %v1049, 122
  %v1178 = vpop.permute.xlu0 %1177
  %1179 = vrot.lane.b32.xlu0 %v1050, 122
  %v1180 = vpop.permute.xlu0 %1179
  %1181 = vrot.lane.b32.xlu0 %v1051, 122
  %v1182 = vpop.permute.xlu0 %1181
  %1183 = vrot.lane.b32.xlu0 %v1052, 122
  %v1184 = vpop.permute.xlu0 %1183
  %1185 = vrot.lane.b32.xlu0 %v1053, 122
  %v1186 = vpop.permute.xlu0 %1185
  %1187 = vrot.lane.b32.xlu0 %v1054, 122
  %v1188 = vpop.permute.xlu0 %1187
  %1189 = vrot.lane.b32.xlu0 %v1055, 122
  %v1190 = vpop.permute.xlu0 %1189
  %1191 = vrot.lane.b32.xlu0 %v1056, 122
  %v1192 = vpop.permute.xlu0 %1191
  %1193 = vrot.lane.b32.xlu0 %v1057, 122
  %v1194 = vpop.permute.xlu0 %1193
  %1195 = vrot.lane.b32.xlu0 %v1058, 122
  %v1196 = vpop.permute.xlu0 %1195
  %1197 = vrot.lane.b32.xlu0 %v1059, 122
  %v1198 = vpop.permute.xlu0 %1197
  %1199 = vrot.lane.b32.xlu0 %v1060, 122
  %v1200 = vpop.permute.xlu0 %1199
  %1201 = vrot.lane.b32.xlu0 %v1061, 122
  %v1202 = vpop.permute.xlu0 %1201
  %1203 = vrot.lane.b32.xlu0 %v1062, 122
  %v1204 = vpop.permute.xlu0 %1203
  %1205 = vrot.lane.b32.xlu0 %v1063, 122
  %v1206 = vpop.permute.xlu0 %1205
  %1207 = vrot.lane.b32.xlu0 %v1064, 122
  %v1208 = vpop.permute.xlu0 %1207
  %1209 = vrot.lane.b32.xlu0 %v1065, 122
  %v1210 = vpop.permute.xlu0 %1209
  %1211 = vrot.lane.b32.xlu0 %v1066, 122
  %v1212 = vpop.permute.xlu0 %1211
  %1213 = vrot.lane.b32.xlu0 %v1067, 122
  %v1214 = vpop.permute.xlu0 %1213
  %1215 = vrot.lane.b32.xlu0 %v1068, 122
  %v1216 = vpop.permute.xlu0 %1215
  %1217 = vrot.lane.b32.xlu0 %v1069, 122
  %v1218 = vpop.permute.xlu0 %1217
  %1219 = vrot.lane.b32.xlu0 %v1070, 122
  %v1220 = vpop.permute.xlu0 %1219
  %1221 = vrot.lane.b32.xlu0 %v1071, 122
  %v1222 = vpop.permute.xlu0 %1221
  %1223 = vrot.lane.b32.xlu0 %v1072, 122
  %v1224 = vpop.permute.xlu0 %1223
  %1225 = vrot.lane.b32.xlu0 %v1073, 122
  %v1226 = vpop.permute.xlu0 %1225
  %1227 = vrot.lane.b32.xlu0 %v1074, 122
  %v1228 = vpop.permute.xlu0 %1227
  %1229 = vrot.lane.b32.xlu0 %v1075, 122
  %v1230 = vpop.permute.xlu0 %1229
  %1231 = vrot.lane.b32.xlu0 %v1076, 122
  %v1232 = vpop.permute.xlu0 %1231
  %1233 = vrot.lane.b32.xlu0 %v1077, 122
  %v1234 = vpop.permute.xlu0 %1233
  %1235 = vrot.lane.b32.xlu0 %v1078, 122
  %v1236 = vpop.permute.xlu0 %1235
  %1237 = vrot.lane.b32.xlu0 %v1079, 122
  %v1238 = vpop.permute.xlu0 %1237
  %1239 = vrot.lane.b32.xlu0 %v1080, 122
  %v1240 = vpop.permute.xlu0 %1239
  %1241 = vrot.lane.b32.xlu0 %v1081, 122
  %v1242 = vpop.permute.xlu0 %1241
  %1243 = vrot.lane.b32.xlu0 %v1082, 122
  %v1244 = vpop.permute.xlu0 %1243
  %1245 = vrot.lane.b32.xlu0 %v1083, 122
  %v1246 = vpop.permute.xlu0 %1245
  %1247 = vrot.lane.b32.xlu0 %v1084, 122
  %v1248 = vpop.permute.xlu0 %1247
  %1249 = vrot.lane.b32.xlu0 %v1085, 122
  %v1250 = vpop.permute.xlu0 %1249
  %1251 = vrot.lane.b32.xlu0 %v1086, 122
  %v1252 = vpop.permute.xlu0 %1251
  %1253 = vrot.lane.b32.xlu0 %v1087, 122
  %v1254 = vpop.permute.xlu0 %1253
  %1255 = vrot.lane.b32.xlu0 %v1088, 122
  %v1256 = vpop.permute.xlu0 %1255
  %vm1257 = vcmask 998400
  %v1258 = vsel %vm1257, %v1146, %v1148
  %v1259 = vsel %vm1257, %v1150, %v1152
  %v1260 = vsel %vm1257, %v1154, %v1156
  %v1261 = vsel %vm1257, %v1158, %v1160
  %v1262 = vsel %vm1257, %v1162, %v1164
  %v1263 = vsel %vm1257, %v1166, %v1168
  %v1264 = vsel %vm1257, %v1170, %v1172
  %v1265 = vsel %vm1257, %v1174, %v1176
  %v1266 = vsel %vm1257, %v1178, %v1180
  %v1267 = vsel %vm1257, %v1182, %v1184
  %v1268 = vsel %vm1257, %v1186, %v1188
  %v1269 = vsel %vm1257, %v1190, %v1192
  %v1270 = vsel %vm1257, %v1194, %v1196
  %v1271 = vsel %vm1257, %v1198, %v1200
  %v1272 = vsel %vm1257, %v1202, %v1204
  %v1273 = vsel %vm1257, %v1206, %v1208
  %v1274 = vsel %vm1257, %v1210, %v1212
  %v1275 = vsel %vm1257, %v1214, %v1216
  %v1276 = vsel %vm1257, %v1218, %v1220
  %v1277 = vsel %vm1257, %v1222, %v1224
  %v1278 = vsel %vm1257, %v1226, %v1228
  %v1279 = vsel %vm1257, %v1230, %v1232
  %v1280 = vsel %vm1257, %v1234, %v1236
  %v1281 = vsel %vm1257, %v1238, %v1240
  %v1282 = vsel %vm1257, %v1242, %v1244
  %v1283 = vsel %vm1257, %v1246, %v1248
  %v1284 = vsel %vm1257, %v1250, %v1252
  %v1285 = vsel %vm1257, %v1254, %v1256
  %v1342 = vmax.f32 %v1033, %v1258
  %v1343 = vmax.f32 %v1034, %v1148
  %v1344 = vmax.f32 %v1035, %v1259
  %v1345 = vmax.f32 %v1036, %v1152
  %v1346 = vmax.f32 %v1037, %v1260
  %v1347 = vmax.f32 %v1038, %v1156
  %v1348 = vmax.f32 %v1039, %v1261
  %v1349 = vmax.f32 %v1040, %v1160
  %v1350 = vmax.f32 %v1041, %v1262
  %v1351 = vmax.f32 %v1042, %v1164
  %v1352 = vmax.f32 %v1043, %v1263
  %v1353 = vmax.f32 %v1044, %v1168
  %v1354 = vmax.f32 %v1045, %v1264
  %v1355 = vmax.f32 %v1046, %v1172
  %v1356 = vmax.f32 %v1047, %v1265
  %v1357 = vmax.f32 %v1048, %v1176
  %v1358 = vmax.f32 %v1049, %v1266
  %v1359 = vmax.f32 %v1050, %v1180
  %v1360 = vmax.f32 %v1051, %v1267
  %v1361 = vmax.f32 %v1052, %v1184
  %v1362 = vmax.f32 %v1053, %v1268
  %v1363 = vmax.f32 %v1054, %v1188
  %v1364 = vmax.f32 %v1055, %v1269
  %v1365 = vmax.f32 %v1056, %v1192
  %v1366 = vmax.f32 %v1057, %v1270
  %v1367 = vmax.f32 %v1058, %v1196
  %v1368 = vmax.f32 %v1059, %v1271
  %v1369 = vmax.f32 %v1060, %v1200
  %v1370 = vmax.f32 %v1061, %v1272
  %v1371 = vmax.f32 %v1062, %v1204
  %v1372 = vmax.f32 %v1063, %v1273
  %v1373 = vmax.f32 %v1064, %v1208
  %v1374 = vmax.f32 %v1065, %v1274
  %v1375 = vmax.f32 %v1066, %v1212
  %v1376 = vmax.f32 %v1067, %v1275
  %v1377 = vmax.f32 %v1068, %v1216
  %v1378 = vmax.f32 %v1069, %v1276
  %v1379 = vmax.f32 %v1070, %v1220
  %v1380 = vmax.f32 %v1071, %v1277
  %v1381 = vmax.f32 %v1072, %v1224
  %v1382 = vmax.f32 %v1073, %v1278
  %v1383 = vmax.f32 %v1074, %v1228
  %v1384 = vmax.f32 %v1075, %v1279
  %v1385 = vmax.f32 %v1076, %v1232
  %v1386 = vmax.f32 %v1077, %v1280
  %v1387 = vmax.f32 %v1078, %v1236
  %v1388 = vmax.f32 %v1079, %v1281
  %v1389 = vmax.f32 %v1080, %v1240
  %v1390 = vmax.f32 %v1081, %v1282
  %v1391 = vmax.f32 %v1082, %v1244
  %v1392 = vmax.f32 %v1083, %v1283
  %v1393 = vmax.f32 %v1084, %v1248
  %v1394 = vmax.f32 %v1085, %v1284
  %v1395 = vmax.f32 %v1086, %v1252
  %v1396 = vmax.f32 %v1087, %v1285
  %v1397 = vmax.f32 %v1088, %v1256
  %v1398 = vld [vmem:[%s3] sm:$0xff]
  %v1399 = vld [vmem:[%s3 + $0x8] sm:$0xff]
  %v1400 = vld [vmem:[%s3 + $0x10] sm:$0xff]
  %v1401 = vld [vmem:[%s3 + $0x18] sm:$0xff]
  %v1402 = vld [vmem:[%s3 + $0x20] sm:$0xff]
  %v1403 = vld [vmem:[%s3 + $0x28] sm:$0xff]
  %v1404 = vld [vmem:[%s3 + $0x30] sm:$0xff]
  %v1405 = vld [vmem:[%s3 + $0x38] sm:$0xff]
  %v1406 = vld [vmem:[%s3 + $0x40] sm:$0xff]
  %v1407 = vld [vmem:[%s3 + $0x48] sm:$0xff]
  %v1408 = vld [vmem:[%s3 + $0x50] sm:$0xff]
  %v1409 = vld [vmem:[%s3 + $0x58] sm:$0xff]
  %v1410 = vld [vmem:[%s3 + $0x60] sm:$0xff]
  %v1411 = vld [vmem:[%s3 + $0x68] sm:$0xff]
  %v1412 = vld [vmem:[%s3 + $0x70] sm:$0xff]
  %v1413 = vld [vmem:[%s3 + $0x78] sm:$0xff]
  %v1414 = vld [vmem:[%s3 + $0x80] sm:$0xff]
  %v1415 = vld [vmem:[%s3 + $0x88] sm:$0xff]
  %v1416 = vld [vmem:[%s3 + $0x90] sm:$0xff]
  %v1417 = vld [vmem:[%s3 + $0x98] sm:$0xff]
  %v1418 = vld [vmem:[%s3 + $0xa0] sm:$0x3]
  %vm1419 = vcmask 277504
  %v1421 = vsel %vm1419, %v1343, 0
  %v1424 = vsel %vm1419, %v1345, 0
  %v1427 = vsel %vm1419, %v1347, 0
  %v1430 = vsel %vm1419, %v1349, 0
  %v1433 = vsel %vm1419, %v1351, 0
  %v1436 = vsel %vm1419, %v1353, 0
  %v1439 = vsel %vm1419, %v1355, 0
  %v1442 = vsel %vm1419, %v1357, 0
  %v1445 = vsel %vm1419, %v1359, 0
  %v1448 = vsel %vm1419, %v1361, 0
  %v1451 = vsel %vm1419, %v1363, 0
  %v1454 = vsel %vm1419, %v1365, 0
  %v1457 = vsel %vm1419, %v1367, 0
  %v1460 = vsel %vm1419, %v1369, 0
  %v1463 = vsel %vm1419, %v1371, 0
  %v1466 = vsel %vm1419, %v1373, 0
  %v1469 = vsel %vm1419, %v1375, 0
  %v1472 = vsel %vm1419, %v1377, 0
  %v1475 = vsel %vm1419, %v1379, 0
  %v1478 = vsel %vm1419, %v1381, 0
  %v1481 = vsel %vm1419, %v1383, 0
  %v1484 = vsel %vm1419, %v1385, 0
  %v1487 = vsel %vm1419, %v1387, 0
  %v1490 = vsel %vm1419, %v1389, 0
  %v1493 = vsel %vm1419, %v1391, 0
  %v1496 = vsel %vm1419, %v1393, 0
  %v1499 = vsel %vm1419, %v1395, 0
  %v1502 = vsel %vm1419, %v1397, 0
  %vm1504 = vcmask 1041408
  %v1506 = vsel %vm1504, %v1418, 0
  %1508 = vmatprep.subr.mxu0 0.0
  %1509 = vmatpush1.msra.mxu0 %v1398
  %1510 = vmatprep.subr.mxu0 0.0
  %1511 = vmatpush1.msra.mxu0 %v1399
  %1512 = vmatprep.subr.mxu0 0.0
  %1513 = vmatpush1.msra.mxu0 %v1400
  %1514 = vmatprep.subr.mxu0 0.0
  %1515 = vmatpush1.msra.mxu0 %v1401
  %1516 = vmatprep.subr.mxu0 0.0
  %1517 = vmatpush1.msra.mxu0 %v1402
  %1518 = vmatprep.subr.mxu0 0.0
  %1519 = vmatpush1.msra.mxu0 %v1403
  %1520 = vmatprep.subr.mxu0 0.0
  %1521 = vmatpush1.msra.mxu0 %v1404
  %1522 = vmatprep.subr.mxu0 0.0
  %1523 = vmatpush1.msra.mxu0 %v1405
  %1524 = vmatprep.subr.mxu0 0.0
  %1525 = vmatpush1.msra.mxu0 %v1406
  %1526 = vmatprep.subr.mxu0 0.0
  %1527 = vmatpush1.msra.mxu0 %v1407
  %1528 = vmatprep.subr.mxu0 0.0
  %1529 = vmatpush1.msra.mxu0 %v1408
  %1530 = vmatprep.subr.mxu0 0.0
  %1531 = vmatpush1.msra.mxu0 %v1409
  %1532 = vmatprep.subr.mxu0 0.0
  %1533 = vmatpush1.msra.mxu0 %v1410
  %1534 = vmatprep.subr.mxu0 0.0
  %1535 = vmatpush1.msra.mxu0 %v1411
  %1536 = vmatprep.subr.mxu0 0.0
  %1537 = vmatpush1.msra.mxu0 %v1412
  %1538 = vmatprep.subr.mxu0 0.0
  %1539 = vmatpush1.msra.mxu0 %v1413
  %1540 = vmatprep.subr.mxu0 0.0
  %1541 = vmatpush1.msra.mxu0 %v1414
  %1542 = vmatprep.subr.mxu0 0.0
  %1543 = vmatpush1.msra.mxu0 %v1415
  %1544 = vmatprep.subr.mxu0 0.0
  %1545 = vmatpush1.msra.mxu0 %v1416
  %1546 = vmatprep.subr.mxu0 0.0
  %1547 = vmatpush1.msra.mxu0 %v1417
  %1548 = vmatprep.subr.mxu0 0.0
  %1549 = vmatpush1.msra.mxu0 %v1506
  %1550 = vmatprep.subr.mxu0 0.0
  %1551 = vmatpush1.msra.mxu0 0.0
  %1552 = vmatprep.subr.mxu0 0.0
  %1553 = vmatpush1.msra.mxu0 0.0
  %1554 = vmatprep.subr.mxu0 0.0
  %1555 = vmatpush1.msra.mxu0 0.0
  %1556 = vmatprep.subr.mxu0 0.0
  %1557 = vmatpush1.msra.mxu0 0.0
  %1558 = vmatprep.subr.mxu0 0.0
  %1559 = vmatpush1.msra.mxu0 0.0
  %1560 = vmatprep.subr.mxu0 0.0
  %1561 = vmatpush1.msra.mxu0 0.0
  %1562 = vmatprep.subr.mxu0 0.0
  %1563 = vmatpush1.msra.mxu0 0.0
  %1564 = vmatprep.subr.mxu0 0.0
  %1565 = vmatpush1.msra.mxu0 0.0
  %1566 = vmatprep.subr.mxu0 0.0
  %1567 = vmatpush1.msra.mxu0 0.0
  %1568 = vmatprep.subr.mxu0 0.0
  %1569 = vmatpush1.msra.mxu0 0.0
  %1570 = vmatprep.subr.mxu0 0.0
  %1571 = vmatpush1.msra.mxu0 0.0
  %1572 = vmatprep.mubr.f32.mxu0 %v1421
  %1573 = vmatmul.mubr.f32.gmra.mrb[0].mxu0 %v1342
  %v1574 = vpop.f32.mrb[0].mxu0
  %v1575 = vadd.f32 0.0, %v1574
  %v1576 = vpop.f32.mrb[0].mxu0
  %1577 = vmatprep.mubr.f32.mxu0 %v1424
  %1578 = vmatmul.mubr.f32.gmra.mrb[0].mxu0 %v1344
  %v1579 = vpop.f32.mrb[0].mxu0
  %v1580 = vadd.f32 0.0, %v1579
  %v1581 = vpop.f32.mrb[0].mxu0
  %1582 = vmatprep.mubr.f32.mxu0 %v1427
  %1583 = vmatmul.mubr.f32.gmra.mrb[0].mxu0 %v1346
  %v1584 = vpop.f32.mrb[0].mxu0
  %v1585 = vadd.f32 0.0, %v1584
  %v1586 = vpop.f32.mrb[0].mxu0
  %1587 = vmatprep.mubr.f32.mxu0 %v1430
  %1588 = vmatmul.mubr.f32.gmra.mrb[0].mxu0 %v1348
  %v1589 = vpop.f32.mrb[0].mxu0
  %v1590 = vadd.f32 0.0, %v1589
  %v1591 = vpop.f32.mrb[0].mxu0
  %1592 = vmatprep.mubr.f32.mxu0 %v1433
  %1593 = vmatmul.mubr.f32.gmra.mrb[0].mxu0 %v1350
  %v1594 = vpop.f32.mrb[0].mxu0
  %v1595 = vadd.f32 0.0, %v1594
  %v1596 = vpop.f32.mrb[0].mxu0
  %1597 = vmatprep.mubr.f32.mxu0 %v1436
  %1598 = vmatmul.mubr.f32.gmra.mrb[0].mxu0 %v1352
  %v1599 = vpop.f32.mrb[0].mxu0
  %v1600 = vadd.f32 0.0, %v1599
  %v1601 = vpop.f32.mrb[0].mxu0
  %1602 = vmatprep.mubr.f32.mxu0 %v1439
  %1603 = vmatmul.mubr.f32.gmra.mrb[0].mxu0 %v1354
  %v1604 = vpop.f32.mrb[0].mxu0
  %v1605 = vadd.f32 0.0, %v1604
  %v1606 = vpop.f32.mrb[0].mxu0
  %1607 = vmatprep.mubr.f32.mxu0 %v1442
  %1608 = vmatmul.mubr.f32.gmra.mrb[0].mxu0 %v1356
  %v1609 = vpop.f32.mrb[0].mxu0
  %v1610 = vadd.f32 0.0, %v1609
  %v1611 = vpop.f32.mrb[0].mxu0
  %1612 = vmatprep.mubr.f32.mxu0 %v1445
  %1613 = vmatmul.mubr.f32.gmra.mrb[0].mxu0 %v1358
  %v1614 = vpop.f32.mrb[0].mxu0
  %v1615 = vadd.f32 0.0, %v1614
  %v1616 = vpop.f32.mrb[0].mxu0
  %1617 = vmatprep.mubr.f32.mxu0 %v1448
  %1618 = vmatmul.mubr.f32.gmra.mrb[0].mxu0 %v1360
  %v1619 = vpop.f32.mrb[0].mxu0
  %v1620 = vadd.f32 0.0, %v1619
  %v1621 = vpop.f32.mrb[0].mxu0
  %1622 = vmatprep.mubr.f32.mxu0 %v1451
  %1623 = vmatmul.mubr.f32.gmra.mrb[0].mxu0 %v1362
  %v1624 = vpop.f32.mrb[0].mxu0
  %v1625 = vadd.f32 0.0, %v1624
  %v1626 = vpop.f32.mrb[0].mxu0
  %1627 = vmatprep.mubr.f32.mxu0 %v1454
  %1628 = vmatmul.mubr.f32.gmra.mrb[0].mxu0 %v1364
  %v1629 = vpop.f32.mrb[0].mxu0
  %v1630 = vadd.f32 0.0, %v1629
  %v1631 = vpop.f32.mrb[0].mxu0
  %1632 = vmatprep.mubr.f32.mxu0 %v1457
  %1633 = vmatmul.mubr.f32.gmra.mrb[0].mxu0 %v1366
  %v1634 = vpop.f32.mrb[0].mxu0
  %v1635 = vadd.f32 0.0, %v1634
  %v1636 = vpop.f32.mrb[0].mxu0
  %1637 = vmatprep.mubr.f32.mxu0 %v1460
  %1638 = vmatmul.mubr.f32.gmra.mrb[0].mxu0 %v1368
  %v1639 = vpop.f32.mrb[0].mxu0
  %v1640 = vadd.f32 0.0, %v1639
  %v1641 = vpop.f32.mrb[0].mxu0
  %1642 = vmatprep.mubr.f32.mxu0 %v1463
  %1643 = vmatmul.mubr.f32.gmra.mrb[0].mxu0 %v1370
  %v1644 = vpop.f32.mrb[0].mxu0
  %v1645 = vadd.f32 0.0, %v1644
  %v1646 = vpop.f32.mrb[0].mxu0
  %1647 = vmatprep.mubr.f32.mxu0 %v1466
  %1648 = vmatmul.mubr.f32.gmra.mrb[0].mxu0 %v1372
  %v1649 = vpop.f32.mrb[0].mxu0
  %v1650 = vadd.f32 0.0, %v1649
  %v1651 = vpop.f32.mrb[0].mxu0
  %1652 = vmatprep.mubr.f32.mxu0 %v1469
  %1653 = vmatmul.mubr.f32.gmra.mrb[0].mxu0 %v1374
  %v1654 = vpop.f32.mrb[0].mxu0
  %v1655 = vadd.f32 0.0, %v1654
  %v1656 = vpop.f32.mrb[0].mxu0
  %1657 = vmatprep.mubr.f32.mxu0 %v1472
  %1658 = vmatmul.mubr.f32.gmra.mrb[0].mxu0 %v1376
  %v1659 = vpop.f32.mrb[0].mxu0
  %v1660 = vadd.f32 0.0, %v1659
  %v1661 = vpop.f32.mrb[0].mxu0
  %1662 = vmatprep.mubr.f32.mxu0 %v1475
  %1663 = vmatmul.mubr.f32.gmra.mrb[0].mxu0 %v1378
  %v1664 = vpop.f32.mrb[0].mxu0
  %v1665 = vadd.f32 0.0, %v1664
  %v1666 = vpop.f32.mrb[0].mxu0
  %1667 = vmatprep.mubr.f32.mxu0 %v1478
  %1668 = vmatmul.mubr.f32.gmra.mrb[0].mxu0 %v1380
  %v1669 = vpop.f32.mrb[0].mxu0
  %v1670 = vadd.f32 0.0, %v1669
  %v1671 = vpop.f32.mrb[0].mxu0
  %1672 = vmatprep.mubr.f32.mxu0 %v1481
  %1673 = vmatmul.mubr.f32.gmra.mrb[0].mxu0 %v1382
  %v1674 = vpop.f32.mrb[0].mxu0
  %v1675 = vadd.f32 0.0, %v1674
  %v1676 = vpop.f32.mrb[0].mxu0
  %1677 = vmatprep.mubr.f32.mxu0 %v1484
  %1678 = vmatmul.mubr.f32.gmra.mrb[0].mxu0 %v1384
  %v1679 = vpop.f32.mrb[0].mxu0
  %v1680 = vadd.f32 0.0, %v1679
  %v1681 = vpop.f32.mrb[0].mxu0
  %1682 = vmatprep.mubr.f32.mxu0 %v1487
  %1683 = vmatmul.mubr.f32.gmra.mrb[0].mxu0 %v1386
  %v1684 = vpop.f32.mrb[0].mxu0
  %v1685 = vadd.f32 0.0, %v1684
  %v1686 = vpop.f32.mrb[0].mxu0
  %1687 = vmatprep.mubr.f32.mxu0 %v1490
  %1688 = vmatmul.mubr.f32.gmra.mrb[0].mxu0 %v1388
  %v1689 = vpop.f32.mrb[0].mxu0
  %v1690 = vadd.f32 0.0, %v1689
  %v1691 = vpop.f32.mrb[0].mxu0
  %1692 = vmatprep.mubr.f32.mxu0 %v1493
  %1693 = vmatmul.mubr.f32.gmra.mrb[0].mxu0 %v1390
  %v1694 = vpop.f32.mrb[0].mxu0
  %v1695 = vadd.f32 0.0, %v1694
  %v1696 = vpop.f32.mrb[0].mxu0
  %1697 = vmatprep.mubr.f32.mxu0 %v1496
  %1698 = vmatmul.mubr.f32.gmra.mrb[0].mxu0 %v1392
  %v1699 = vpop.f32.mrb[0].mxu0
  %v1700 = vadd.f32 0.0, %v1699
  %v1701 = vpop.f32.mrb[0].mxu0
  %1702 = vmatprep.mubr.f32.mxu0 %v1499
  %1703 = vmatmul.mubr.f32.gmra.mrb[0].mxu0 %v1394
  %v1704 = vpop.f32.mrb[0].mxu0
  %v1705 = vadd.f32 0.0, %v1704
  %v1706 = vpop.f32.mrb[0].mxu0
  %1707 = vmatprep.mubr.f32.mxu0 %v1502
  %1708 = vmatmul.mubr.f32.gmra.mrb[0].mxu0 %v1396
  %v1709 = vpop.f32.mrb[0].mxu0
  %v1710 = vadd.f32 0.0, %v1709
  %v1711 = vpop.f32.mrb[0].mxu0
  %1712 = vdwg.mxu0
  %v1713 = vmax.f32 %v1575, %v1580
  %v1714 = vmax.f32 %v1580, %v1585
  %v1715 = vmax.f32 %v1585, %v1590
  %v1716 = vmax.f32 %v1590, %v1595
  %v1717 = vmax.f32 %v1595, %v1600
  %v1718 = vmax.f32 %v1600, %v1605
  %v1719 = vmax.f32 %v1605, %v1610
  %v1720 = vmax.f32 %v1610, %v1615
  %v1721 = vmax.f32 %v1615, %v1620
  %v1722 = vmax.f32 %v1620, %v1625
  %v1723 = vmax.f32 %v1625, %v1630
  %v1724 = vmax.f32 %v1630, %v1635
  %v1725 = vmax.f32 %v1635, %v1640
  %v1726 = vmax.f32 %v1640, %v1645
  %v1727 = vmax.f32 %v1645, %v1650
  %v1728 = vmax.f32 %v1650, %v1655
  %v1729 = vmax.f32 %v1655, %v1660
  %v1730 = vmax.f32 %v1660, %v1665
  %v1731 = vmax.f32 %v1665, %v1670
  %v1732 = vmax.f32 %v1670, %v1675
  %v1733 = vmax.f32 %v1675, %v1680
  %v1734 = vmax.f32 %v1680, %v1685
  %v1735 = vmax.f32 %v1685, %v1690
  %v1736 = vmax.f32 %v1690, %v1695
  %v1737 = vmax.f32 %v1695, %v1700
  %v1738 = vmax.f32 %v1700, %v1705
  %v1739 = vmax.f32 %v1705, %v1710
  %v1740 = vld [vmem:[%s4] sm:$0xff]
  %v1741 = vld [vmem:[%s4 + $0x8] sm:$0xff]
  %v1742 = vld [vmem:[%s4 + $0x10] sm:$0xff]
  %v1743 = vld [vmem:[%s4 + $0x18] sm:$0xff]
  %v1744 = vld [vmem:[%s4 + $0x20] sm:$0xff]
  %v1745 = vld [vmem:[%s4 + $0x28] sm:$0xff]
  %v1746 = vld [vmem:[%s4 + $0x30] sm:$0xff]
  %v1747 = vld [vmem:[%s4 + $0x38] sm:$0xff]
  %v1748 = vld [vmem:[%s4 + $0x40] sm:$0xff]
  %v1749 = vld [vmem:[%s4 + $0x48] sm:$0xff]
  %v1750 = vld [vmem:[%s4 + $0x50] sm:$0xff]
  %v1751 = vld [vmem:[%s4 + $0x58] sm:$0xff]
  %v1752 = vld [vmem:[%s4 + $0x60] sm:$0xff]
  %v1753 = vld [vmem:[%s4 + $0x68] sm:$0xff]
  %v1754 = vld [vmem:[%s4 + $0x70] sm:$0xff]
  %v1755 = vld [vmem:[%s4 + $0x78] sm:$0xff]
  %v1756 = vld [vmem:[%s4 + $0x80] sm:$0xff]
  %v1757 = vld [vmem:[%s4 + $0x88] sm:$0xff]
  %v1758 = vld [vmem:[%s4 + $0x90] sm:$0xff]
  %v1759 = vld [vmem:[%s4 + $0x98] sm:$0xff]
  %v1760 = vld [vmem:[%s4 + $0xa0] sm:$0xff]
  %v1761 = vld [vmem:[%s4 + $0xa8] sm:$0xff]
  %v1762 = vld [vmem:[%s4 + $0xb0] sm:$0xff]
  %v1763 = vld [vmem:[%s4 + $0xb8] sm:$0xff]
  %v1764 = vld [vmem:[%s4 + $0xc0] sm:$0xff]
  %v1765 = vld [vmem:[%s4 + $0xc8] sm:$0xff]
  %v1766 = vld [vmem:[%s4 + $0xd0] sm:$0xff]
  %v1767 = vld [vmem:[%s4 + $0xd8] sm:$0xff]
  %vm1768 = vcmask 719872
  %v1770 = vsel %vm1768, %v1741, 0
  %v1773 = vsel %vm1768, %v1743, 0
  %v1776 = vsel %vm1768, %v1745, 0
  %v1779 = vsel %vm1768, %v1747, 0
  %v1782 = vsel %vm1768, %v1749, 0
  %v1785 = vsel %vm1768, %v1751, 0
  %v1788 = vsel %vm1768, %v1753, 0
  %v1791 = vsel %vm1768, %v1755, 0
  %v1794 = vsel %vm1768, %v1757, 0
  %v1797 = vsel %vm1768, %v1759, 0
  %v1800 = vsel %vm1768, %v1761, 0
  %v1803 = vsel %vm1768, %v1763, 0
  %v1806 = vsel %vm1768, %v1765, 0
  %v1809 = vsel %vm1768, %v1767, 0
  %1811 = vmatprep.subr.mxu0 0.0
  %1812 = vmatpush1.msra.mxu0 %v1713
  %1813 = vmatprep.subr.mxu0 0.0
  %1814 = vmatpush1.msra.mxu0 %v1714
  %1815 = vmatprep.subr.mxu0 0.0
  %1816 = vmatpush1.msra.mxu0 %v1715
  %1817 = vmatprep.subr.mxu0 0.0
  %1818 = vmatpush1.msra.mxu0 %v1716
  %1819 = vmatprep.subr.mxu0 0.0
  %1820 = vmatpush1.msra.mxu0 %v1717
  %1821 = vmatprep.subr.mxu0 0.0
  %1822 = vmatpush1.msra.mxu0 %v1718
  %1823 = vmatprep.subr.mxu0 0.0
  %1824 = vmatpush1.msra.mxu0 %v1719
  %1825 = vmatprep.subr.mxu0 0.0
  %1826 = vmatpush1.msra.mxu0 %v1720
  %1827 = vmatprep.subr.mxu0 0.0
  %1828 = vmatpush1.msra.mxu0 %v1721
  %1829 = vmatprep.subr.mxu0 0.0
  %1830 = vmatpush1.msra.mxu0 %v1722
  %1831 = vmatprep.subr.mxu0 0.0
  %1832 = vmatpush1.msra.mxu0 %v1723
  %1833 = vmatprep.subr.mxu0 0.0
  %1834 = vmatpush1.msra.mxu0 %v1724
  %1835 = vmatprep.subr.mxu0 0.0
  %1836 = vmatpush1.msra.mxu0 %v1725
  %1837 = vmatprep.subr.mxu0 0.0
  %1838 = vmatpush1.msra.mxu0 %v1726
  %1839 = vmatprep.subr.mxu0 0.0
  %1840 = vmatpush1.msra.mxu0 %v1727
  %1841 = vmatprep.subr.mxu0 0.0
  %1842 = vmatpush1.msra.mxu0 %v1728
  %1843 = vmatprep.subr.mxu0 0.0
  %1844 = vmatpush1.msra.mxu0 %v1729
  %1845 = vmatprep.subr.mxu0 0.0
  %1846 = vmatpush1.msra.mxu0 %v1730
  %1847 = vmatprep.subr.mxu0 0.0
  %1848 = vmatpush1.msra.mxu0 %v1731
  %1849 = vmatprep.subr.mxu0 0.0
  %1850 = vmatpush1.msra.mxu0 %v1732
  %1851 = vmatprep.subr.mxu0 0.0
  %1852 = vmatpush1.msra.mxu0 %v1733
  %1853 = vmatprep.subr.mxu0 0.0
  %1854 = vmatpush1.msra.mxu0 %v1734
  %1855 = vmatprep.subr.mxu0 0.0
  %1856 = vmatpush1.msra.mxu0 %v1735
  %1857 = vmatprep.subr.mxu0 0.0
  %1858 = vmatpush1.msra.mxu0 %v1736
  %1859 = vmatprep.subr.mxu0 0.0
  %1860 = vmatpush1.msra.mxu0 %v1737
  %1861 = vmatprep.subr.mxu0 0.0
  %1862 = vmatpush1.msra.mxu0 %v1738
  %1863 = vmatprep.subr.mxu0 0.0
  %1864 = vmatpush1.msra.mxu0 %v1739
  %1865 = vmatprep.subr.mxu0 0.0
  %1866 = vmatpush1.msra.mxu0 0.0
  %1867 = vmatprep.subr.mxu0 0.0
  %1868 = vmatpush1.msra.mxu0 0.0
  %1869 = vmatprep.subr.mxu0 0.0
  %1870 = vmatpush1.msra.mxu0 0.0
  %1871 = vmatprep.subr.mxu0 0.0
  %1872 = vmatpush1.msra.mxu0 0.0
  %1873 = vmatprep.subr.mxu0 0.0
  %1874 = vmatpush1.msra.mxu0 0.0
  %1875 = vmatprep.mubr.f32.mxu0 %v1770
  %1876 = vmatmul.mubr.f32.gmra.mrb[0].mxu0 %v1740
  %v1877 = vpop.f32.mrb[0].mxu0
  %v1878 = vadd.f32 0.0, %v1877
  %v1879 = vpop.f32.mrb[0].mxu0
  %1880 = vmatprep.mubr.f32.mxu0 %v1773
  %1881 = vmatmul.mubr.f32.gmra.mrb[0].mxu0 %v1742
  %v1882 = vpop.f32.mrb[0].mxu0
  %v1883 = vadd.f32 0.0, %v1882
  %v1884 = vpop.f32.mrb[0].mxu0
  %1885 = vmatprep.mubr.f32.mxu0 %v1776
  %1886 = vmatmul.mubr.f32.gmra.mrb[0].mxu0 %v1744
  %v1887 = vpop.f32.mrb[0].mxu0
  %v1888 = vadd.f32 0.0, %v1887
  %v1889 = vpop.f32.mrb[0].mxu0
  %1890 = vmatprep.mubr.f32.mxu0 %v1779
  %1891 = vmatmul.mubr.f32.gmra.mrb[0].mxu0 %v1746
  %v1892 = vpop.f32.mrb[0].mxu0
  %v1893 = vadd.f32 0.0, %v1892
  %v1894 = vpop.f32.mrb[0].mxu0
  %1895 = vmatprep.mubr.f32.mxu0 %v1782
  %1896 = vmatmul.mubr.f32.gmra.mrb[0].mxu0 %v1748
  %v1897 = vpop.f32.mrb[0].mxu0
  %v1898 = vadd.f32 0.0, %v1897
  %v1899 = vpop.f32.mrb[0].mxu0
  %1900 = vmatprep.mubr.f32.mxu0 %v1785
  %1901 = vmatmul.mubr.f32.gmra.mrb[0].mxu0 %v1750
  %v1902 = vpop.f32.mrb[0].mxu0
  %v1903 = vadd.f32 0.0, %v1902
  %v1904 = vpop.f32.mrb[0].mxu0
  %1905 = vmatprep.mubr.f32.mxu0 %v1788
  %1906 = vmatmul.mubr.f32.gmra.mrb[0].mxu0 %v1752
  %v1907 = vpop.f32.mrb[0].mxu0
  %v1908 = vadd.f32 0.0, %v1907
  %v1909 = vpop.f32.mrb[0].mxu0
  %1910 = vmatprep.mubr.f32.mxu0 %v1791
  %1911 = vmatmul.mubr.f32.gmra.mrb[0].mxu0 %v1754
  %v1912 = vpop.f32.mrb[0].mxu0
  %v1913 = vadd.f32 0.0, %v1912
  %v1914 = vpop.f32.mrb[0].mxu0
  %1915 = vmatprep.mubr.f32.mxu0 %v1794
  %1916 = vmatmul.mubr.f32.gmra.mrb[0].mxu0 %v1756
  %v1917 = vpop.f32.mrb[0].mxu0
  %v1918 = vadd.f32 0.0, %v1917
  %v1919 = vpop.f32.mrb[0].mxu0
  %1920 = vmatprep.mubr.f32.mxu0 %v1797
  %1921 = vmatmul.mubr.f32.gmra.mrb[0].mxu0 %v1758
  %v1922 = vpop.f32.mrb[0].mxu0
  %v1923 = vadd.f32 0.0, %v1922
  %v1924 = vpop.f32.mrb[0].mxu0
  %1925 = vmatprep.mubr.f32.mxu0 %v1800
  %1926 = vmatmul.mubr.f32.gmra.mrb[0].mxu0 %v1760
  %v1927 = vpop.f32.mrb[0].mxu0
  %v1928 = vadd.f32 0.0, %v1927
  %v1929 = vpop.f32.mrb[0].mxu0
  %1930 = vmatprep.mubr.f32.mxu0 %v1803
  %1931 = vmatmul.mubr.f32.gmra.mrb[0].mxu0 %v1762
  %v1932 = vpop.f32.mrb[0].mxu0
  %v1933 = vadd.f32 0.0, %v1932
  %v1934 = vpop.f32.mrb[0].mxu0
  %1935 = vmatprep.mubr.f32.mxu0 %v1806
  %1936 = vmatmul.mubr.f32.gmra.mrb[0].mxu0 %v1764
  %v1937 = vpop.f32.mrb[0].mxu0
  %v1938 = vadd.f32 0.0, %v1937
  %v1939 = vpop.f32.mrb[0].mxu0
  %1940 = vmatprep.mubr.f32.mxu0 %v1809
  %1941 = vmatmul.mubr.f32.gmra.mrb[0].mxu0 %v1766
  %v1942 = vpop.f32.mrb[0].mxu0
  %v1943 = vadd.f32 0.0, %v1942
  %v1944 = vpop.f32.mrb[0].mxu0
  %1945 = vdwg.mxu0
  %v1946 = vld [vmem:[%s5] sm:$0xff]
  %v1947 = vld [vmem:[%s5 + $0x8] sm:$0xff]
  %v1948 = vld [vmem:[%s5 + $0x10] sm:$0xff]
  %v1949 = vld [vmem:[%s5 + $0x18] sm:$0xff]
  %v1950 = vld [vmem:[%s5 + $0x20] sm:$0xff]
  %v1951 = vld [vmem:[%s5 + $0x28] sm:$0xff]
  %v1952 = vld [vmem:[%s5 + $0x30] sm:$0xff]
  %v1953 = vld [vmem:[%s5 + $0x38] sm:$0xff]
  %v1954 = vld [vmem:[%s5 + $0x40] sm:$0xff]
  %v1955 = vld [vmem:[%s5 + $0x48] sm:$0xff]
  %v1956 = vld [vmem:[%s5 + $0x50] sm:$0xff]
  %v1957 = vld [vmem:[%s5 + $0x58] sm:$0xff]
  %v1958 = vld [vmem:[%s5 + $0x60] sm:$0xff]
  %v1959 = vld [vmem:[%s5 + $0x68] sm:$0xff]
  %v1960 = vld [vmem:[%s5 + $0x70] sm:$0xff]
  %v1961 = vld [vmem:[%s5 + $0x78] sm:$0xff]
  %v1962 = vld [vmem:[%s5 + $0x80] sm:$0xff]
  %v1963 = vld [vmem:[%s5 + $0x88] sm:$0xff]
  %v1964 = vld [vmem:[%s5 + $0x90] sm:$0xff]
  %v1965 = vld [vmem:[%s5 + $0x98] sm:$0xff]
  %v1966 = vld [vmem:[%s5 + $0xa0] sm:$0xf]
  %v1967 = vld [vmem:[%s5 + $0xa8] sm:$0xf]
  %s1968 = scalar_lea.vmem %s5, 176
  %v1969 = vld [vmem:[%s1968] sm:$0xff]
  %v1970 = vld [vmem:[%s1968 + $0x8] sm:$0xff]
  %v1971 = vld [vmem:[%s1968 + $0x10] sm:$0xff]
  %v1972 = vld [vmem:[%s1968 + $0x18] sm:$0xff]
  %v1973 = vld [vmem:[%s1968 + $0x20] sm:$0xff]
  %v1974 = vld [vmem:[%s1968 + $0x28] sm:$0xff]
  %v1975 = vld [vmem:[%s1968 + $0x30] sm:$0xff]
  %v1976 = vld [vmem:[%s1968 + $0x38] sm:$0xff]
  %v1977 = vld [vmem:[%s1968 + $0x40] sm:$0xff]
  %v1978 = vld [vmem:[%s1968 + $0x48] sm:$0xff]
  %v1979 = vld [vmem:[%s1968 + $0x50] sm:$0xff]
  %v1980 = vld [vmem:[%s1968 + $0x58] sm:$0xff]
  %v1981 = vld [vmem:[%s1968 + $0x60] sm:$0xff]
  %v1982 = vld [vmem:[%s1968 + $0x68] sm:$0xff]
  %v1983 = vld [vmem:[%s1968 + $0x70] sm:$0xff]
  %v1984 = vld [vmem:[%s1968 + $0x78] sm:$0xff]
  %v1985 = vld [vmem:[%s1968 + $0x80] sm:$0xff]
  %v1986 = vld [vmem:[%s1968 + $0x88] sm:$0xff]
  %v1987 = vld [vmem:[%s1968 + $0x90] sm:$0xff]
  %v1988 = vld [vmem:[%s1968 + $0x98] sm:$0xff]
  %v1989 = vld [vmem:[%s1968 + $0xa0] sm:$0xf]
  %v1990 = vld [vmem:[%s1968 + $0xa8] sm:$0xf]
  %vm1991 = vcmask 687104
  %v1993 = vsel %vm1991, %v1883, 0
  %v1996 = vsel %vm1991, %v1888, 0
  %v1999 = vsel %vm1991, %v1893, 0
  %v2002 = vsel %vm1991, %v1898, 0
  %v2005 = vsel %vm1991, %v1903, 0
  %v2008 = vsel %vm1991, %v1908, 0
  %v2011 = vsel %vm1991, %v1913, 0
  %v2014 = vsel %vm1991, %v1918, 0
  %v2017 = vsel %vm1991, %v1923, 0
  %v2020 = vsel %vm1991, %v1928, 0
  %v2023 = vsel %vm1991, %v1933, 0
  %v2026 = vsel %vm1991, %v1938, 0
  %vm2028 = vcmask 1043456
  %v2030 = vsel %vm2028, %v1989, 0
  %v2033 = vsel %vm2028, %v1990, 0
  %2035 = vmatprep.subr.mxu0 %v1970
  %2036 = vmatpush1.msra.mxu0 %v1969
  %2037 = vmatprep.subr.mxu0 %v1972
  %2038 = vmatpush1.msra.mxu0 %v1971
  %2039 = vmatprep.subr.mxu0 %v1974
  %2040 = vmatpush1.msra.mxu0 %v1973
  %2041 = vmatprep.subr.mxu0 %v1976
  %2042 = vmatpush1.msra.mxu0 %v1975
  %2043 = vmatprep.subr.mxu0 %v1978
  %2044 = vmatpush1.msra.mxu0 %v1977
  %2045 = vmatprep.subr.mxu0 %v1980
  %2046 = vmatpush1.msra.mxu0 %v1979
  %2047 = vmatprep.subr.mxu0 %v1982
  %2048 = vmatpush1.msra.mxu0 %v1981
  %2049 = vmatprep.subr.mxu0 %v1984
  %2050 = vmatpush1.msra.mxu0 %v1983
  %2051 = vmatprep.subr.mxu0 %v1986
  %2052 = vmatpush1.msra.mxu0 %v1985
  %2053 = vmatprep.subr.mxu0 %v1988
  %2054 = vmatpush1.msra.mxu0 %v1987
  %2055 = vmatprep.subr.mxu0 %v2033
  %2056 = vmatpush1.msra.mxu0 %v2030
  %2057 = vmatprep.subr.mxu0 0.0
  %2058 = vmatpush1.msra.mxu0 0.0
  %2059 = vmatprep.subr.mxu0 0.0
  %2060 = vmatpush1.msra.mxu0 0.0
  %2061 = vmatprep.subr.mxu0 0.0
  %2062 = vmatpush1.msra.mxu0 0.0
  %2063 = vmatprep.subr.mxu0 0.0
  %2064 = vmatpush1.msra.mxu0 0.0
  %2065 = vmatprep.subr.mxu0 0.0
  %2066 = vmatpush1.msra.mxu0 0.0
  %2067 = vmatprep.subr.mxu0 0.0
  %2068 = vmatpush1.msra.mxu0 0.0
  %2069 = vmatprep.subr.mxu0 0.0
  %2070 = vmatpush1.msra.mxu0 0.0
  %2071 = vmatprep.subr.mxu0 0.0
  %2072 = vmatpush1.msra.mxu0 0.0
  %2073 = vmatprep.subr.mxu0 0.0
  %2074 = vmatpush1.msra.mxu0 0.0
  %2075 = vmatprep.subr.mxu0 0.0
  %2076 = vmatpush1.msra.mxu0 0.0
  %2077 = vmatprep.subr.mxu0 0.0
  %2078 = vmatpush1.msra.mxu0 0.0
  %2079 = vmatprep.subr.mxu0 0.0
  %2080 = vmatpush1.msra.mxu0 0.0
  %2081 = vmatprep.subr.mxu0 0.0
  %2082 = vmatpush1.msra.mxu0 0.0
  %2083 = vmatprep.subr.mxu0 0.0
  %2084 = vmatpush1.msra.mxu0 0.0
  %2085 = vmatprep.subr.mxu0 0.0
  %2086 = vmatpush1.msra.mxu0 0.0
  %2087 = vmatprep.subr.mxu0 0.0
  %2088 = vmatpush1.msra.mxu0 0.0
  %2089 = vmatprep.subr.mxu0 0.0
  %2090 = vmatpush1.msra.mxu0 0.0
  %2091 = vmatprep.subr.mxu0 0.0
  %2092 = vmatpush1.msra.mxu0 0.0
  %2093 = vmatprep.subr.mxu0 0.0
  %2094 = vmatpush1.msra.mxu0 0.0
  %2095 = vmatprep.subr.mxu0 0.0
  %2096 = vmatpush1.msra.mxu0 0.0
  %2097 = vmatprep.subr.mxu0 0.0
  %2098 = vmatpush1.msra.mxu0 0.0
  %2099 = vmatprep.mubr.f32.mxu0 0.0
  %2100 = vmatmul.mubr.f32.gmra.mrb[0].mxu0 %v1993
  %v2101 = vpop.f32.mrb[0].mxu0
  %v2102 = vadd.f32 0.0, %v2101
  %v2103 = vpop.f32.mrb[0].mxu0
  %v2104 = vadd.f32 0.0, %v2103
  %2105 = vmatprep.mubr.f32.mxu0 0.0
  %2106 = vmatmul.mubr.f32.gmra.mrb[0].mxu0 %v1996
  %v2107 = vpop.f32.mrb[0].mxu0
  %v2108 = vadd.f32 0.0, %v2107
  %v2109 = vpop.f32.mrb[0].mxu0
  %v2110 = vadd.f32 0.0, %v2109
  %2111 = vmatprep.mubr.f32.mxu0 0.0
  %2112 = vmatmul.mubr.f32.gmra.mrb[0].mxu0 %v1999
  %v2113 = vpop.f32.mrb[0].mxu0
  %v2114 = vadd.f32 0.0, %v2113
  %v2115 = vpop.f32.mrb[0].mxu0
  %v2116 = vadd.f32 0.0, %v2115
  %2117 = vmatprep.mubr.f32.mxu0 0.0
  %2118 = vmatmul.mubr.f32.gmra.mrb[0].mxu0 %v2002
  %v2119 = vpop.f32.mrb[0].mxu0
  %v2120 = vadd.f32 0.0, %v2119
  %v2121 = vpop.f32.mrb[0].mxu0
  %v2122 = vadd.f32 0.0, %v2121
  %2123 = vmatprep.mubr.f32.mxu0 0.0
  %2124 = vmatmul.mubr.f32.gmra.mrb[0].mxu0 %v2005
  %v2125 = vpop.f32.mrb[0].mxu0
  %v2126 = vadd.f32 0.0, %v2125
  %v2127 = vpop.f32.mrb[0].mxu0
  %v2128 = vadd.f32 0.0, %v2127
  %2129 = vmatprep.mubr.f32.mxu0 0.0
  %2130 = vmatmul.mubr.f32.gmra.mrb[0].mxu0 %v2008
  %v2131 = vpop.f32.mrb[0].mxu0
  %v2132 = vadd.f32 0.0, %v2131
  %v2133 = vpop.f32.mrb[0].mxu0
  %v2134 = vadd.f32 0.0, %v2133
  %2135 = vmatprep.mubr.f32.mxu0 0.0
  %2136 = vmatmul.mubr.f32.gmra.mrb[0].mxu0 %v2011
  %v2137 = vpop.f32.mrb[0].mxu0
  %v2138 = vadd.f32 0.0, %v2137
  %v2139 = vpop.f32.mrb[0].mxu0
  %v2140 = vadd.f32 0.0, %v2139
  %2141 = vmatprep.mubr.f32.mxu0 0.0
  %2142 = vmatmul.mubr.f32.gmra.mrb[0].mxu0 %v2014
  %v2143 = vpop.f32.mrb[0].mxu0
  %v2144 = vadd.f32 0.0, %v2143
  %v2145 = vpop.f32.mrb[0].mxu0
  %v2146 = vadd.f32 0.0, %v2145
  %2147 = vmatprep.mubr.f32.mxu0 0.0
  %2148 = vmatmul.mubr.f32.gmra.mrb[0].mxu0 %v2017
  %v2149 = vpop.f32.mrb[0].mxu0
  %v2150 = vadd.f32 0.0, %v2149
  %v2151 = vpop.f32.mrb[0].mxu0
  %v2152 = vadd.f32 0.0, %v2151
  %2153 = vmatprep.mubr.f32.mxu0 0.0
  %2154 = vmatmul.mubr.f32.gmra.mrb[0].mxu0 %v2020
  %v2155 = vpop.f32.mrb[0].mxu0
  %v2156 = vadd.f32 0.0, %v2155
  %v2157 = vpop.f32.mrb[0].mxu0
  %v2158 = vadd.f32 0.0, %v2157
  %2159 = vmatprep.mubr.f32.mxu0 0.0
  %2160 = vmatmul.mubr.f32.gmra.mrb[0].mxu0 %v2023
  %v2161 = vpop.f32.mrb[0].mxu0
  %v2162 = vadd.f32 0.0, %v2161
  %v2163 = vpop.f32.mrb[0].mxu0
  %v2164 = vadd.f32 0.0, %v2163
  %2165 = vmatprep.mubr.f32.mxu0 0.0
  %2166 = vmatmul.mubr.f32.gmra.mrb[0].mxu0 %v2026
  %v2167 = vpop.f32.mrb[0].mxu0
  %v2168 = vadd.f32 0.0, %v2167
  %v2169 = vpop.f32.mrb[0].mxu0
  %v2170 = vadd.f32 0.0, %v2169
  %2171 = vdwg.mxu0
  %v2173 = vsel %vm1991, %v1878, 0
  %v2176 = vsel %vm2028, %v1966, 0
  %v2179 = vsel %vm2028, %v1967, 0
  %2181 = vmatprep.subr.mxu0 %v1947
  %2182 = vmatpush1.msra.mxu0 %v1946
  %2183 = vmatprep.subr.mxu0 %v1949
  %2184 = vmatpush1.msra.mxu0 %v1948
  %2185 = vmatprep.subr.mxu0 %v1951
  %2186 = vmatpush1.msra.mxu0 %v1950
  %2187 = vmatprep.subr.mxu0 %v1953
  %2188 = vmatpush1.msra.mxu0 %v1952
  %2189 = vmatprep.subr.mxu0 %v1955
  %2190 = vmatpush1.msra.mxu0 %v1954
  %2191 = vmatprep.subr.mxu0 %v1957
  %2192 = vmatpush1.msra.mxu0 %v1956
  %2193 = vmatprep.subr.mxu0 %v1959
  %2194 = vmatpush1.msra.mxu0 %v1958
  %2195 = vmatprep.subr.mxu0 %v1961
  %2196 = vmatpush1.msra.mxu0 %v1960
  %2197 = vmatprep.subr.mxu0 %v1963
  %2198 = vmatpush1.msra.mxu0 %v1962
  %2199 = vmatprep.subr.mxu0 %v1965
  %2200 = vmatpush1.msra.mxu0 %v1964
  %2201 = vmatprep.subr.mxu0 %v2179
  %2202 = vmatpush1.msra.mxu0 %v2176
  %2203 = vmatprep.subr.mxu0 0.0
  %2204 = vmatpush1.msra.mxu0 0.0
  %2205 = vmatprep.subr.mxu0 0.0
  %2206 = vmatpush1.msra.mxu0 0.0
  %2207 = vmatprep.subr.mxu0 0.0
  %2208 = vmatpush1.msra.mxu0 0.0
  %2209 = vmatprep.subr.mxu0 0.0
  %2210 = vmatpush1.msra.mxu0 0.0
  %2211 = vmatprep.subr.mxu0 0.0
  %2212 = vmatpush1.msra.mxu0 0.0
  %2213 = vmatprep.subr.mxu0 0.0
  %2214 = vmatpush1.msra.mxu0 0.0
  %2215 = vmatprep.subr.mxu0 0.0
  %2216 = vmatpush1.msra.mxu0 0.0
  %2217 = vmatprep.subr.mxu0 0.0
  %2218 = vmatpush1.msra.mxu0 0.0
  %2219 = vmatprep.subr.mxu0 0.0
  %2220 = vmatpush1.msra.mxu0 0.0
  %2221 = vmatprep.subr.mxu0 0.0
  %2222 = vmatpush1.msra.mxu0 0.0
  %2223 = vmatprep.subr.mxu0 0.0
  %2224 = vmatpush1.msra.mxu0 0.0
  %2225 = vmatprep.subr.mxu0 0.0
  %2226 = vmatpush1.msra.mxu0 0.0
  %2227 = vmatprep.subr.mxu0 0.0
  %2228 = vmatpush1.msra.mxu0 0.0
  %2229 = vmatprep.subr.mxu0 0.0
  %2230 = vmatpush1.msra.mxu0 0.0
  %2231 = vmatprep.subr.mxu0 0.0
  %2232 = vmatpush1.msra.mxu0 0.0
  %2233 = vmatprep.subr.mxu0 0.0
  %2234 = vmatpush1.msra.mxu0 0.0
  %2235 = vmatprep.subr.mxu0 0.0
  %2236 = vmatpush1.msra.mxu0 0.0
  %2237 = vmatprep.subr.mxu0 0.0
  %2238 = vmatpush1.msra.mxu0 0.0
  %2239 = vmatprep.subr.mxu0 0.0
  %2240 = vmatpush1.msra.mxu0 0.0
  %2241 = vmatprep.subr.mxu0 0.0
  %2242 = vmatpush1.msra.mxu0 0.0
  %2243 = vmatprep.subr.mxu0 0.0
  %2244 = vmatpush1.msra.mxu0 0.0
  %2245 = vmatprep.mubr.f32.mxu0 0.0
  %2246 = vmatmul.mubr.f32.gmra.mrb[0].mxu0 %v2173
  %v2247 = vpop.f32.mrb[0].mxu0
  %v2248 = vadd.f32 %v2102, %v2247
  %v2249 = vpop.f32.mrb[0].mxu0
  %v2250 = vadd.f32 %v2104, %v2249
  %2251 = vmatprep.mubr.f32.mxu0 0.0
  %2252 = vmatmul.mubr.f32.gmra.mrb[0].mxu0 %v1993
  %v2253 = vpop.f32.mrb[0].mxu0
  %v2254 = vadd.f32 %v2108, %v2253
  %v2255 = vpop.f32.mrb[0].mxu0
  %v2256 = vadd.f32 %v2110, %v2255
  %2257 = vmatprep.mubr.f32.mxu0 0.0
  %2258 = vmatmul.mubr.f32.gmra.mrb[0].mxu0 %v1996
  %v2259 = vpop.f32.mrb[0].mxu0
  %v2260 = vadd.f32 %v2114, %v2259
  %v2261 = vpop.f32.mrb[0].mxu0
  %v2262 = vadd.f32 %v2116, %v2261
  %2263 = vmatprep.mubr.f32.mxu0 0.0
  %2264 = vmatmul.mubr.f32.gmra.mrb[0].mxu0 %v1999
  %v2265 = vpop.f32.mrb[0].mxu0
  %v2266 = vadd.f32 %v2120, %v2265
  %v2267 = vpop.f32.mrb[0].mxu0
  %v2268 = vadd.f32 %v2122, %v2267
  %2269 = vmatprep.mubr.f32.mxu0 0.0
  %2270 = vmatmul.mubr.f32.gmra.mrb[0].mxu0 %v2002
  %v2271 = vpop.f32.mrb[0].mxu0
  %v2272 = vadd.f32 %v2126, %v2271
  %v2273 = vpop.f32.mrb[0].mxu0
  %v2274 = vadd.f32 %v2128, %v2273
  %2275 = vmatprep.mubr.f32.mxu0 0.0
  %2276 = vmatmul.mubr.f32.gmra.mrb[0].mxu0 %v2005
  %v2277 = vpop.f32.mrb[0].mxu0
  %v2278 = vadd.f32 %v2132, %v2277
  %v2279 = vpop.f32.mrb[0].mxu0
  %v2280 = vadd.f32 %v2134, %v2279
  %2281 = vmatprep.mubr.f32.mxu0 0.0
  %2282 = vmatmul.mubr.f32.gmra.mrb[0].mxu0 %v2008
  %v2283 = vpop.f32.mrb[0].mxu0
  %v2284 = vadd.f32 %v2138, %v2283
  %v2285 = vpop.f32.mrb[0].mxu0
  %v2286 = vadd.f32 %v2140, %v2285
  %2287 = vmatprep.mubr.f32.mxu0 0.0
  %2288 = vmatmul.mubr.f32.gmra.mrb[0].mxu0 %v2011
  %v2289 = vpop.f32.mrb[0].mxu0
  %v2290 = vadd.f32 %v2144, %v2289
  %v2291 = vpop.f32.mrb[0].mxu0
  %v2292 = vadd.f32 %v2146, %v2291
  %2293 = vmatprep.mubr.f32.mxu0 0.0
  %2294 = vmatmul.mubr.f32.gmra.mrb[0].mxu0 %v2014
  %v2295 = vpop.f32.mrb[0].mxu0
  %v2296 = vadd.f32 %v2150, %v2295
  %v2297 = vpop.f32.mrb[0].mxu0
  %v2298 = vadd.f32 %v2152, %v2297
  %2299 = vmatprep.mubr.f32.mxu0 0.0
  %2300 = vmatmul.mubr.f32.gmra.mrb[0].mxu0 %v2017
  %v2301 = vpop.f32.mrb[0].mxu0
  %v2302 = vadd.f32 %v2156, %v2301
  %v2303 = vpop.f32.mrb[0].mxu0
  %v2304 = vadd.f32 %v2158, %v2303
  %2305 = vmatprep.mubr.f32.mxu0 0.0
  %2306 = vmatmul.mubr.f32.gmra.mrb[0].mxu0 %v2020
  %v2307 = vpop.f32.mrb[0].mxu0
  %v2308 = vadd.f32 %v2162, %v2307
  %v2309 = vpop.f32.mrb[0].mxu0
  %v2310 = vadd.f32 %v2164, %v2309
  %2311 = vmatprep.mubr.f32.mxu0 0.0
  %2312 = vmatmul.mubr.f32.gmra.mrb[0].mxu0 %v2023
  %v2313 = vpop.f32.mrb[0].mxu0
  %v2314 = vadd.f32 %v2168, %v2313
  %v2315 = vpop.f32.mrb[0].mxu0
  %v2316 = vadd.f32 %v2170, %v2315
  %2317 = vdwg.mxu0
  %s2318 = scalar_lea.vmem %s5, 352
  %v2319 = vld [vmem:[%s2318] sm:$0xff]
  %v2320 = vld [vmem:[%s2318 + $0x8] sm:$0xff]
  %v2321 = vld [vmem:[%s2318 + $0x10] sm:$0xff]
  %v2322 = vld [vmem:[%s2318 + $0x18] sm:$0xff]
  %v2323 = vld [vmem:[%s2318 + $0x20] sm:$0xff]
  %v2324 = vld [vmem:[%s2318 + $0x28] sm:$0xff]
  %v2325 = vld [vmem:[%s2318 + $0x30] sm:$0xff]
  %v2326 = vld [vmem:[%s2318 + $0x38] sm:$0xff]
  %v2327 = vld [vmem:[%s2318 + $0x40] sm:$0xff]
  %v2328 = vld [vmem:[%s2318 + $0x48] sm:$0xff]
  %v2329 = vld [vmem:[%s2318 + $0x50] sm:$0xff]
  %v2330 = vld [vmem:[%s2318 + $0x58] sm:$0xff]
  %v2331 = vld [vmem:[%s2318 + $0x60] sm:$0xff]
  %v2332 = vld [vmem:[%s2318 + $0x68] sm:$0xff]
  %v2333 = vld [vmem:[%s2318 + $0x70] sm:$0xff]
  %v2334 = vld [vmem:[%s2318 + $0x78] sm:$0xff]
  %v2335 = vld [vmem:[%s2318 + $0x80] sm:$0xff]
  %v2336 = vld [vmem:[%s2318 + $0x88] sm:$0xff]
  %v2337 = vld [vmem:[%s2318 + $0x90] sm:$0xff]
  %v2338 = vld [vmem:[%s2318 + $0x98] sm:$0xff]
  %v2339 = vld [vmem:[%s2318 + $0xa0] sm:$0xf]
  %v2340 = vld [vmem:[%s2318 + $0xa8] sm:$0xf]
  %v2342 = vsel %vm1991, %v1943, 0
  %v2345 = vsel %vm2028, %v2339, 0
  %v2348 = vsel %vm2028, %v2340, 0
  %2350 = vmatprep.subr.mxu0 %v2320
  %2351 = vmatpush1.msra.mxu0 %v2319
  %2352 = vmatprep.subr.mxu0 %v2322
  %2353 = vmatpush1.msra.mxu0 %v2321
  %2354 = vmatprep.subr.mxu0 %v2324
  %2355 = vmatpush1.msra.mxu0 %v2323
  %2356 = vmatprep.subr.mxu0 %v2326
  %2357 = vmatpush1.msra.mxu0 %v2325
  %2358 = vmatprep.subr.mxu0 %v2328
  %2359 = vmatpush1.msra.mxu0 %v2327
  %2360 = vmatprep.subr.mxu0 %v2330
  %2361 = vmatpush1.msra.mxu0 %v2329
  %2362 = vmatprep.subr.mxu0 %v2332
  %2363 = vmatpush1.msra.mxu0 %v2331
  %2364 = vmatprep.subr.mxu0 %v2334
  %2365 = vmatpush1.msra.mxu0 %v2333
  %2366 = vmatprep.subr.mxu0 %v2336
  %2367 = vmatpush1.msra.mxu0 %v2335
  %2368 = vmatprep.subr.mxu0 %v2338
  %2369 = vmatpush1.msra.mxu0 %v2337
  %2370 = vmatprep.subr.mxu0 %v2348
  %2371 = vmatpush1.msra.mxu0 %v2345
  %2372 = vmatprep.subr.mxu0 0.0
  %2373 = vmatpush1.msra.mxu0 0.0
  %2374 = vmatprep.subr.mxu0 0.0
  %2375 = vmatpush1.msra.mxu0 0.0
  %2376 = vmatprep.subr.mxu0 0.0
  %2377 = vmatpush1.msra.mxu0 0.0
  %2378 = vmatprep.subr.mxu0 0.0
  %2379 = vmatpush1.msra.mxu0 0.0
  %2380 = vmatprep.subr.mxu0 0.0
  %2381 = vmatpush1.msra.mxu0 0.0
  %2382 = vmatprep.subr.mxu0 0.0
  %2383 = vmatpush1.msra.mxu0 0.0
  %2384 = vmatprep.subr.mxu0 0.0
  %2385 = vmatpush1.msra.mxu0 0.0
  %2386 = vmatprep.subr.mxu0 0.0
  %2387 = vmatpush1.msra.mxu0 0.0
  %2388 = vmatprep.subr.mxu0 0.0
  %2389 = vmatpush1.msra.mxu0 0.0
  %2390 = vmatprep.subr.mxu0 0.0
  %2391 = vmatpush1.msra.mxu0 0.0
  %2392 = vmatprep.subr.mxu0 0.0
  %2393 = vmatpush1.msra.mxu0 0.0
  %2394 = vmatprep.subr.mxu0 0.0
  %2395 = vmatpush1.msra.mxu0 0.0
  %2396 = vmatprep.subr.mxu0 0.0
  %2397 = vmatpush1.msra.mxu0 0.0
  %2398 = vmatprep.subr.mxu0 0.0
  %2399 = vmatpush1.msra.mxu0 0.0
  %2400 = vmatprep.subr.mxu0 0.0
  %2401 = vmatpush1.msra.mxu0 0.0
  %2402 = vmatprep.subr.mxu0 0.0
  %2403 = vmatpush1.msra.mxu0 0.0
  %2404 = vmatprep.subr.mxu0 0.0
  %2405 = vmatpush1.msra.mxu0 0.0
  %2406 = vmatprep.subr.mxu0 0.0
  %2407 = vmatpush1.msra.mxu0 0.0
  %2408 = vmatprep.subr.mxu0 0.0
  %2409 = vmatpush1.msra.mxu0 0.0
  %2410 = vmatprep.subr.mxu0 0.0
  %2411 = vmatpush1.msra.mxu0 0.0
  %2412 = vmatprep.subr.mxu0 0.0
  %2413 = vmatpush1.msra.mxu0 0.0
  %2414 = vmatprep.mubr.f32.mxu0 0.0
  %2415 = vmatmul.mubr.f32.gmra.mrb[0].mxu0 %v1996
  %v2416 = vpop.f32.mrb[0].mxu0
  %v2417 = vadd.f32 0.0, %v2416
  %v2418 = vpop.f32.mrb[0].mxu0
  %v2419 = vadd.f32 0.0, %v2418
  %2420 = vmatprep.mubr.f32.mxu0 0.0
  %2421 = vmatmul.mubr.f32.gmra.mrb[0].mxu0 %v1999
  %v2422 = vpop.f32.mrb[0].mxu0
  %v2423 = vadd.f32 0.0, %v2422
  %v2424 = vpop.f32.mrb[0].mxu0
  %v2425 = vadd.f32 0.0, %v2424
  %2426 = vmatprep.mubr.f32.mxu0 0.0
  %2427 = vmatmul.mubr.f32.gmra.mrb[0].mxu0 %v2002
  %v2428 = vpop.f32.mrb[0].mxu0
  %v2429 = vadd.f32 0.0, %v2428
  %v2430 = vpop.f32.mrb[0].mxu0
  %v2431 = vadd.f32 0.0, %v2430
  %2432 = vmatprep.mubr.f32.mxu0 0.0
  %2433 = vmatmul.mubr.f32.gmra.mrb[0].mxu0 %v2005
  %v2434 = vpop.f32.mrb[0].mxu0
  %v2435 = vadd.f32 0.0, %v2434
  %v2436 = vpop.f32.mrb[0].mxu0
  %v2437 = vadd.f32 0.0, %v2436
  %2438 = vmatprep.mubr.f32.mxu0 0.0
  %2439 = vmatmul.mubr.f32.gmra.mrb[0].mxu0 %v2008
  %v2440 = vpop.f32.mrb[0].mxu0
  %v2441 = vadd.f32 0.0, %v2440
  %v2442 = vpop.f32.mrb[0].mxu0
  %v2443 = vadd.f32 0.0, %v2442
  %2444 = vmatprep.mubr.f32.mxu0 0.0
  %2445 = vmatmul.mubr.f32.gmra.mrb[0].mxu0 %v2011
  %v2446 = vpop.f32.mrb[0].mxu0
  %v2447 = vadd.f32 0.0, %v2446
  %v2448 = vpop.f32.mrb[0].mxu0
  %v2449 = vadd.f32 0.0, %v2448
  %2450 = vmatprep.mubr.f32.mxu0 0.0
  %2451 = vmatmul.mubr.f32.gmra.mrb[0].mxu0 %v2014
  %v2452 = vpop.f32.mrb[0].mxu0
  %v2453 = vadd.f32 0.0, %v2452
  %v2454 = vpop.f32.mrb[0].mxu0
  %v2455 = vadd.f32 0.0, %v2454
  %2456 = vmatprep.mubr.f32.mxu0 0.0
  %2457 = vmatmul.mubr.f32.gmra.mrb[0].mxu0 %v2017
  %v2458 = vpop.f32.mrb[0].mxu0
  %v2459 = vadd.f32 0.0, %v2458
  %v2460 = vpop.f32.mrb[0].mxu0
  %v2461 = vadd.f32 0.0, %v2460
  %2462 = vmatprep.mubr.f32.mxu0 0.0
  %2463 = vmatmul.mubr.f32.gmra.mrb[0].mxu0 %v2020
  %v2464 = vpop.f32.mrb[0].mxu0
  %v2465 = vadd.f32 0.0, %v2464
  %v2466 = vpop.f32.mrb[0].mxu0
  %v2467 = vadd.f32 0.0, %v2466
  %2468 = vmatprep.mubr.f32.mxu0 0.0
  %2469 = vmatmul.mubr.f32.gmra.mrb[0].mxu0 %v2023
  %v2470 = vpop.f32.mrb[0].mxu0
  %v2471 = vadd.f32 0.0, %v2470
  %v2472 = vpop.f32.mrb[0].mxu0
  %v2473 = vadd.f32 0.0, %v2472
  %2474 = vmatprep.mubr.f32.mxu0 0.0
  %2475 = vmatmul.mubr.f32.gmra.mrb[0].mxu0 %v2026
  %v2476 = vpop.f32.mrb[0].mxu0
  %v2477 = vadd.f32 0.0, %v2476
  %v2478 = vpop.f32.mrb[0].mxu0
  %v2479 = vadd.f32 0.0, %v2478
  %2480 = vmatprep.mubr.f32.mxu0 0.0
  %2481 = vmatmul.mubr.f32.gmra.mrb[0].mxu0 %v2342
  %v2482 = vpop.f32.mrb[0].mxu0
  %v2483 = vadd.f32 0.0, %v2482
  %v2484 = vpop.f32.mrb[0].mxu0
  %v2485 = vadd.f32 0.0, %v2484
  %2486 = vdwg.mxu0
  %v2487 = vadd.f32 %v2248, %v2417
  %v2488 = vadd.f32 %v2250, %v2419
  %v2489 = vadd.f32 %v2254, %v2423
  %v2490 = vadd.f32 %v2256, %v2425
  %v2491 = vadd.f32 %v2260, %v2429
  %v2492 = vadd.f32 %v2262, %v2431
  %v2493 = vadd.f32 %v2266, %v2435
  %v2494 = vadd.f32 %v2268, %v2437
  %v2495 = vadd.f32 %v2272, %v2441
  %v2496 = vadd.f32 %v2274, %v2443
  %v2497 = vadd.f32 %v2278, %v2447
  %v2498 = vadd.f32 %v2280, %v2449
  %v2499 = vadd.f32 %v2284, %v2453
  %v2500 = vadd.f32 %v2286, %v2455
  %v2501 = vadd.f32 %v2290, %v2459
  %v2502 = vadd.f32 %v2292, %v2461
  %v2503 = vadd.f32 %v2296, %v2465
  %v2504 = vadd.f32 %v2298, %v2467
  %v2505 = vadd.f32 %v2302, %v2471
  %v2506 = vadd.f32 %v2304, %v2473
  %v2507 = vadd.f32 %v2308, %v2477
  %v2508 = vadd.f32 %v2310, %v2479
  %v2509 = vadd.f32 %v2314, %v2483
  %v2510 = vadd.f32 %v2316, %v2485
  %v2511 = vld [vmem:[%s6] sm:$0x3]
  %v2513 = vlaneseq
  %v2514 = vshrl.u32 %v2513, 7
  %v2515 = vsub.s32 0, %v2514
  %v2516 = vrot.slane %v2511, %v2515
  %v2517 = vlaneseq
  %v2518 = vshrl.u32 %v2517, 7
  %v2519 = vsub.s32 1, %v2518
  %v2520 = vrot.slane %v2511, %v2519
  %v2523 = vadd.f32 %v2487, %v2516
  %v2524 = vadd.f32 %v2488, %v2520
  %v2525 = vadd.f32 %v2489, %v2516
  %v2526 = vadd.f32 %v2490, %v2520
  %v2527 = vadd.f32 %v2491, %v2516
  %v2528 = vadd.f32 %v2492, %v2520
  %v2529 = vadd.f32 %v2493, %v2516
  %v2530 = vadd.f32 %v2494, %v2520
  %v2531 = vadd.f32 %v2495, %v2516
  %v2532 = vadd.f32 %v2496, %v2520
  %v2533 = vadd.f32 %v2497, %v2516
  %v2534 = vadd.f32 %v2498, %v2520
  %v2535 = vadd.f32 %v2499, %v2516
  %v2536 = vadd.f32 %v2500, %v2520
  %v2537 = vadd.f32 %v2501, %v2516
  %v2538 = vadd.f32 %v2502, %v2520
  %v2539 = vadd.f32 %v2503, %v2516
  %v2540 = vadd.f32 %v2504, %v2520
  %v2541 = vadd.f32 %v2505, %v2516
  %v2542 = vadd.f32 %v2506, %v2520
  %v2543 = vadd.f32 %v2507, %v2516
  %v2544 = vadd.f32 %v2508, %v2520
  %v2545 = vadd.f32 %v2509, %v2516
  %v2546 = vadd.f32 %v2510, %v2520
  %v2547 = vmax.f32 %v2523, 0.0
  %v2548 = vmax.f32 %v2524, 0.0
  %v2549 = vmax.f32 %v2525, 0.0
  %v2550 = vmax.f32 %v2526, 0.0
  %v2551 = vmax.f32 %v2527, 0.0
  %v2552 = vmax.f32 %v2528, 0.0
  %v2553 = vmax.f32 %v2529, 0.0
  %v2554 = vmax.f32 %v2530, 0.0
  %v2555 = vmax.f32 %v2531, 0.0
  %v2556 = vmax.f32 %v2532, 0.0
  %v2557 = vmax.f32 %v2533, 0.0
  %v2558 = vmax.f32 %v2534, 0.0
  %v2559 = vmax.f32 %v2535, 0.0
  %v2560 = vmax.f32 %v2536, 0.0
  %v2561 = vmax.f32 %v2537, 0.0
  %v2562 = vmax.f32 %v2538, 0.0
  %v2563 = vmax.f32 %v2539, 0.0
  %v2564 = vmax.f32 %v2540, 0.0
  %v2565 = vmax.f32 %v2541, 0.0
  %v2566 = vmax.f32 %v2542, 0.0
  %v2567 = vmax.f32 %v2543, 0.0
  %v2568 = vmax.f32 %v2544, 0.0
  %v2569 = vmax.f32 %v2545, 0.0
  %v2570 = vmax.f32 %v2546, 0.0
  %2595 = vrot.lane.b32.xlu0 %v2547, 112
  %v2596 = vpop.permute.xlu0 %2595
  %2597 = vrot.lane.b32.xlu0 %v2548, 112
  %v2598 = vpop.permute.xlu0 %2597
  %2599 = vrot.lane.b32.xlu0 %v2549, 112
  %v2600 = vpop.permute.xlu0 %2599
  %2601 = vrot.lane.b32.xlu0 %v2550, 112
  %v2602 = vpop.permute.xlu0 %2601
  %2603 = vrot.lane.b32.xlu0 %v2551, 112
  %v2604 = vpop.permute.xlu0 %2603
  %2605 = vrot.lane.b32.xlu0 %v2552, 112
  %v2606 = vpop.permute.xlu0 %2605
  %2607 = vrot.lane.b32.xlu0 %v2553, 112
  %v2608 = vpop.permute.xlu0 %2607
  %2609 = vrot.lane.b32.xlu0 %v2554, 112
  %v2610 = vpop.permute.xlu0 %2609
  %2611 = vrot.lane.b32.xlu0 %v2555, 112
  %v2612 = vpop.permute.xlu0 %2611
  %2613 = vrot.lane.b32.xlu0 %v2556, 112
  %v2614 = vpop.permute.xlu0 %2613
  %2615 = vrot.lane.b32.xlu0 %v2557, 112
  %v2616 = vpop.permute.xlu0 %2615
  %2617 = vrot.lane.b32.xlu0 %v2558, 112
  %v2618 = vpop.permute.xlu0 %2617
  %2619 = vrot.lane.b32.xlu0 %v2559, 112
  %v2620 = vpop.permute.xlu0 %2619
  %2621 = vrot.lane.b32.xlu0 %v2560, 112
  %v2622 = vpop.permute.xlu0 %2621
  %2623 = vrot.lane.b32.xlu0 %v2561, 112
  %v2624 = vpop.permute.xlu0 %2623
  %2625 = vrot.lane.b32.xlu0 %v2562, 112
  %v2626 = vpop.permute.xlu0 %2625
  %2627 = vrot.lane.b32.xlu0 %v2563, 112
  %v2628 = vpop.permute.xlu0 %2627
  %2629 = vrot.lane.b32.xlu0 %v2564, 112
  %v2630 = vpop.permute.xlu0 %2629
  %2631 = vrot.lane.b32.xlu0 %v2565, 112
  %v2632 = vpop.permute.xlu0 %2631
  %2633 = vrot.lane.b32.xlu0 %v2566, 112
  %v2634 = vpop.permute.xlu0 %2633
  %2635 = vrot.lane.b32.xlu0 %v2567, 112
  %v2636 = vpop.permute.xlu0 %2635
  %2637 = vrot.lane.b32.xlu0 %v2568, 112
  %v2638 = vpop.permute.xlu0 %2637
  %2639 = vrot.lane.b32.xlu0 %v2569, 112
  %v2640 = vpop.permute.xlu0 %2639
  %2641 = vrot.lane.b32.xlu0 %v2570, 112
  %v2642 = vpop.permute.xlu0 %2641
  %vm2643 = vcmask 916480
  %v2644 = vsel %vm2643, %v2596, %v2598
  %v2645 = vsel %vm2643, %v2600, %v2602
  %v2646 = vsel %vm2643, %v2604, %v2606
  %v2647 = vsel %vm2643, %v2608, %v2610
  %v2648 = vsel %vm2643, %v2612, %v2614
  %v2649 = vsel %vm2643, %v2616, %v2618
  %v2650 = vsel %vm2643, %v2620, %v2622
  %v2651 = vsel %vm2643, %v2624, %v2626
  %v2652 = vsel %vm2643, %v2628, %v2630
  %v2653 = vsel %vm2643, %v2632, %v2634
  %v2654 = vsel %vm2643, %v2636, %v2638
  %v2655 = vsel %vm2643, %v2640, %v2642
  %v2680 = vmax.f32 %v2547, %v2644
  %v2681 = vmax.f32 %v2548, %v2598
  %v2682 = vmax.f32 %v2549, %v2645
  %v2683 = vmax.f32 %v2550, %v2602
  %v2684 = vmax.f32 %v2551, %v2646
  %v2685 = vmax.f32 %v2552, %v2606
  %v2686 = vmax.f32 %v2553, %v2647
  %v2687 = vmax.f32 %v2554, %v2610
  %v2688 = vmax.f32 %v2555, %v2648
  %v2689 = vmax.f32 %v2556, %v2614
  %v2690 = vmax.f32 %v2557, %v2649
  %v2691 = vmax.f32 %v2558, %v2618
  %v2692 = vmax.f32 %v2559, %v2650
  %v2693 = vmax.f32 %v2560, %v2622
  %v2694 = vmax.f32 %v2561, %v2651
  %v2695 = vmax.f32 %v2562, %v2626
  %v2696 = vmax.f32 %v2563, %v2652
  %v2697 = vmax.f32 %v2564, %v2630
  %v2698 = vmax.f32 %v2565, %v2653
  %v2699 = vmax.f32 %v2566, %v2634
  %v2700 = vmax.f32 %v2567, %v2654
  %v2701 = vmax.f32 %v2568, %v2638
  %v2702 = vmax.f32 %v2569, %v2655
  %v2703 = vmax.f32 %v2570, %v2642
  %v2704 = vld [vmem:[%s7] sm:$0xff]
  %v2705 = vld [vmem:[%s7 + $0x8] sm:$0xff]
  %v2706 = vld [vmem:[%s7 + $0x10] sm:$0xff]
  %v2707 = vld [vmem:[%s7 + $0x18] sm:$0xff]
  %v2708 = vld [vmem:[%s7 + $0x20] sm:$0xff]
  %v2709 = vld [vmem:[%s7 + $0x28] sm:$0xff]
  %v2710 = vld [vmem:[%s7 + $0x30] sm:$0xff]
  %v2711 = vld [vmem:[%s7 + $0x38] sm:$0xff]
  %v2712 = vld [vmem:[%s7 + $0x40] sm:$0xff]
  %v2713 = vld [vmem:[%s7 + $0x48] sm:$0xff]
  %v2714 = vld [vmem:[%s7 + $0x50] sm:$0xff]
  %v2715 = vld [vmem:[%s7 + $0x58] sm:$0xff]
  %v2716 = vld [vmem:[%s7 + $0x60] sm:$0xff]
  %v2717 = vld [vmem:[%s7 + $0x68] sm:$0xff]
  %v2718 = vld [vmem:[%s7 + $0x70] sm:$0xff]
  %v2719 = vld [vmem:[%s7 + $0x78] sm:$0xff]
  %v2720 = vld [vmem:[%s7 + $0x80] sm:$0xff]
  %v2721 = vld [vmem:[%s7 + $0x88] sm:$0xff]
  %v2722 = vld [vmem:[%s7 + $0x90] sm:$0xff]
  %v2723 = vld [vmem:[%s7 + $0x98] sm:$0xff]
  %v2724 = vld [vmem:[%s7 + $0xa0] sm:$0xff]
  %v2725 = vld [vmem:[%s7 + $0xa8] sm:$0xff]
  %vm2726 = vcmask 392192
  %v2728 = vsel %vm2726, %v2681, 0
  %v2731 = vsel %vm2726, %v2683, 0
  %v2734 = vsel %vm2726, %v2685, 0
  %v2737 = vsel %vm2726, %v2687, 0
  %v2740 = vsel %vm2726, %v2689, 0
  %v2743 = vsel %vm2726, %v2691, 0
  %v2746 = vsel %vm2726, %v2693, 0
  %v2749 = vsel %vm2726, %v2695, 0
  %v2752 = vsel %vm2726, %v2697, 0
  %v2755 = vsel %vm2726, %v2699, 0
  %v2758 = vsel %vm2726, %v2701, 0
  %v2761 = vsel %vm2726, %v2703, 0
  %2763 = vmatprep.subr.mxu0 0.0
  %2764 = vmatpush1.msra.mxu0 %v2704
  %2765 = vmatprep.subr.mxu0 0.0
  %2766 = vmatpush1.msra.mxu0 %v2705
  %2767 = vmatprep.subr.mxu0 0.0
  %2768 = vmatpush1.msra.mxu0 %v2706
  %2769 = vmatprep.subr.mxu0 0.0
  %2770 = vmatpush1.msra.mxu0 %v2707
  %2771 = vmatprep.subr.mxu0 0.0
  %2772 = vmatpush1.msra.mxu0 %v2708
  %2773 = vmatprep.subr.mxu0 0.0
  %2774 = vmatpush1.msra.mxu0 %v2709
  %2775 = vmatprep.subr.mxu0 0.0
  %2776 = vmatpush1.msra.mxu0 %v2710
  %2777 = vmatprep.subr.mxu0 0.0
  %2778 = vmatpush1.msra.mxu0 %v2711
  %2779 = vmatprep.subr.mxu0 0.0
  %2780 = vmatpush1.msra.mxu0 %v2712
  %2781 = vmatprep.subr.mxu0 0.0
  %2782 = vmatpush1.msra.mxu0 %v2713
  %2783 = vmatprep.subr.mxu0 0.0
  %2784 = vmatpush1.msra.mxu0 %v2714
  %2785 = vmatprep.subr.mxu0 0.0
  %2786 = vmatpush1.msra.mxu0 %v2715
  %2787 = vmatprep.subr.mxu0 0.0
  %2788 = vmatpush1.msra.mxu0 %v2716
  %2789 = vmatprep.subr.mxu0 0.0
  %2790 = vmatpush1.msra.mxu0 %v2717
  %2791 = vmatprep.subr.mxu0 0.0
  %2792 = vmatpush1.msra.mxu0 %v2718
  %2793 = vmatprep.subr.mxu0 0.0
  %2794 = vmatpush1.msra.mxu0 %v2719
  %2795 = vmatprep.subr.mxu0 0.0
  %2796 = vmatpush1.msra.mxu0 %v2720
  %2797 = vmatprep.subr.mxu0 0.0
  %2798 = vmatpush1.msra.mxu0 %v2721
  %2799 = vmatprep.subr.mxu0 0.0
  %2800 = vmatpush1.msra.mxu0 %v2722
  %2801 = vmatprep.subr.mxu0 0.0
  %2802 = vmatpush1.msra.mxu0 %v2723
  %2803 = vmatprep.subr.mxu0 0.0
  %2804 = vmatpush1.msra.mxu0 %v2724
  %2805 = vmatprep.subr.mxu0 0.0
  %2806 = vmatpush1.msra.mxu0 %v2725
  %2807 = vmatprep.subr.mxu0 0.0
  %2808 = vmatpush1.msra.mxu0 0.0
  %2809 = vmatprep.subr.mxu0 0.0
  %2810 = vmatpush1.msra.mxu0 0.0
  %2811 = vmatprep.subr.mxu0 0.0
  %2812 = vmatpush1.msra.mxu0 0.0
  %2813 = vmatprep.subr.mxu0 0.0
  %2814 = vmatpush1.msra.mxu0 0.0
  %2815 = vmatprep.subr.mxu0 0.0
  %2816 = vmatpush1.msra.mxu0 0.0
  %2817 = vmatprep.subr.mxu0 0.0
  %2818 = vmatpush1.msra.mxu0 0.0
  %2819 = vmatprep.subr.mxu0 0.0
  %2820 = vmatpush1.msra.mxu0 0.0
  %2821 = vmatprep.subr.mxu0 0.0
  %2822 = vmatpush1.msra.mxu0 0.0
  %2823 = vmatprep.subr.mxu0 0.0
  %2824 = vmatpush1.msra.mxu0 0.0
  %2825 = vmatprep.subr.mxu0 0.0
  %2826 = vmatpush1.msra.mxu0 0.0
  %2827 = vmatprep.mubr.f32.mxu0 %v2728
  %2828 = vmatmul.mubr.f32.gmra.mrb[0].mxu0 %v2680
  %v2829 = vpop.f32.mrb[0].mxu0
  %v2830 = vadd.f32 0.0, %v2829
  %v2831 = vpop.f32.mrb[0].mxu0
  %2832 = vmatprep.mubr.f32.mxu0 %v2731
  %2833 = vmatmul.mubr.f32.gmra.mrb[0].mxu0 %v2682
  %v2834 = vpop.f32.mrb[0].mxu0
  %v2835 = vadd.f32 0.0, %v2834
  %v2836 = vpop.f32.mrb[0].mxu0
  %2837 = vmatprep.mubr.f32.mxu0 %v2734
  %2838 = vmatmul.mubr.f32.gmra.mrb[0].mxu0 %v2684
  %v2839 = vpop.f32.mrb[0].mxu0
  %v2840 = vadd.f32 0.0, %v2839
  %v2841 = vpop.f32.mrb[0].mxu0
  %2842 = vmatprep.mubr.f32.mxu0 %v2737
  %2843 = vmatmul.mubr.f32.gmra.mrb[0].mxu0 %v2686
  %v2844 = vpop.f32.mrb[0].mxu0
  %v2845 = vadd.f32 0.0, %v2844
  %v2846 = vpop.f32.mrb[0].mxu0
  %2847 = vmatprep.mubr.f32.mxu0 %v2740
  %2848 = vmatmul.mubr.f32.gmra.mrb[0].mxu0 %v2688
  %v2849 = vpop.f32.mrb[0].mxu0
  %v2850 = vadd.f32 0.0, %v2849
  %v2851 = vpop.f32.mrb[0].mxu0
  %2852 = vmatprep.mubr.f32.mxu0 %v2743
  %2853 = vmatmul.mubr.f32.gmra.mrb[0].mxu0 %v2690
  %v2854 = vpop.f32.mrb[0].mxu0
  %v2855 = vadd.f32 0.0, %v2854
  %v2856 = vpop.f32.mrb[0].mxu0
  %2857 = vmatprep.mubr.f32.mxu0 %v2746
  %2858 = vmatmul.mubr.f32.gmra.mrb[0].mxu0 %v2692
  %v2859 = vpop.f32.mrb[0].mxu0
  %v2860 = vadd.f32 0.0, %v2859
  %v2861 = vpop.f32.mrb[0].mxu0
  %2862 = vmatprep.mubr.f32.mxu0 %v2749
  %2863 = vmatmul.mubr.f32.gmra.mrb[0].mxu0 %v2694
  %v2864 = vpop.f32.mrb[0].mxu0
  %v2865 = vadd.f32 0.0, %v2864
  %v2866 = vpop.f32.mrb[0].mxu0
  %2867 = vmatprep.mubr.f32.mxu0 %v2752
  %2868 = vmatmul.mubr.f32.gmra.mrb[0].mxu0 %v2696
  %v2869 = vpop.f32.mrb[0].mxu0
  %v2870 = vadd.f32 0.0, %v2869
  %v2871 = vpop.f32.mrb[0].mxu0
  %2872 = vmatprep.mubr.f32.mxu0 %v2755
  %2873 = vmatmul.mubr.f32.gmra.mrb[0].mxu0 %v2698
  %v2874 = vpop.f32.mrb[0].mxu0
  %v2875 = vadd.f32 0.0, %v2874
  %v2876 = vpop.f32.mrb[0].mxu0
  %2877 = vmatprep.mubr.f32.mxu0 %v2758
  %2878 = vmatmul.mubr.f32.gmra.mrb[0].mxu0 %v2700
  %v2879 = vpop.f32.mrb[0].mxu0
  %v2880 = vadd.f32 0.0, %v2879
  %v2881 = vpop.f32.mrb[0].mxu0
  %2882 = vmatprep.mubr.f32.mxu0 %v2761
  %2883 = vmatmul.mubr.f32.gmra.mrb[0].mxu0 %v2702
  %v2884 = vpop.f32.mrb[0].mxu0
  %v2885 = vadd.f32 0.0, %v2884
  %v2886 = vpop.f32.mrb[0].mxu0
  %2887 = vdwg.mxu0
  %v2888 = vmax.f32 %v2830, %v2835
  %v2889 = vmax.f32 %v2835, %v2840
  %v2890 = vmax.f32 %v2840, %v2845
  %v2891 = vmax.f32 %v2845, %v2850
  %v2892 = vmax.f32 %v2850, %v2855
  %v2893 = vmax.f32 %v2855, %v2860
  %v2894 = vmax.f32 %v2860, %v2865
  %v2895 = vmax.f32 %v2865, %v2870
  %v2896 = vmax.f32 %v2870, %v2875
  %v2897 = vmax.f32 %v2875, %v2880
  %v2898 = vmax.f32 %v2880, %v2885
  %v2899 = vld [vmem:[%s8] sm:$0xff]
  %v2900 = vld [vmem:[%s8 + $0x8] sm:$0xff]
  %v2901 = vld [vmem:[%s8 + $0x10] sm:$0xff]
  %v2902 = vld [vmem:[%s8 + $0x18] sm:$0xff]
  %v2903 = vld [vmem:[%s8 + $0x20] sm:$0xff]
  %v2904 = vld [vmem:[%s8 + $0x28] sm:$0xff]
  %v2906 = vsel %vm1768, %v2899, 0
  %v2909 = vsel %vm1768, %v2900, 0
  %v2912 = vsel %vm1768, %v2901, 0
  %v2915 = vsel %vm1768, %v2902, 0
  %v2918 = vsel %vm1768, %v2903, 0
  %v2921 = vsel %vm1768, %v2904, 0
  %2923 = vmatprep.subr.mxu0 0.0
  %2924 = vmatpush1.msra.mxu0 %v2888
  %2925 = vmatprep.subr.mxu0 0.0
  %2926 = vmatpush1.msra.mxu0 %v2889
  %2927 = vmatprep.subr.mxu0 0.0
  %2928 = vmatpush1.msra.mxu0 %v2890
  %2929 = vmatprep.subr.mxu0 0.0
  %2930 = vmatpush1.msra.mxu0 %v2891
  %2931 = vmatprep.subr.mxu0 0.0
  %2932 = vmatpush1.msra.mxu0 %v2892
  %2933 = vmatprep.subr.mxu0 0.0
  %2934 = vmatpush1.msra.mxu0 %v2893
  %2935 = vmatprep.subr.mxu0 0.0
  %2936 = vmatpush1.msra.mxu0 %v2894
  %2937 = vmatprep.subr.mxu0 0.0
  %2938 = vmatpush1.msra.mxu0 %v2895
  %2939 = vmatprep.subr.mxu0 0.0
  %2940 = vmatpush1.msra.mxu0 %v2896
  %2941 = vmatprep.subr.mxu0 0.0
  %2942 = vmatpush1.msra.mxu0 %v2897
  %2943 = vmatprep.subr.mxu0 0.0
  %2944 = vmatpush1.msra.mxu0 %v2898
  %2945 = vmatprep.subr.mxu0 0.0
  %2946 = vmatpush1.msra.mxu0 0.0
  %2947 = vmatprep.subr.mxu0 0.0
  %2948 = vmatpush1.msra.mxu0 0.0
  %2949 = vmatprep.subr.mxu0 0.0
  %2950 = vmatpush1.msra.mxu0 0.0
  %2951 = vmatprep.subr.mxu0 0.0
  %2952 = vmatpush1.msra.mxu0 0.0
  %2953 = vmatprep.subr.mxu0 0.0
  %2954 = vmatpush1.msra.mxu0 0.0
  %2955 = vmatprep.subr.mxu0 0.0
  %2956 = vmatpush1.msra.mxu0 0.0
  %2957 = vmatprep.subr.mxu0 0.0
  %2958 = vmatpush1.msra.mxu0 0.0
  %2959 = vmatprep.subr.mxu0 0.0
  %2960 = vmatpush1.msra.mxu0 0.0
  %2961 = vmatprep.subr.mxu0 0.0
  %2962 = vmatpush1.msra.mxu0 0.0
  %2963 = vmatprep.subr.mxu0 0.0
  %2964 = vmatpush1.msra.mxu0 0.0
  %2965 = vmatprep.subr.mxu0 0.0
  %2966 = vmatpush1.msra.mxu0 0.0
  %2967 = vmatprep.subr.mxu0 0.0
  %2968 = vmatpush1.msra.mxu0 0.0
  %2969 = vmatprep.subr.mxu0 0.0
  %2970 = vmatpush1.msra.mxu0 0.0
  %2971 = vmatprep.subr.mxu0 0.0
  %2972 = vmatpush1.msra.mxu0 0.0
  %2973 = vmatprep.subr.mxu0 0.0
  %2974 = vmatpush1.msra.mxu0 0.0
  %2975 = vmatprep.subr.mxu0 0.0
  %2976 = vmatpush1.msra.mxu0 0.0
  %2977 = vmatprep.subr.mxu0 0.0
  %2978 = vmatpush1.msra.mxu0 0.0
  %2979 = vmatprep.subr.mxu0 0.0
  %2980 = vmatpush1.msra.mxu0 0.0
  %2981 = vmatprep.subr.mxu0 0.0
  %2982 = vmatpush1.msra.mxu0 0.0
  %2983 = vmatprep.subr.mxu0 0.0
  %2984 = vmatpush1.msra.mxu0 0.0
  %2985 = vmatprep.subr.mxu0 0.0
  %2986 = vmatpush1.msra.mxu0 0.0
  %2987 = vmatprep.mubr.f32.mxu0 0.0
  %2988 = vmatmul.mubr.f32.gmra.mrb[0].mxu0 %v2906
  %v2989 = vpop.f32.mrb[0].mxu0
  %v2990 = vadd.f32 0.0, %v2989
  %v2991 = vpop.f32.mrb[0].mxu0
  %2992 = vmatprep.mubr.f32.mxu0 0.0
  %2993 = vmatmul.mubr.f32.gmra.mrb[0].mxu0 %v2909
  %v2994 = vpop.f32.mrb[0].mxu0
  %v2995 = vadd.f32 0.0, %v2994
  %v2996 = vpop.f32.mrb[0].mxu0
  %2997 = vmatprep.mubr.f32.mxu0 0.0
  %2998 = vmatmul.mubr.f32.gmra.mrb[0].mxu0 %v2912
  %v2999 = vpop.f32.mrb[0].mxu0
  %v3000 = vadd.f32 0.0, %v2999
  %v3001 = vpop.f32.mrb[0].mxu0
  %3002 = vmatprep.mubr.f32.mxu0 0.0
  %3003 = vmatmul.mubr.f32.gmra.mrb[0].mxu0 %v2915
  %v3004 = vpop.f32.mrb[0].mxu0
  %v3005 = vadd.f32 0.0, %v3004
  %v3006 = vpop.f32.mrb[0].mxu0
  %3007 = vmatprep.mubr.f32.mxu0 0.0
  %3008 = vmatmul.mubr.f32.gmra.mrb[0].mxu0 %v2918
  %v3009 = vpop.f32.mrb[0].mxu0
  %v3010 = vadd.f32 0.0, %v3009
  %v3011 = vpop.f32.mrb[0].mxu0
  %3012 = vmatprep.mubr.f32.mxu0 0.0
  %3013 = vmatmul.mubr.f32.gmra.mrb[0].mxu0 %v2921
  %v3014 = vpop.f32.mrb[0].mxu0
  %v3015 = vadd.f32 0.0, %v3014
  %v3016 = vpop.f32.mrb[0].mxu0
  %3017 = vdwg.mxu0
  %v3018 = vld [vmem:[%s9] sm:$0xff]
  %v3019 = vld [vmem:[%s9 + $0x8] sm:$0xff]
  %v3020 = vld [vmem:[%s9 + $0x10] sm:$0xff]
  %v3021 = vld [vmem:[%s9 + $0x18] sm:$0xff]
  %v3022 = vld [vmem:[%s9 + $0x20] sm:$0xff]
  %v3023 = vld [vmem:[%s9 + $0x28] sm:$0xff]
  %v3024 = vld [vmem:[%s9 + $0x30] sm:$0xff]
  %v3025 = vld [vmem:[%s9 + $0x38] sm:$0xff]
  %v3026 = vld [vmem:[%s9 + $0x40] sm:$0xff]
  %v3027 = vld [vmem:[%s9 + $0x48] sm:$0xff]
  %v3028 = vld [vmem:[%s9 + $0x50] sm:$0xff]
  %v3029 = vld [vmem:[%s9 + $0x58] sm:$0xff]
  %s3030 = scalar_lea.vmem %s9, 96
  %v3031 = vld [vmem:[%s3030] sm:$0xff]
  %v3032 = vld [vmem:[%s3030 + $0x8] sm:$0xff]
  %v3033 = vld [vmem:[%s3030 + $0x10] sm:$0xff]
  %v3034 = vld [vmem:[%s3030 + $0x18] sm:$0xff]
  %v3035 = vld [vmem:[%s3030 + $0x20] sm:$0xff]
  %v3036 = vld [vmem:[%s3030 + $0x28] sm:$0xff]
  %v3037 = vld [vmem:[%s3030 + $0x30] sm:$0xff]
  %v3038 = vld [vmem:[%s3030 + $0x38] sm:$0xff]
  %v3039 = vld [vmem:[%s3030 + $0x40] sm:$0xff]
  %v3040 = vld [vmem:[%s3030 + $0x48] sm:$0xff]
  %v3041 = vld [vmem:[%s3030 + $0x50] sm:$0xff]
  %v3042 = vld [vmem:[%s3030 + $0x58] sm:$0xff]
  %vm3043 = vcmask 785408
  %v3045 = vsel %vm3043, %v2995, 0
  %3047 = vmatprep.subr.mxu0 0.0
  %3048 = vmatpush1.msra.mxu0 %v3031
  %3049 = vmatprep.subr.mxu0 0.0
  %3050 = vmatpush1.msra.mxu0 %v3032
  %3051 = vmatprep.subr.mxu0 0.0
  %3052 = vmatpush1.msra.mxu0 %v3033
  %3053 = vmatprep.subr.mxu0 0.0
  %3054 = vmatpush1.msra.mxu0 %v3034
  %3055 = vmatprep.subr.mxu0 0.0
  %3056 = vmatpush1.msra.mxu0 %v3035
  %3057 = vmatprep.subr.mxu0 0.0
  %3058 = vmatpush1.msra.mxu0 %v3036
  %3059 = vmatprep.subr.mxu0 0.0
  %3060 = vmatpush1.msra.mxu0 %v3037
  %3061 = vmatprep.subr.mxu0 0.0
  %3062 = vmatpush1.msra.mxu0 %v3038
  %3063 = vmatprep.subr.mxu0 0.0
  %3064 = vmatpush1.msra.mxu0 %v3039
  %3065 = vmatprep.subr.mxu0 0.0
  %3066 = vmatpush1.msra.mxu0 %v3040
  %3067 = vmatprep.subr.mxu0 0.0
  %3068 = vmatpush1.msra.mxu0 %v3041
  %3069 = vmatprep.subr.mxu0 0.0
  %3070 = vmatpush1.msra.mxu0 %v3042
  %3071 = vmatprep.subr.mxu0 0.0
  %3072 = vmatpush1.msra.mxu0 0.0
  %3073 = vmatprep.subr.mxu0 0.0
  %3074 = vmatpush1.msra.mxu0 0.0
  %3075 = vmatprep.subr.mxu0 0.0
  %3076 = vmatpush1.msra.mxu0 0.0
  %3077 = vmatprep.subr.mxu0 0.0
  %3078 = vmatpush1.msra.mxu0 0.0
  %3079 = vmatprep.subr.mxu0 0.0
  %3080 = vmatpush1.msra.mxu0 0.0
  %3081 = vmatprep.subr.mxu0 0.0
  %3082 = vmatpush1.msra.mxu0 0.0
  %3083 = vmatprep.subr.mxu0 0.0
  %3084 = vmatpush1.msra.mxu0 0.0
  %3085 = vmatprep.subr.mxu0 0.0
  %3086 = vmatpush1.msra.mxu0 0.0
  %3087 = vmatprep.subr.mxu0 0.0
  %3088 = vmatpush1.msra.mxu0 0.0
  %3089 = vmatprep.subr.mxu0 0.0
  %3090 = vmatpush1.msra.mxu0 0.0
  %3091 = vmatprep.subr.mxu0 0.0
  %3092 = vmatpush1.msra.mxu0 0.0
  %3093 = vmatprep.subr.mxu0 0.0
  %3094 = vmatpush1.msra.mxu0 0.0
  %3095 = vmatprep.subr.mxu0 0.0
  %3096 = vmatpush1.msra.mxu0 0.0
  %3097 = vmatprep.subr.mxu0 0.0
  %3098 = vmatpush1.msra.mxu0 0.0
  %3099 = vmatprep.subr.mxu0 0.0
  %3100 = vmatpush1.msra.mxu0 0.0
  %3101 = vmatprep.subr.mxu0 0.0
  %3102 = vmatpush1.msra.mxu0 0.0
  %3103 = vmatprep.subr.mxu0 0.0
  %3104 = vmatpush1.msra.mxu0 0.0
  %3105 = vmatprep.subr.mxu0 0.0
  %3106 = vmatpush1.msra.mxu0 0.0
  %3107 = vmatprep.subr.mxu0 0.0
  %3108 = vmatpush1.msra.mxu0 0.0
  %3109 = vmatprep.subr.mxu0 0.0
  %3110 = vmatpush1.msra.mxu0 0.0
  %3111 = vmatprep.mubr.f32.mxu0 0.0
  %3112 = vmatmul.mubr.f32.gmra.mrb[0].mxu0 %v3045
  %v3113 = vpop.f32.mrb[0].mxu0
  %v3114 = vadd.f32 0.0, %v3113
  %v3115 = vpop.f32.mrb[0].mxu0
  %3116 = vdwg.mxu0
  %v3118 = vsel %vm3043, %v2990, 0
  %3120 = vmatprep.subr.mxu0 0.0
  %3121 = vmatpush1.msra.mxu0 %v3018
  %3122 = vmatprep.subr.mxu0 0.0
  %3123 = vmatpush1.msra.mxu0 %v3019
  %3124 = vmatprep.subr.mxu0 0.0
  %3125 = vmatpush1.msra.mxu0 %v3020
  %3126 = vmatprep.subr.mxu0 0.0
  %3127 = vmatpush1.msra.mxu0 %v3021
  %3128 = vmatprep.subr.mxu0 0.0
  %3129 = vmatpush1.msra.mxu0 %v3022
  %3130 = vmatprep.subr.mxu0 0.0
  %3131 = vmatpush1.msra.mxu0 %v3023
  %3132 = vmatprep.subr.mxu0 0.0
  %3133 = vmatpush1.msra.mxu0 %v3024
  %3134 = vmatprep.subr.mxu0 0.0
  %3135 = vmatpush1.msra.mxu0 %v3025
  %3136 = vmatprep.subr.mxu0 0.0
  %3137 = vmatpush1.msra.mxu0 %v3026
  %3138 = vmatprep.subr.mxu0 0.0
  %3139 = vmatpush1.msra.mxu0 %v3027
  %3140 = vmatprep.subr.mxu0 0.0
  %3141 = vmatpush1.msra.mxu0 %v3028
  %3142 = vmatprep.subr.mxu0 0.0
  %3143 = vmatpush1.msra.mxu0 %v3029
  %3144 = vmatprep.subr.mxu0 0.0
  %3145 = vmatpush1.msra.mxu0 0.0
  %3146 = vmatprep.subr.mxu0 0.0
  %3147 = vmatpush1.msra.mxu0 0.0
  %3148 = vmatprep.subr.mxu0 0.0
  %3149 = vmatpush1.msra.mxu0 0.0
  %3150 = vmatprep.subr.mxu0 0.0
  %3151 = vmatpush1.msra.mxu0 0.0
  %3152 = vmatprep.subr.mxu0 0.0
  %3153 = vmatpush1.msra.mxu0 0.0
  %3154 = vmatprep.subr.mxu0 0.0
  %3155 = vmatpush1.msra.mxu0 0.0
  %3156 = vmatprep.subr.mxu0 0.0
  %3157 = vmatpush1.msra.mxu0 0.0
  %3158 = vmatprep.subr.mxu0 0.0
  %3159 = vmatpush1.msra.mxu0 0.0
  %3160 = vmatprep.subr.mxu0 0.0
  %3161 = vmatpush1.msra.mxu0 0.0
  %3162 = vmatprep.subr.mxu0 0.0
  %3163 = vmatpush1.msra.mxu0 0.0
  %3164 = vmatprep.subr.mxu0 0.0
  %3165 = vmatpush1.msra.mxu0 0.0
  %3166 = vmatprep.subr.mxu0 0.0
  %3167 = vmatpush1.msra.mxu0 0.0
  %3168 = vmatprep.subr.mxu0 0.0
  %3169 = vmatpush1.msra.mxu0 0.0
  %3170 = vmatprep.subr.mxu0 0.0
  %3171 = vmatpush1.msra.mxu0 0.0
  %3172 = vmatprep.subr.mxu0 0.0
  %3173 = vmatpush1.msra.mxu0 0.0
  %3174 = vmatprep.subr.mxu0 0.0
  %3175 = vmatpush1.msra.mxu0 0.0
  %3176 = vmatprep.subr.mxu0 0.0
  %3177 = vmatpush1.msra.mxu0 0.0
  %3178 = vmatprep.subr.mxu0 0.0
  %3179 = vmatpush1.msra.mxu0 0.0
  %3180 = vmatprep.subr.mxu0 0.0
  %3181 = vmatpush1.msra.mxu0 0.0
  %3182 = vmatprep.subr.mxu0 0.0
  %3183 = vmatpush1.msra.mxu0 0.0
  %3184 = vmatprep.mubr.f32.mxu0 0.0
  %3185 = vmatmul.mubr.f32.gmra.mrb[0].mxu0 %v3118
  %v3186 = vpop.f32.mrb[0].mxu0
  %v3187 = vadd.f32 %v3114, %v3186
  %v3188 = vpop.f32.mrb[0].mxu0
  %3189 = vdwg.mxu0
  %s3190 = scalar_lea.vmem %s9, 192
  %v3191 = vld [vmem:[%s3190] sm:$0xff]
  %v3192 = vld [vmem:[%s3190 + $0x8] sm:$0xff]
  %v3193 = vld [vmem:[%s3190 + $0x10] sm:$0xff]
  %v3194 = vld [vmem:[%s3190 + $0x18] sm:$0xff]
  %v3195 = vld [vmem:[%s3190 + $0x20] sm:$0xff]
  %v3196 = vld [vmem:[%s3190 + $0x28] sm:$0xff]
  %v3197 = vld [vmem:[%s3190 + $0x30] sm:$0xff]
  %v3198 = vld [vmem:[%s3190 + $0x38] sm:$0xff]
  %v3199 = vld [vmem:[%s3190 + $0x40] sm:$0xff]
  %v3200 = vld [vmem:[%s3190 + $0x48] sm:$0xff]
  %v3201 = vld [vmem:[%s3190 + $0x50] sm:$0xff]
  %v3202 = vld [vmem:[%s3190 + $0x58] sm:$0xff]
  %v3204 = vsel %vm3043, %v3000, 0
  %3206 = vmatprep.subr.mxu0 0.0
  %3207 = vmatpush1.msra.mxu0 %v3191
  %3208 = vmatprep.subr.mxu0 0.0
  %3209 = vmatpush1.msra.mxu0 %v3192
  %3210 = vmatprep.subr.mxu0 0.0
  %3211 = vmatpush1.msra.mxu0 %v3193
  %3212 = vmatprep.subr.mxu0 0.0
  %3213 = vmatpush1.msra.mxu0 %v3194
  %3214 = vmatprep.subr.mxu0 0.0
  %3215 = vmatpush1.msra.mxu0 %v3195
  %3216 = vmatprep.subr.mxu0 0.0
  %3217 = vmatpush1.msra.mxu0 %v3196
  %3218 = vmatprep.subr.mxu0 0.0
  %3219 = vmatpush1.msra.mxu0 %v3197
  %3220 = vmatprep.subr.mxu0 0.0
  %3221 = vmatpush1.msra.mxu0 %v3198
  %3222 = vmatprep.subr.mxu0 0.0
  %3223 = vmatpush1.msra.mxu0 %v3199
  %3224 = vmatprep.subr.mxu0 0.0
  %3225 = vmatpush1.msra.mxu0 %v3200
  %3226 = vmatprep.subr.mxu0 0.0
  %3227 = vmatpush1.msra.mxu0 %v3201
  %3228 = vmatprep.subr.mxu0 0.0
  %3229 = vmatpush1.msra.mxu0 %v3202
  %3230 = vmatprep.subr.mxu0 0.0
  %3231 = vmatpush1.msra.mxu0 0.0
  %3232 = vmatprep.subr.mxu0 0.0
  %3233 = vmatpush1.msra.mxu0 0.0
  %3234 = vmatprep.subr.mxu0 0.0
  %3235 = vmatpush1.msra.mxu0 0.0
  %3236 = vmatprep.subr.mxu0 0.0
  %3237 = vmatpush1.msra.mxu0 0.0
  %3238 = vmatprep.subr.mxu0 0.0
  %3239 = vmatpush1.msra.mxu0 0.0
  %3240 = vmatprep.subr.mxu0 0.0
  %3241 = vmatpush1.msra.mxu0 0.0
  %3242 = vmatprep.subr.mxu0 0.0
  %3243 = vmatpush1.msra.mxu0 0.0
  %3244 = vmatprep.subr.mxu0 0.0
  %3245 = vmatpush1.msra.mxu0 0.0
  %3246 = vmatprep.subr.mxu0 0.0
  %3247 = vmatpush1.msra.mxu0 0.0
  %3248 = vmatprep.subr.mxu0 0.0
  %3249 = vmatpush1.msra.mxu0 0.0
  %3250 = vmatprep.subr.mxu0 0.0
  %3251 = vmatpush1.msra.mxu0 0.0
  %3252 = vmatprep.subr.mxu0 0.0
  %3253 = vmatpush1.msra.mxu0 0.0
  %3254 = vmatprep.subr.mxu0 0.0
  %3255 = vmatpush1.msra.mxu0 0.0
  %3256 = vmatprep.subr.mxu0 0.0
  %3257 = vmatpush1.msra.mxu0 0.0
  %3258 = vmatprep.subr.mxu0 0.0
  %3259 = vmatpush1.msra.mxu0 0.0
  %3260 = vmatprep.subr.mxu0 0.0
  %3261 = vmatpush1.msra.mxu0 0.0
  %3262 = vmatprep.subr.mxu0 0.0
  %3263 = vmatpush1.msra.mxu0 0.0
  %3264 = vmatprep.subr.mxu0 0.0
  %3265 = vmatpush1.msra.mxu0 0.0
  %3266 = vmatprep.subr.mxu0 0.0
  %3267 = vmatpush1.msra.mxu0 0.0
  %3268 = vmatprep.subr.mxu0 0.0
  %3269 = vmatpush1.msra.mxu0 0.0
  %3270 = vmatprep.mubr.f32.mxu0 0.0
  %3271 = vmatmul.mubr.f32.gmra.mrb[0].mxu0 %v3204
  %v3272 = vpop.f32.mrb[0].mxu0
  %v3273 = vadd.f32 0.0, %v3272
  %v3274 = vpop.f32.mrb[0].mxu0
  %3275 = vdwg.mxu0
  %v3276 = vadd.f32 %v3187, %v3273
  %s3277 = scalar_lea.vmem %s9, 288
  %v3278 = vld [vmem:[%s3277] sm:$0xff]
  %v3279 = vld [vmem:[%s3277 + $0x8] sm:$0xff]
  %v3280 = vld [vmem:[%s3277 + $0x10] sm:$0xff]
  %v3281 = vld [vmem:[%s3277 + $0x18] sm:$0xff]
  %v3282 = vld [vmem:[%s3277 + $0x20] sm:$0xff]
  %v3283 = vld [vmem:[%s3277 + $0x28] sm:$0xff]
  %v3284 = vld [vmem:[%s3277 + $0x30] sm:$0xff]
  %v3285 = vld [vmem:[%s3277 + $0x38] sm:$0xff]
  %v3286 = vld [vmem:[%s3277 + $0x40] sm:$0xff]
  %v3287 = vld [vmem:[%s3277 + $0x48] sm:$0xff]
  %v3288 = vld [vmem:[%s3277 + $0x50] sm:$0xff]
  %v3289 = vld [vmem:[%s3277 + $0x58] sm:$0xff]
  %v3291 = vsel %vm3043, %v3005, 0
  %3293 = vmatprep.subr.mxu0 0.0
  %3294 = vmatpush1.msra.mxu0 %v3278
  %3295 = vmatprep.subr.mxu0 0.0
  %3296 = vmatpush1.msra.mxu0 %v3279
  %3297 = vmatprep.subr.mxu0 0.0
  %3298 = vmatpush1.msra.mxu0 %v3280
  %3299 = vmatprep.subr.mxu0 0.0
  %3300 = vmatpush1.msra.mxu0 %v3281
  %3301 = vmatprep.subr.mxu0 0.0
  %3302 = vmatpush1.msra.mxu0 %v3282
  %3303 = vmatprep.subr.mxu0 0.0
  %3304 = vmatpush1.msra.mxu0 %v3283
  %3305 = vmatprep.subr.mxu0 0.0
  %3306 = vmatpush1.msra.mxu0 %v3284
  %3307 = vmatprep.subr.mxu0 0.0
  %3308 = vmatpush1.msra.mxu0 %v3285
  %3309 = vmatprep.subr.mxu0 0.0
  %3310 = vmatpush1.msra.mxu0 %v3286
  %3311 = vmatprep.subr.mxu0 0.0
  %3312 = vmatpush1.msra.mxu0 %v3287
  %3313 = vmatprep.subr.mxu0 0.0
  %3314 = vmatpush1.msra.mxu0 %v3288
  %3315 = vmatprep.subr.mxu0 0.0
  %3316 = vmatpush1.msra.mxu0 %v3289
  %3317 = vmatprep.subr.mxu0 0.0
  %3318 = vmatpush1.msra.mxu0 0.0
  %3319 = vmatprep.subr.mxu0 0.0
  %3320 = vmatpush1.msra.mxu0 0.0
  %3321 = vmatprep.subr.mxu0 0.0
  %3322 = vmatpush1.msra.mxu0 0.0
  %3323 = vmatprep.subr.mxu0 0.0
  %3324 = vmatpush1.msra.mxu0 0.0
  %3325 = vmatprep.subr.mxu0 0.0
  %3326 = vmatpush1.msra.mxu0 0.0
  %3327 = vmatprep.subr.mxu0 0.0
  %3328 = vmatpush1.msra.mxu0 0.0
  %3329 = vmatprep.subr.mxu0 0.0
  %3330 = vmatpush1.msra.mxu0 0.0
  %3331 = vmatprep.subr.mxu0 0.0
  %3332 = vmatpush1.msra.mxu0 0.0
  %3333 = vmatprep.subr.mxu0 0.0
  %3334 = vmatpush1.msra.mxu0 0.0
  %3335 = vmatprep.subr.mxu0 0.0
  %3336 = vmatpush1.msra.mxu0 0.0
  %3337 = vmatprep.subr.mxu0 0.0
  %3338 = vmatpush1.msra.mxu0 0.0
  %3339 = vmatprep.subr.mxu0 0.0
  %3340 = vmatpush1.msra.mxu0 0.0
  %3341 = vmatprep.subr.mxu0 0.0
  %3342 = vmatpush1.msra.mxu0 0.0
  %3343 = vmatprep.subr.mxu0 0.0
  %3344 = vmatpush1.msra.mxu0 0.0
  %3345 = vmatprep.subr.mxu0 0.0
  %3346 = vmatpush1.msra.mxu0 0.0
  %3347 = vmatprep.subr.mxu0 0.0
  %3348 = vmatpush1.msra.mxu0 0.0
  %3349 = vmatprep.subr.mxu0 0.0
  %3350 = vmatpush1.msra.mxu0 0.0
  %3351 = vmatprep.subr.mxu0 0.0
  %3352 = vmatpush1.msra.mxu0 0.0
  %3353 = vmatprep.subr.mxu0 0.0
  %3354 = vmatpush1.msra.mxu0 0.0
  %3355 = vmatprep.subr.mxu0 0.0
  %3356 = vmatpush1.msra.mxu0 0.0
  %3357 = vmatprep.mubr.f32.mxu0 0.0
  %3358 = vmatmul.mubr.f32.gmra.mrb[0].mxu0 %v3291
  %v3359 = vpop.f32.mrb[0].mxu0
  %v3360 = vadd.f32 0.0, %v3359
  %v3361 = vpop.f32.mrb[0].mxu0
  %3362 = vdwg.mxu0
  %v3363 = vadd.f32 %v3276, %v3360
  %s3364 = scalar_lea.vmem %s9, 384
  %v3365 = vld [vmem:[%s3364] sm:$0xff]
  %v3366 = vld [vmem:[%s3364 + $0x8] sm:$0xff]
  %v3367 = vld [vmem:[%s3364 + $0x10] sm:$0xff]
  %v3368 = vld [vmem:[%s3364 + $0x18] sm:$0xff]
  %v3369 = vld [vmem:[%s3364 + $0x20] sm:$0xff]
  %v3370 = vld [vmem:[%s3364 + $0x28] sm:$0xff]
  %v3371 = vld [vmem:[%s3364 + $0x30] sm:$0xff]
  %v3372 = vld [vmem:[%s3364 + $0x38] sm:$0xff]
  %v3373 = vld [vmem:[%s3364 + $0x40] sm:$0xff]
  %v3374 = vld [vmem:[%s3364 + $0x48] sm:$0xff]
  %v3375 = vld [vmem:[%s3364 + $0x50] sm:$0xff]
  %v3376 = vld [vmem:[%s3364 + $0x58] sm:$0xff]
  %v3378 = vsel %vm3043, %v3010, 0
  %3380 = vmatprep.subr.mxu0 0.0
  %3381 = vmatpush1.msra.mxu0 %v3365
  %3382 = vmatprep.subr.mxu0 0.0
  %3383 = vmatpush1.msra.mxu0 %v3366
  %3384 = vmatprep.subr.mxu0 0.0
  %3385 = vmatpush1.msra.mxu0 %v3367
  %3386 = vmatprep.subr.mxu0 0.0
  %3387 = vmatpush1.msra.mxu0 %v3368
  %3388 = vmatprep.subr.mxu0 0.0
  %3389 = vmatpush1.msra.mxu0 %v3369
  %3390 = vmatprep.subr.mxu0 0.0
  %3391 = vmatpush1.msra.mxu0 %v3370
  %3392 = vmatprep.subr.mxu0 0.0
  %3393 = vmatpush1.msra.mxu0 %v3371
  %3394 = vmatprep.subr.mxu0 0.0
  %3395 = vmatpush1.msra.mxu0 %v3372
  %3396 = vmatprep.subr.mxu0 0.0
  %3397 = vmatpush1.msra.mxu0 %v3373
  %3398 = vmatprep.subr.mxu0 0.0
  %3399 = vmatpush1.msra.mxu0 %v3374
  %3400 = vmatprep.subr.mxu0 0.0
  %3401 = vmatpush1.msra.mxu0 %v3375
  %3402 = vmatprep.subr.mxu0 0.0
  %3403 = vmatpush1.msra.mxu0 %v3376
  %3404 = vmatprep.subr.mxu0 0.0
  %3405 = vmatpush1.msra.mxu0 0.0
  %3406 = vmatprep.subr.mxu0 0.0
  %3407 = vmatpush1.msra.mxu0 0.0
  %3408 = vmatprep.subr.mxu0 0.0
  %3409 = vmatpush1.msra.mxu0 0.0
  %3410 = vmatprep.subr.mxu0 0.0
  %3411 = vmatpush1.msra.mxu0 0.0
  %3412 = vmatprep.subr.mxu0 0.0
  %3413 = vmatpush1.msra.mxu0 0.0
  %3414 = vmatprep.subr.mxu0 0.0
  %3415 = vmatpush1.msra.mxu0 0.0
  %3416 = vmatprep.subr.mxu0 0.0
  %3417 = vmatpush1.msra.mxu0 0.0
  %3418 = vmatprep.subr.mxu0 0.0
  %3419 = vmatpush1.msra.mxu0 0.0
  %3420 = vmatprep.subr.mxu0 0.0
  %3421 = vmatpush1.msra.mxu0 0.0
  %3422 = vmatprep.subr.mxu0 0.0
  %3423 = vmatpush1.msra.mxu0 0.0
  %3424 = vmatprep.subr.mxu0 0.0
  %3425 = vmatpush1.msra.mxu0 0.0
  %3426 = vmatprep.subr.mxu0 0.0
  %3427 = vmatpush1.msra.mxu0 0.0
  %3428 = vmatprep.subr.mxu0 0.0
  %3429 = vmatpush1.msra.mxu0 0.0
  %3430 = vmatprep.subr.mxu0 0.0
  %3431 = vmatpush1.msra.mxu0 0.0
  %3432 = vmatprep.subr.mxu0 0.0
  %3433 = vmatpush1.msra.mxu0 0.0
  %3434 = vmatprep.subr.mxu0 0.0
  %3435 = vmatpush1.msra.mxu0 0.0
  %3436 = vmatprep.subr.mxu0 0.0
  %3437 = vmatpush1.msra.mxu0 0.0
  %3438 = vmatprep.subr.mxu0 0.0
  %3439 = vmatpush1.msra.mxu0 0.0
  %3440 = vmatprep.subr.mxu0 0.0
  %3441 = vmatpush1.msra.mxu0 0.0
  %3442 = vmatprep.subr.mxu0 0.0
  %3443 = vmatpush1.msra.mxu0 0.0
  %3444 = vmatprep.mubr.f32.mxu0 0.0
  %3445 = vmatmul.mubr.f32.gmra.mrb[0].mxu0 %v3378
  %v3446 = vpop.f32.mrb[0].mxu0
  %v3447 = vadd.f32 0.0, %v3446
  %v3448 = vpop.f32.mrb[0].mxu0
  %3449 = vdwg.mxu0
  %v3450 = vadd.f32 %v3363, %v3447
  %s3451 = scalar_lea.vmem %s9, 480
  %v3452 = vld [vmem:[%s3451] sm:$0xff]
  %v3453 = vld [vmem:[%s3451 + $0x8] sm:$0xff]
  %v3454 = vld [vmem:[%s3451 + $0x10] sm:$0xff]
  %v3455 = vld [vmem:[%s3451 + $0x18] sm:$0xff]
  %v3456 = vld [vmem:[%s3451 + $0x20] sm:$0xff]
  %v3457 = vld [vmem:[%s3451 + $0x28] sm:$0xff]
  %v3458 = vld [vmem:[%s3451 + $0x30] sm:$0xff]
  %v3459 = vld [vmem:[%s3451 + $0x38] sm:$0xff]
  %v3460 = vld [vmem:[%s3451 + $0x40] sm:$0xff]
  %v3461 = vld [vmem:[%s3451 + $0x48] sm:$0xff]
  %v3462 = vld [vmem:[%s3451 + $0x50] sm:$0xff]
  %v3463 = vld [vmem:[%s3451 + $0x58] sm:$0xff]
  %v3465 = vsel %vm3043, %v3015, 0
  %3467 = vmatprep.subr.mxu0 0.0
  %3468 = vmatpush1.msra.mxu0 %v3452
  %3469 = vmatprep.subr.mxu0 0.0
  %3470 = vmatpush1.msra.mxu0 %v3453
  %3471 = vmatprep.subr.mxu0 0.0
  %3472 = vmatpush1.msra.mxu0 %v3454
  %3473 = vmatprep.subr.mxu0 0.0
  %3474 = vmatpush1.msra.mxu0 %v3455
  %3475 = vmatprep.subr.mxu0 0.0
  %3476 = vmatpush1.msra.mxu0 %v3456
  %3477 = vmatprep.subr.mxu0 0.0
  %3478 = vmatpush1.msra.mxu0 %v3457
  %3479 = vmatprep.subr.mxu0 0.0
  %3480 = vmatpush1.msra.mxu0 %v3458
  %3481 = vmatprep.subr.mxu0 0.0
  %3482 = vmatpush1.msra.mxu0 %v3459
  %3483 = vmatprep.subr.mxu0 0.0
  %3484 = vmatpush1.msra.mxu0 %v3460
  %3485 = vmatprep.subr.mxu0 0.0
  %3486 = vmatpush1.msra.mxu0 %v3461
  %3487 = vmatprep.subr.mxu0 0.0
  %3488 = vmatpush1.msra.mxu0 %v3462
  %3489 = vmatprep.subr.mxu0 0.0
  %3490 = vmatpush1.msra.mxu0 %v3463
  %3491 = vmatprep.subr.mxu0 0.0
  %3492 = vmatpush1.msra.mxu0 0.0
  %3493 = vmatprep.subr.mxu0 0.0
  %3494 = vmatpush1.msra.mxu0 0.0
  %3495 = vmatprep.subr.mxu0 0.0
  %3496 = vmatpush1.msra.mxu0 0.0
  %3497 = vmatprep.subr.mxu0 0.0
  %3498 = vmatpush1.msra.mxu0 0.0
  %3499 = vmatprep.subr.mxu0 0.0
  %3500 = vmatpush1.msra.mxu0 0.0
  %3501 = vmatprep.subr.mxu0 0.0
  %3502 = vmatpush1.msra.mxu0 0.0
  %3503 = vmatprep.subr.mxu0 0.0
  %3504 = vmatpush1.msra.mxu0 0.0
  %3505 = vmatprep.subr.mxu0 0.0
  %3506 = vmatpush1.msra.mxu0 0.0
  %3507 = vmatprep.subr.mxu0 0.0
  %3508 = vmatpush1.msra.mxu0 0.0
  %3509 = vmatprep.subr.mxu0 0.0
  %3510 = vmatpush1.msra.mxu0 0.0
  %3511 = vmatprep.subr.mxu0 0.0
  %3512 = vmatpush1.msra.mxu0 0.0
  %3513 = vmatprep.subr.mxu0 0.0
  %3514 = vmatpush1.msra.mxu0 0.0
  %3515 = vmatprep.subr.mxu0 0.0
  %3516 = vmatpush1.msra.mxu0 0.0
  %3517 = vmatprep.subr.mxu0 0.0
  %3518 = vmatpush1.msra.mxu0 0.0
  %3519 = vmatprep.subr.mxu0 0.0
  %3520 = vmatpush1.msra.mxu0 0.0
  %3521 = vmatprep.subr.mxu0 0.0
  %3522 = vmatpush1.msra.mxu0 0.0
  %3523 = vmatprep.subr.mxu0 0.0
  %3524 = vmatpush1.msra.mxu0 0.0
  %3525 = vmatprep.subr.mxu0 0.0
  %3526 = vmatpush1.msra.mxu0 0.0
  %3527 = vmatprep.subr.mxu0 0.0
  %3528 = vmatpush1.msra.mxu0 0.0
  %3529 = vmatprep.subr.mxu0 0.0
  %3530 = vmatpush1.msra.mxu0 0.0
  %3531 = vmatprep.mubr.f32.mxu0 0.0
  %3532 = vmatmul.mubr.f32.gmra.mrb[0].mxu0 %v3465
  %v3533 = vpop.f32.mrb[0].mxu0
  %v3534 = vadd.f32 0.0, %v3533
  %v3535 = vpop.f32.mrb[0].mxu0
  %3536 = vdwg.mxu0
  %v3537 = vadd.f32 %v3450, %v3534
  %v3538 = vld [vmem:[%s10] sm:$0x1]
  %v3540 = vlaneseq
  %v3541 = vshrl.u32 %v3540, 7
  %v3542 = vsub.s32 0, %v3541
  %v3543 = vrot.slane %v3538, %v3542
  %v3545 = vadd.f32 %v3537, %v3543
  %v3546 = vmax.f32 %v3545, 0.0
  %v3547 = vld [vmem:[%s11] sm:$0xff]
  %v3548 = vld [vmem:[%s11 + $0x8] sm:$0xff]
  %v3549 = vld [vmem:[%s11 + $0x10] sm:$0xff]
  %v3550 = vld [vmem:[%s11 + $0x18] sm:$0xff]
  %v3551 = vld [vmem:[%s11 + $0x20] sm:$0xff]
  %v3552 = vld [vmem:[%s11 + $0x28] sm:$0xff]
  %v3553 = vld [vmem:[%s11 + $0x30] sm:$0xff]
  %v3554 = vld [vmem:[%s11 + $0x38] sm:$0xff]
  %v3555 = vld [vmem:[%s11 + $0x40] sm:$0xff]
  %v3556 = vld [vmem:[%s11 + $0x48] sm:$0xff]
  %v3557 = vld [vmem:[%s11 + $0x50] sm:$0xff]
  %v3558 = vld [vmem:[%s11 + $0x58] sm:$0xff]
  %v3559 = vld [vmem:[%s11 + $0x60] sm:$0xff]
  %v3560 = vld [vmem:[%s11 + $0x68] sm:$0xff]
  %v3561 = vld [vmem:[%s11 + $0x70] sm:$0xff]
  %v3562 = vld [vmem:[%s11 + $0x78] sm:$0xff]
  %v3563 = vld [vmem:[%s12] sm:$0x1]
  %v3565 = vlaneseq
  %v3566 = vshrl.u32 %v3565, 7
  %v3567 = vsub.s32 0, %v3566
  %v3568 = vrot.slane %v3563, %v3567
  %3570 = vmatprep.subr.mxu0 0.0
  %3571 = vmatpush1.msra.mxu0 %v3547
  %3572 = vmatprep.subr.mxu0 0.0
  %3573 = vmatpush1.msra.mxu0 %v3548
  %3574 = vmatprep.subr.mxu0 0.0
  %3575 = vmatpush1.msra.mxu0 %v3549
  %3576 = vmatprep.subr.mxu0 0.0
  %3577 = vmatpush1.msra.mxu0 %v3550
  %3578 = vmatprep.subr.mxu0 0.0
  %3579 = vmatpush1.msra.mxu0 %v3551
  %3580 = vmatprep.subr.mxu0 0.0
  %3581 = vmatpush1.msra.mxu0 %v3552
  %3582 = vmatprep.subr.mxu0 0.0
  %3583 = vmatpush1.msra.mxu0 %v3553
  %3584 = vmatprep.subr.mxu0 0.0
  %3585 = vmatpush1.msra.mxu0 %v3554
  %3586 = vmatprep.subr.mxu0 0.0
  %3587 = vmatpush1.msra.mxu0 %v3555
  %3588 = vmatprep.subr.mxu0 0.0
  %3589 = vmatpush1.msra.mxu0 %v3556
  %3590 = vmatprep.subr.mxu0 0.0
  %3591 = vmatpush1.msra.mxu0 %v3557
  %3592 = vmatprep.subr.mxu0 0.0
  %3593 = vmatpush1.msra.mxu0 %v3558
  %3594 = vmatprep.subr.mxu0 0.0
  %3595 = vmatpush1.msra.mxu0 %v3559
  %3596 = vmatprep.subr.mxu0 0.0
  %3597 = vmatpush1.msra.mxu0 %v3560
  %3598 = vmatprep.subr.mxu0 0.0
  %3599 = vmatpush1.msra.mxu0 %v3561
  %3600 = vmatprep.subr.mxu0 0.0
  %3601 = vmatpush1.msra.mxu0 %v3562
  %3602 = vmatprep.subr.mxu0 0.0
  %3603 = vmatpush1.msra.mxu0 0.0
  %3604 = vmatprep.subr.mxu0 0.0
  %3605 = vmatpush1.msra.mxu0 0.0
  %3606 = vmatprep.subr.mxu0 0.0
  %3607 = vmatpush1.msra.mxu0 0.0
  %3608 = vmatprep.subr.mxu0 0.0
  %3609 = vmatpush1.msra.mxu0 0.0
  %3610 = vmatprep.subr.mxu0 0.0
  %3611 = vmatpush1.msra.mxu0 0.0
  %3612 = vmatprep.subr.mxu0 0.0
  %3613 = vmatpush1.msra.mxu0 0.0
  %3614 = vmatprep.subr.mxu0 0.0
  %3615 = vmatpush1.msra.mxu0 0.0
  %3616 = vmatprep.subr.mxu0 0.0
  %3617 = vmatpush1.msra.mxu0 0.0
  %3618 = vmatprep.subr.mxu0 0.0
  %3619 = vmatpush1.msra.mxu0 0.0
  %3620 = vmatprep.subr.mxu0 0.0
  %3621 = vmatpush1.msra.mxu0 0.0
  %3622 = vmatprep.subr.mxu0 0.0
  %3623 = vmatpush1.msra.mxu0 0.0
  %3624 = vmatprep.subr.mxu0 0.0
  %3625 = vmatpush1.msra.mxu0 0.0
  %3626 = vmatprep.subr.mxu0 0.0
  %3627 = vmatpush1.msra.mxu0 0.0
  %3628 = vmatprep.subr.mxu0 0.0
  %3629 = vmatpush1.msra.mxu0 0.0
  %3630 = vmatprep.subr.mxu0 0.0
  %3631 = vmatpush1.msra.mxu0 0.0
  %3632 = vmatprep.subr.mxu0 0.0
  %3633 = vmatpush1.msra.mxu0 0.0
  %3634 = vmatprep.mubr.f32.mxu0 0.0
  %3635 = vmatmul.mubr.f32.gmra.mrb[0].mxu0 %v3546
  %v3636 = vpop.f32.mrb[0].mxu0
  %v3637 = vadd.f32 %v3568, %v3636
  %v3638 = vpop.f32.mrb[0].mxu0
  %3639 = vdwg.mxu0
  %v3640 = vmax.f32 %v3637, 0.0
  %3641 = vst [vmem:[%s13] sm:$0xff] %v3640
  // Predicated region
  $region54: #{feature_extractor_pallas.1} parent=0 // pred_check
    _
  $region55: #{feature_extractor_pallas.1} parent=0 // pred_check_branch
    %3643 = sbr.rel (0) target = $region57
  $region56: #{feature_extractor_pallas.1} parent=0 // pred_region
    _
  $region57: #{feature_extractor_pallas.1} parent=0 // pred_fallthru
    _
  // Predicated region
  $region58: #{feature_extractor_pallas.1} parent=0 // pred_check
    _
  $region59: #{feature_extractor_pallas.1} parent=0 // pred_check_branch
    %3645 = sbr.rel (0) target = $region61
  $region60: #{feature_extractor_pallas.1} parent=0 // pred_region
    _
  $region61: #{feature_extractor_pallas.1} parent=0 // pred_fallthru
    _

</llo_original>
